<compile_context>
chip_gen: v7x
topology: tpu7x:2x2x1
jax: 0.10.0
libtpu: 0.0.40
codegen_flags: <defaults>
</compile_context>

<pallas_src>
import math
from functools import partial

import numpy as np
import jax
import jax.numpy as jnp
from jax import lax
from jax.experimental import pallas as pl
from jax.experimental.pallas import tpu as pltpu

IMPOSSIBLE = -10000.0


# ----------------------------------------------------------------------------
# Fused kernel: encoder stack + CRF emission + Viterbi decode (fwd + backtrack)
# ----------------------------------------------------------------------------
def _transformer_crf_kernel(n_heads, n_layers,
                            h_ref, mask_ref,
                            wqkv_ref, bqkv_ref, wo_ref, bo_ref,
                            w1_ref, b1_ref, w2_ref, b2_ref,
                            g1_ref, be1_ref, g2_ref, be2_ref,
                            fcw_ref, fcb_ref, trans_ref,
                            score_ref, tags_ref):
    B, L, E = h_ref.shape
    H = n_heads
    dh = E // H
    C = trans_ref.shape[0]
    start_idx, stop_idx = C - 2, C - 1
    scale = 1.0 / math.sqrt(dh)
    f32, bf16 = jnp.float32, jnp.bfloat16

    mask = mask_ref[...]                                          # (B, L) float32
    # key-padding attention bias, hoisted (shared by all layers / heads): (B, 1, L)
    key_bias = ((1.0 - mask) * IMPOSSIBLE)[:, None, :]

    h = h_ref[...]                                                # (B, L, E) f32 residual stream

    # ---------------- Transformer encoder stack (all layers, one kernel body) ----------------
    for l in range(n_layers):
        # Fused QKV projection: ONE (B*L, E) @ (E, 3E) bf16 matmul, 96-lane output.
        x2d = h.reshape(B * L, E).astype(bf16)
        qkv = jnp.dot(x2d, wqkv_ref[l], preferred_element_type=f32) + bqkv_ref[l]   # (B*L, 3E) f32
        q3 = qkv[:, 0 * E:1 * E].reshape(B, L, E).astype(bf16)
        k3 = qkv[:, 1 * E:2 * E].reshape(B, L, E).astype(bf16)
        v3 = qkv[:, 2 * E:3 * E].reshape(B, L, E).astype(bf16)

        # Per-head attention: only the score / PV einsums drop to the dh-lane layout.
        o_heads = []
        for hh in range(H):
            sl = slice(hh * dh, (hh + 1) * dh)
            q_h, k_h, v_h = q3[:, :, sl], k3[:, :, sl], v3[:, :, sl]        # (B, L, dh) bf16
            s = jnp.einsum('bld,bmd->blm', q_h, k_h,
                           preferred_element_type=f32) * scale + key_bias   # (B, L, L) f32
            s = s - jnp.max(s, axis=-1, keepdims=True)
            p = jnp.exp(s)
            p = p * pl.reciprocal(jnp.sum(p, axis=-1, keepdims=True), approx=True)  # EUP divide
            o_heads.append(jnp.einsum('blm,bmd->bld', p.astype(bf16), v_h,
                                      preferred_element_type=f32))          # (B, L, dh) f32

        # Concat heads back to E lanes, then ONE output projection against the un-split Wo.
        o_cat = jnp.concatenate(o_heads, axis=-1).reshape(B * L, E)         # (B*L, E) f32
        attn = jnp.dot(o_cat.astype(bf16), wo_ref[l],
                       preferred_element_type=f32) + bo_ref[l]              # (B*L, E) f32

        # Residual + LayerNorm 1 (f32; v5e has no bf16 VPU).
        h1 = h + attn.reshape(B, L, E)
        mu = jnp.mean(h1, axis=-1, keepdims=True)
        var = jnp.mean((h1 - mu) ** 2, axis=-1, keepdims=True)
        h1 = (h1 - mu) * lax.rsqrt(var + 1e-5) * g1_ref[l] + be1_ref[l]

        # FFN: (B*L, E) @ (E, Hdim) -> ReLU -> @ (Hdim, E), bf16 operands / f32 accumulate.
        f = jnp.dot(h1.reshape(B * L, E).astype(bf16), w1_ref[l],
                    preferred_element_type=f32) + b1_ref[l]
        f = jnp.maximum(f, 0.0)
        f = jnp.dot(f.astype(bf16), w2_ref[l], preferred_element_type=f32) + b2_ref[l]

        # Residual + LayerNorm 2.
        h2 = h1 + f.reshape(B, L, E)
        mu2 = jnp.mean(h2, axis=-1, keepdims=True)
        var2 = jnp.mean((h2 - mu2) ** 2, axis=-1, keepdims=True)
        h = (h2 - mu2) * lax.rsqrt(var2 + 1e-5) * g2_ref[l] + be2_ref[l]

    # ---------------- CRF: emission projection (bf16 MXU) + Viterbi forward (f32) ----------------
    emis = (jnp.dot(h.reshape(B * L, E).astype(bf16), fcw_ref[...],
                    preferred_element_type=f32) + fcb_ref[...]).reshape(B, L, C)
    trans = trans_ref[...]                                        # (C, C), trans[next, prev]
    trans_b = jnp.broadcast_to(trans[None, :, :], (B, C, C))      # hoisted out of the unroll

    tag_iota = lax.broadcasted_iota(jnp.int32, (B, C), 1)
    max_score = jnp.where(tag_iota == start_idx, 0.0, IMPOSSIBLE)  # (B, C)

    bps = []                                                       # backpointers stay in registers
    for t in range(L):                                             # L is static: unrolled
        acc = trans_b + max_score[:, None, :]                      # (B, C_next, C_prev)
        best = jnp.max(acc, axis=-1)                               # (B, C)
        bps.append(jnp.argmax(acc, axis=-1).astype(jnp.int32))     # (B, C)
        best = best + emis[:, t, :]
        m_t = mask[:, t:t + 1]                                     # (B, 1)
        max_score = best * m_t + max_score * (1.0 - m_t)

    final = max_score + trans[stop_idx:stop_idx + 1, :]
    score_ref[...] = jnp.max(final, axis=-1, keepdims=True)        # (B, 1)
    best_tag = jnp.argmax(final, axis=-1).astype(jnp.int32)[:, None]  # (B, 1)

    # ---------------- Backtracking on-device: one dense (B, L) store ----------------
    pos_iota = lax.broadcasted_iota(jnp.int32, (B, L), 1)
    tags = jnp.zeros((B, L), jnp.int32)
    cur = best_tag
    for t in range(L - 1, -1, -1):
        active = mask[:, t:t + 1] > 0.5                            # t < seq_len
        tags = jnp.where(pos_iota == t, jnp.where(active, cur, 0), tags)
        sel = jnp.sum(jnp.where(tag_iota == cur, bps[t].astype(f32), 0.0),
                      axis=-1, keepdims=True).astype(jnp.int32)    # bps[t][b, cur[b]]
        cur = jnp.where(active, sel, cur)
    tags_ref[...] = tags


# ----------------------------------------------------------------------------
# Glue: params, positional encoding, jitted device forward, host wrapper
# ----------------------------------------------------------------------------
def _positional_encoding(L, D):
    # jnp so it traces once inside the jitted forward (constant-folded / cached by jit).
    pos = jnp.arange(L, dtype=jnp.float32)[:, None]
    idx = jnp.arange(D, dtype=jnp.float32)[None, :]
    angle = pos / jnp.power(10000.0, (2.0 * jnp.floor(idx / 2.0)) / D)
    return jnp.where((jnp.arange(D) % 2 == 0)[None, :], jnp.sin(angle), jnp.cos(angle))


def init_params(key, E, Hdim, n_layers, n_heads, tagset_size):
    C = tagset_size + 2
    wqkv, bqkv, wo, bo = [], [], [], []
    w1, b1, w2, b2 = [], [], [], []
    g1, be1, g2, be2 = [], [], [], []
    for _ in range(n_layers):
        key, k0, k1, k2, k3, k4, k5 = jax.random.split(key, 7)
        wq_f = 0.1 * jax.random.normal(k0, (E, E), jnp.float32)
        wk_f = 0.1 * jax.random.normal(k1, (E, E), jnp.float32)
        wv_f = 0.1 * jax.random.normal(k2, (E, E), jnp.float32)
        wo_f = 0.1 * jax.random.normal(k3, (E, E), jnp.float32)
        # Fuse [Wq | Wk | Wv] into one (E, 3E) MXU operand; head h occupies lanes h*dh:(h+1)*dh of each block.
        wqkv.append(jnp.concatenate([wq_f, wk_f, wv_f], axis=1))    # (E, 3E)
        bqkv.append(jnp.zeros((1, 3 * E), jnp.float32))
        wo.append(wo_f)                                             # un-split (E, E): rows = concat(head outputs)
        bo.append(jnp.zeros((1, E), jnp.float32))
        w1.append(0.1 * jax.random.normal(k4, (E, Hdim), jnp.float32))
        b1.append(jnp.zeros((1, Hdim), jnp.float32))
        w2.append(0.1 * jax.random.normal(k5, (Hdim, E), jnp.float32))
        b2.append(jnp.zeros((1, E), jnp.float32))
        g1.append(jnp.ones((1, E), jnp.float32))
        be1.append(jnp.zeros((1, E), jnp.float32))
        g2.append(jnp.ones((1, E), jnp.float32))
        be2.append(jnp.zeros((1, E), jnp.float32))

    key, kw, kt = jax.random.split(key, 3)
    bound = 1.0 / math.sqrt(E)
    fc_w = jax.random.uniform(kw, (C, E), jnp.float32, -bound, bound)  # torch Linear [out, in]
    fc_b = jnp.zeros((1, C), jnp.float32)
    trans = jax.random.normal(kt, (C, C), jnp.float32)
    trans = trans.at[C - 2, :].set(IMPOSSIBLE)   # transitions[start_idx, :] = IMPOSSIBLE
    trans = trans.at[:, C - 1].set(IMPOSSIBLE)   # transitions[:, stop_idx]  = IMPOSSIBLE

    bfp = lambda lst: jnp.stack(lst).astype(jnp.bfloat16)   # MXU operands
    fp = lambda lst: jnp.stack(lst)                         # biases / LN params
    return dict(
        wqkv=bfp(wqkv), bqkv=fp(bqkv), wo=bfp(wo), bo=fp(bo),
        w1=bfp(w1), b1=fp(b1), w2=bfp(w2), b2=fp(b2),
        g1=fp(g1), be1=fp(be1), g2=fp(g2), be2=fp(be2),
        fc_wt=fc_w.T.astype(jnp.bfloat16), fc_b=fc_b, trans=trans)


@partial(jax.jit, static_argnames=("n_heads",))
def _device_forward(params, xs, lengths, n_heads):
    B, L, E = xs.shape
    n_layers = params["wqkv"].shape[0]
    Hdim = params["w1"].shape[-1]
    C = params["trans"].shape[0]
    H, dh = n_heads, E // n_heads

    # create_mask(xs, lengths) stand-in + sinusoidal positional encoding, fused with dispatch by jit.
    masks = (jnp.arange(L)[None, :] < lengths[:, None]).astype(jnp.float32)   # (B, L)
    h0 = xs + _positional_encoding(L, E)[None, :, :]

    inputs = [h0, masks,
              params["wqkv"], params["bqkv"], params["wo"], params["bo"],
              params["w1"], params["b1"], params["w2"], params["b2"],
              params["g1"], params["be1"], params["g2"], params["be2"],
              params["fc_wt"], params["fc_b"], params["trans"]]

    # Advisory cost estimate for the whole fused body (matmul flops + softmax transcendentals).
    flops = n_layers * (2 * B * L * E * 3 * E          # fused QKV projection
                        + 2 * 2 * B * H * L * L * dh   # scores + PV
                        + 2 * B * L * E * E            # output projection
                        + 2 * 2 * B * L * E * Hdim)    # FFN
    flops += 2 * B * L * E * C                         # CRF emission
    transcendentals = n_layers * (B * H * L * L + 2 * B * L)
    bytes_accessed = sum(int(np.prod(a.shape)) * a.dtype.itemsize for a in inputs)
    bytes_accessed += B * 4 + B * L * 4                # outputs

    vmem_spec = pl.BlockSpec(memory_space=pltpu.MemorySpace.VMEM)
    score, tags = pl.pallas_call(
        partial(_transformer_crf_kernel, n_heads, n_layers),
        in_specs=[vmem_spec] * len(inputs),
        out_specs=(vmem_spec, vmem_spec),
        out_shape=(jax.ShapeDtypeStruct((B, 1), jnp.float32),
                   jax.ShapeDtypeStruct((B, L), jnp.int32)),
        cost_estimate=pl.CostEstimate(flops=int(flops),
                                      transcendentals=int(transcendentals),
                                      bytes_accessed=int(bytes_accessed)),
    )(*inputs)
    return score[:, 0], tags


def transformer_crf_forward(params, xs, lengths, n_heads):
    best_score, tags = _device_forward(params, xs, lengths, n_heads)
    # Host side only slices the ragged per-batch paths (no backpointer transfer, no per-step loop).
    tags_np = np.asarray(jax.device_get(tags))
    lens_np = np.asarray(jax.device_get(lengths))
    best_paths = [tags_np[b, :int(lens_np[b])].tolist() for b in range(tags_np.shape[0])]
    return best_score, best_paths


if __name__ == "__main__":
    B, L, E, Hdim = 2, 8, 32, 64
    n_layers, n_heads, tagset_size = 2, 4, 6

    key = jax.random.PRNGKey(0)
    kx, kp = jax.random.split(key)
    xs = jax.random.normal(kx, (B, L, E), jnp.float32)
    lengths = jnp.array([8, 5], jnp.int32)
    params = init_params(kp, E, Hdim, n_layers, n_heads, tagset_size)

    best_score, best_paths = transformer_crf_forward(params, xs, lengths, n_heads)
    jax.block_until_ready(best_score)
    assert best_score.shape == (B,)
    assert len(best_paths) == B
    assert len(best_paths[0]) == int(lengths[0])
    assert len(best_paths[1]) == int(lengths[1])
    assert all(0 <= t < tagset_size + 2 for path in best_paths for t in path)
    print("KERNEL_OK")
</pallas_src>

<mosaic_0001>
module attributes {stable_mosaic.version = 11 : i64} {
  func.func @_transformer_crf_kernel(%arg0: memref<2x8x32xf32, #tpu.memory_space<vmem>>, %arg1: memref<2x8xf32, #tpu.memory_space<vmem>>, %arg2: memref<2x32x96xbf16, #tpu.memory_space<vmem>>, %arg3: memref<2x1x96xf32, #tpu.memory_space<vmem>>, %arg4: memref<2x32x32xbf16, #tpu.memory_space<vmem>>, %arg5: memref<2x1x32xf32, #tpu.memory_space<vmem>>, %arg6: memref<2x32x64xbf16, #tpu.memory_space<vmem>>, %arg7: memref<2x1x64xf32, #tpu.memory_space<vmem>>, %arg8: memref<2x64x32xbf16, #tpu.memory_space<vmem>>, %arg9: memref<2x1x32xf32, #tpu.memory_space<vmem>>, %arg10: memref<2x1x32xf32, #tpu.memory_space<vmem>>, %arg11: memref<2x1x32xf32, #tpu.memory_space<vmem>>, %arg12: memref<2x1x32xf32, #tpu.memory_space<vmem>>, %arg13: memref<2x1x32xf32, #tpu.memory_space<vmem>>, %arg14: memref<32x8xbf16, #tpu.memory_space<vmem>>, %arg15: memref<1x8xf32, #tpu.memory_space<vmem>>, %arg16: memref<8x8xf32, #tpu.memory_space<vmem>>, %arg17: memref<2x1xf32, #tpu.memory_space<vmem>>, %arg18: memref<2x8xi32, #tpu.memory_space<vmem>>) attributes {dimension_semantics = [], scalar_prefetch = 0 : i64, scratch_operands = 0 : i64, tpu.core_type = #tpu.core_type<tc>} {
    %c0 = arith.constant 0 : index
    %c0_0 = arith.constant 0 : index
    %0 = vector.load %arg1[%c0, %c0_0] : memref<2x8xf32, #tpu.memory_space<vmem>>, vector<2x8xf32>
    %cst = arith.constant 1.000000e+00 : f32
    %1 = vector.broadcast %cst : f32 to vector<2x8xf32>
    %2 = arith.subf %1, %0 : vector<2x8xf32>
    %cst_1 = arith.constant -1.000000e+04 : f32
    %3 = vector.broadcast %cst_1 : f32 to vector<2x8xf32>
    %4 = arith.mulf %2, %3 : vector<2x8xf32>
    %5 = vector.shape_cast %4 : vector<2x8xf32> to vector<2x1x8xf32>
    %c0_2 = arith.constant 0 : index
    %c0_3 = arith.constant 0 : index
    %c0_4 = arith.constant 0 : index
    %6 = vector.load %arg0[%c0_2, %c0_3, %c0_4] : memref<2x8x32xf32, #tpu.memory_space<vmem>>, vector<2x8x32xf32>
    %7 = vector.shape_cast %6 : vector<2x8x32xf32> to vector<16x32xf32>
    %8 = arith.truncf %7 : vector<16x32xf32> to vector<16x32xbf16>
    %c0_5 = arith.constant 0 : index
    %c0_6 = arith.constant 0 : index
    %c0_7 = arith.constant 0 : index
    %9 = vector.load %arg2[%c0_5, %c0_6, %c0_7] : memref<2x32x96xbf16, #tpu.memory_space<vmem>>, vector<1x32x96xbf16>
    %10 = vector.shape_cast %9 : vector<1x32x96xbf16> to vector<32x96xbf16>
    %cst_8 = arith.constant dense<0.000000e+00> : vector<16x96xf32>
    %11 = tpu.matmul %8, %10, %cst_8 {dimension_numbers = #tpu.dot_dimension_numbers<[1], [0], [0], [1], [0, 0, 1, 1], [], []>} : vector<16x32xbf16>, vector<32x96xbf16>, vector<16x96xf32> -> vector<16x96xf32>
    %c0_9 = arith.constant 0 : index
    %c0_10 = arith.constant 0 : index
    %c0_11 = arith.constant 0 : index
    %12 = vector.load %arg3[%c0_9, %c0_10, %c0_11] : memref<2x1x96xf32, #tpu.memory_space<vmem>>, vector<1x1x96xf32>
    %13 = vector.shape_cast %12 : vector<1x1x96xf32> to vector<1x96xf32>
    %14 = vector.broadcast %13 : vector<1x96xf32> to vector<16x96xf32>
    %15 = arith.addf %11, %14 : vector<16x96xf32>
    %16 = vector.extract_strided_slice %15 {offsets = [0, 0], sizes = [16, 32], strides = [1, 1]} : vector<16x96xf32> to vector<16x32xf32>
    %17 = vector.shape_cast %16 : vector<16x32xf32> to vector<2x8x32xf32>
    %18 = arith.truncf %17 : vector<2x8x32xf32> to vector<2x8x32xbf16>
    %19 = vector.extract_strided_slice %15 {offsets = [0, 32], sizes = [16, 32], strides = [1, 1]} : vector<16x96xf32> to vector<16x32xf32>
    %20 = vector.shape_cast %19 : vector<16x32xf32> to vector<2x8x32xf32>
    %21 = arith.truncf %20 : vector<2x8x32xf32> to vector<2x8x32xbf16>
    %22 = vector.extract_strided_slice %15 {offsets = [0, 64], sizes = [16, 32], strides = [1, 1]} : vector<16x96xf32> to vector<16x32xf32>
    %23 = vector.shape_cast %22 : vector<16x32xf32> to vector<2x8x32xf32>
    %24 = arith.truncf %23 : vector<2x8x32xf32> to vector<2x8x32xbf16>
    %25 = vector.extract_strided_slice %18 {offsets = [0, 0, 0], sizes = [2, 8, 8], strides = [1, 1, 1]} : vector<2x8x32xbf16> to vector<2x8x8xbf16>
    %26 = vector.extract_strided_slice %21 {offsets = [0, 0, 0], sizes = [2, 8, 8], strides = [1, 1, 1]} : vector<2x8x32xbf16> to vector<2x8x8xbf16>
    %27 = vector.extract_strided_slice %24 {offsets = [0, 0, 0], sizes = [2, 8, 8], strides = [1, 1, 1]} : vector<2x8x32xbf16> to vector<2x8x8xbf16>
    "tpu.trace_start"() <{level = 10 : i32, message = "bld,bmd->blm"}> : () -> ()
    %cst_12 = arith.constant dense<0.000000e+00> : vector<2x8x8xf32>
    %28 = tpu.matmul %25, %26, %cst_12 {dimension_numbers = #tpu.dot_dimension_numbers<[2], [2], [1], [1], [0, 0, 0, 1, 1, 1], [0], [0]>} : vector<2x8x8xbf16>, vector<2x8x8xbf16>, vector<2x8x8xf32> -> vector<2x8x8xf32>
    "tpu.trace_stop"() : () -> ()
    %cst_13 = arith.constant 0.353553385 : f32
    %29 = vector.broadcast %cst_13 : f32 to vector<2x8x8xf32>
    %30 = arith.mulf %28, %29 : vector<2x8x8xf32>
    %31 = vector.broadcast %5 : vector<2x1x8xf32> to vector<2x8x8xf32>
    %32 = arith.addf %30, %31 : vector<2x8x8xf32>
    %cst_14 = arith.constant dense<0xFF800000> : vector<2x8xf32>
    %33 = vector.multi_reduction <maximumf>, %32, %cst_14 [2] : vector<2x8x8xf32> to vector<2x8xf32>
    %34 = vector.shape_cast %33 : vector<2x8xf32> to vector<2x8x1xf32>
    %35 = vector.broadcast %34 : vector<2x8x1xf32> to vector<2x8x8xf32>
    %36 = arith.subf %32, %35 : vector<2x8x8xf32>
    %37 = math.exp %36 : vector<2x8x8xf32>
    %cst_15 = arith.constant dense<0.000000e+00> : vector<2x8xf32>
    %38 = vector.multi_reduction <add>, %37, %cst_15 [2] : vector<2x8x8xf32> to vector<2x8xf32>
    %39 = vector.shape_cast %38 : vector<2x8xf32> to vector<2x8x1xf32>
    %40 = tpu.reciprocal %39 {approx = true} : vector<2x8x1xf32> -> vector<2x8x1xf32>
    %41 = vector.broadcast %40 : vector<2x8x1xf32> to vector<2x8x8xf32>
    %42 = arith.mulf %37, %41 : vector<2x8x8xf32>
    %43 = arith.truncf %42 : vector<2x8x8xf32> to vector<2x8x8xbf16>
    "tpu.trace_start"() <{level = 10 : i32, message = "blm,bmd->bld"}> : () -> ()
    %cst_16 = arith.constant dense<0.000000e+00> : vector<2x8x8xf32>
    %44 = tpu.matmul %43, %27, %cst_16 {dimension_numbers = #tpu.dot_dimension_numbers<[2], [1], [1], [2], [0, 0, 0, 1, 1, 2], [0], [0]>} : vector<2x8x8xbf16>, vector<2x8x8xbf16>, vector<2x8x8xf32> -> vector<2x8x8xf32>
    "tpu.trace_stop"() : () -> ()
    %45 = vector.extract_strided_slice %18 {offsets = [0, 0, 8], sizes = [2, 8, 8], strides = [1, 1, 1]} : vector<2x8x32xbf16> to vector<2x8x8xbf16>
    %46 = vector.extract_strided_slice %21 {offsets = [0, 0, 8], sizes = [2, 8, 8], strides = [1, 1, 1]} : vector<2x8x32xbf16> to vector<2x8x8xbf16>
    %47 = vector.extract_strided_slice %24 {offsets = [0, 0, 8], sizes = [2, 8, 8], strides = [1, 1, 1]} : vector<2x8x32xbf16> to vector<2x8x8xbf16>
    "tpu.trace_start"() <{level = 10 : i32, message = "bld,bmd->blm"}> : () -> ()
    %cst_17 = arith.constant dense<0.000000e+00> : vector<2x8x8xf32>
    %48 = tpu.matmul %45, %46, %cst_17 {dimension_numbers = #tpu.dot_dimension_numbers<[2], [2], [1], [1], [0, 0, 0, 1, 1, 1], [0], [0]>} : vector<2x8x8xbf16>, vector<2x8x8xbf16>, vector<2x8x8xf32> -> vector<2x8x8xf32>
    "tpu.trace_stop"() : () -> ()
    %cst_18 = arith.constant 0.353553385 : f32
    %49 = vector.broadcast %cst_18 : f32 to vector<2x8x8xf32>
    %50 = arith.mulf %48, %49 : vector<2x8x8xf32>
    %51 = vector.broadcast %5 : vector<2x1x8xf32> to vector<2x8x8xf32>
    %52 = arith.addf %50, %51 : vector<2x8x8xf32>
    %cst_19 = arith.constant dense<0xFF800000> : vector<2x8xf32>
    %53 = vector.multi_reduction <maximumf>, %52, %cst_19 [2] : vector<2x8x8xf32> to vector<2x8xf32>
    %54 = vector.shape_cast %53 : vector<2x8xf32> to vector<2x8x1xf32>
    %55 = vector.broadcast %54 : vector<2x8x1xf32> to vector<2x8x8xf32>
    %56 = arith.subf %52, %55 : vector<2x8x8xf32>
    %57 = math.exp %56 : vector<2x8x8xf32>
    %cst_20 = arith.constant dense<0.000000e+00> : vector<2x8xf32>
    %58 = vector.multi_reduction <add>, %57, %cst_20 [2] : vector<2x8x8xf32> to vector<2x8xf32>
    %59 = vector.shape_cast %58 : vector<2x8xf32> to vector<2x8x1xf32>
    %60 = tpu.reciprocal %59 {approx = true} : vector<2x8x1xf32> -> vector<2x8x1xf32>
    %61 = vector.broadcast %60 : vector<2x8x1xf32> to vector<2x8x8xf32>
    %62 = arith.mulf %57, %61 : vector<2x8x8xf32>
    %63 = arith.truncf %62 : vector<2x8x8xf32> to vector<2x8x8xbf16>
    "tpu.trace_start"() <{level = 10 : i32, message = "blm,bmd->bld"}> : () -> ()
    %cst_21 = arith.constant dense<0.000000e+00> : vector<2x8x8xf32>
    %64 = tpu.matmul %63, %47, %cst_21 {dimension_numbers = #tpu.dot_dimension_numbers<[2], [1], [1], [2], [0, 0, 0, 1, 1, 2], [0], [0]>} : vector<2x8x8xbf16>, vector<2x8x8xbf16>, vector<2x8x8xf32> -> vector<2x8x8xf32>
    "tpu.trace_stop"() : () -> ()
    %65 = vector.extract_strided_slice %18 {offsets = [0, 0, 16], sizes = [2, 8, 8], strides = [1, 1, 1]} : vector<2x8x32xbf16> to vector<2x8x8xbf16>
    %66 = vector.extract_strided_slice %21 {offsets = [0, 0, 16], sizes = [2, 8, 8], strides = [1, 1, 1]} : vector<2x8x32xbf16> to vector<2x8x8xbf16>
    %67 = vector.extract_strided_slice %24 {offsets = [0, 0, 16], sizes = [2, 8, 8], strides = [1, 1, 1]} : vector<2x8x32xbf16> to vector<2x8x8xbf16>
    "tpu.trace_start"() <{level = 10 : i32, message = "bld,bmd->blm"}> : () -> ()
    %cst_22 = arith.constant dense<0.000000e+00> : vector<2x8x8xf32>
    %68 = tpu.matmul %65, %66, %cst_22 {dimension_numbers = #tpu.dot_dimension_numbers<[2], [2], [1], [1], [0, 0, 0, 1, 1, 1], [0], [0]>} : vector<2x8x8xbf16>, vector<2x8x8xbf16>, vector<2x8x8xf32> -> vector<2x8x8xf32>
    "tpu.trace_stop"() : () -> ()
    %cst_23 = arith.constant 0.353553385 : f32
    %69 = vector.broadcast %cst_23 : f32 to vector<2x8x8xf32>
    %70 = arith.mulf %68, %69 : vector<2x8x8xf32>
    %71 = vector.broadcast %5 : vector<2x1x8xf32> to vector<2x8x8xf32>
    %72 = arith.addf %70, %71 : vector<2x8x8xf32>
    %cst_24 = arith.constant dense<0xFF800000> : vector<2x8xf32>
    %73 = vector.multi_reduction <maximumf>, %72, %cst_24 [2] : vector<2x8x8xf32> to vector<2x8xf32>
    %74 = vector.shape_cast %73 : vector<2x8xf32> to vector<2x8x1xf32>
    %75 = vector.broadcast %74 : vector<2x8x1xf32> to vector<2x8x8xf32>
    %76 = arith.subf %72, %75 : vector<2x8x8xf32>
    %77 = math.exp %76 : vector<2x8x8xf32>
    %cst_25 = arith.constant dense<0.000000e+00> : vector<2x8xf32>
    %78 = vector.multi_reduction <add>, %77, %cst_25 [2] : vector<2x8x8xf32> to vector<2x8xf32>
    %79 = vector.shape_cast %78 : vector<2x8xf32> to vector<2x8x1xf32>
    %80 = tpu.reciprocal %79 {approx = true} : vector<2x8x1xf32> -> vector<2x8x1xf32>
    %81 = vector.broadcast %80 : vector<2x8x1xf32> to vector<2x8x8xf32>
    %82 = arith.mulf %77, %81 : vector<2x8x8xf32>
    %83 = arith.truncf %82 : vector<2x8x8xf32> to vector<2x8x8xbf16>
    "tpu.trace_start"() <{level = 10 : i32, message = "blm,bmd->bld"}> : () -> ()
    %cst_26 = arith.constant dense<0.000000e+00> : vector<2x8x8xf32>
    %84 = tpu.matmul %83, %67, %cst_26 {dimension_numbers = #tpu.dot_dimension_numbers<[2], [1], [1], [2], [0, 0, 0, 1, 1, 2], [0], [0]>} : vector<2x8x8xbf16>, vector<2x8x8xbf16>, vector<2x8x8xf32> -> vector<2x8x8xf32>
    "tpu.trace_stop"() : () -> ()
    %85 = vector.extract_strided_slice %18 {offsets = [0, 0, 24], sizes = [2, 8, 8], strides = [1, 1, 1]} : vector<2x8x32xbf16> to vector<2x8x8xbf16>
    %86 = vector.extract_strided_slice %21 {offsets = [0, 0, 24], sizes = [2, 8, 8], strides = [1, 1, 1]} : vector<2x8x32xbf16> to vector<2x8x8xbf16>
    %87 = vector.extract_strided_slice %24 {offsets = [0, 0, 24], sizes = [2, 8, 8], strides = [1, 1, 1]} : vector<2x8x32xbf16> to vector<2x8x8xbf16>
    "tpu.trace_start"() <{level = 10 : i32, message = "bld,bmd->blm"}> : () -> ()
    %cst_27 = arith.constant dense<0.000000e+00> : vector<2x8x8xf32>
    %88 = tpu.matmul %85, %86, %cst_27 {dimension_numbers = #tpu.dot_dimension_numbers<[2], [2], [1], [1], [0, 0, 0, 1, 1, 1], [0], [0]>} : vector<2x8x8xbf16>, vector<2x8x8xbf16>, vector<2x8x8xf32> -> vector<2x8x8xf32>
    "tpu.trace_stop"() : () -> ()
    %cst_28 = arith.constant 0.353553385 : f32
    %89 = vector.broadcast %cst_28 : f32 to vector<2x8x8xf32>
    %90 = arith.mulf %88, %89 : vector<2x8x8xf32>
    %91 = vector.broadcast %5 : vector<2x1x8xf32> to vector<2x8x8xf32>
    %92 = arith.addf %90, %91 : vector<2x8x8xf32>
    %cst_29 = arith.constant dense<0xFF800000> : vector<2x8xf32>
    %93 = vector.multi_reduction <maximumf>, %92, %cst_29 [2] : vector<2x8x8xf32> to vector<2x8xf32>
    %94 = vector.shape_cast %93 : vector<2x8xf32> to vector<2x8x1xf32>
    %95 = vector.broadcast %94 : vector<2x8x1xf32> to vector<2x8x8xf32>
    %96 = arith.subf %92, %95 : vector<2x8x8xf32>
    %97 = math.exp %96 : vector<2x8x8xf32>
    %cst_30 = arith.constant dense<0.000000e+00> : vector<2x8xf32>
    %98 = vector.multi_reduction <add>, %97, %cst_30 [2] : vector<2x8x8xf32> to vector<2x8xf32>
    %99 = vector.shape_cast %98 : vector<2x8xf32> to vector<2x8x1xf32>
    %100 = tpu.reciprocal %99 {approx = true} : vector<2x8x1xf32> -> vector<2x8x1xf32>
    %101 = vector.broadcast %100 : vector<2x8x1xf32> to vector<2x8x8xf32>
    %102 = arith.mulf %97, %101 : vector<2x8x8xf32>
    %103 = arith.truncf %102 : vector<2x8x8xf32> to vector<2x8x8xbf16>
    "tpu.trace_start"() <{level = 10 : i32, message = "blm,bmd->bld"}> : () -> ()
    %cst_31 = arith.constant dense<0.000000e+00> : vector<2x8x8xf32>
    %104 = tpu.matmul %103, %87, %cst_31 {dimension_numbers = #tpu.dot_dimension_numbers<[2], [1], [1], [2], [0, 0, 0, 1, 1, 2], [0], [0]>} : vector<2x8x8xbf16>, vector<2x8x8xbf16>, vector<2x8x8xf32> -> vector<2x8x8xf32>
    "tpu.trace_stop"() : () -> ()
    %105 = tpu.concatenate %44, %64, %84, %104 in 2 : vector<2x8x8xf32>, vector<2x8x8xf32>, vector<2x8x8xf32>, vector<2x8x8xf32> -> vector<2x8x32xf32>
    %106 = vector.shape_cast %105 : vector<2x8x32xf32> to vector<16x32xf32>
    %107 = arith.truncf %106 : vector<16x32xf32> to vector<16x32xbf16>
    %c0_32 = arith.constant 0 : index
    %c0_33 = arith.constant 0 : index
    %c0_34 = arith.constant 0 : index
    %108 = vector.load %arg4[%c0_32, %c0_33, %c0_34] : memref<2x32x32xbf16, #tpu.memory_space<vmem>>, vector<1x32x32xbf16>
    %109 = vector.shape_cast %108 : vector<1x32x32xbf16> to vector<32x32xbf16>
    %cst_35 = arith.constant dense<0.000000e+00> : vector<16x32xf32>
    %110 = tpu.matmul %107, %109, %cst_35 {dimension_numbers = #tpu.dot_dimension_numbers<[1], [0], [0], [1], [0, 0, 1, 1], [], []>} : vector<16x32xbf16>, vector<32x32xbf16>, vector<16x32xf32> -> vector<16x32xf32>
    %c0_36 = arith.constant 0 : index
    %c0_37 = arith.constant 0 : index
    %c0_38 = arith.constant 0 : index
    %111 = vector.load %arg5[%c0_36, %c0_37, %c0_38] : memref<2x1x32xf32, #tpu.memory_space<vmem>>, vector<1x1x32xf32>
    %112 = vector.shape_cast %111 : vector<1x1x32xf32> to vector<1x32xf32>
    %113 = vector.broadcast %112 : vector<1x32xf32> to vector<16x32xf32>
    %114 = arith.addf %110, %113 : vector<16x32xf32>
    %115 = vector.shape_cast %114 : vector<16x32xf32> to vector<2x8x32xf32>
    %116 = arith.addf %6, %115 : vector<2x8x32xf32>
    %cst_39 = arith.constant dense<0.000000e+00> : vector<2x8xf32>
    %117 = vector.multi_reduction <add>, %116, %cst_39 [2] : vector<2x8x32xf32> to vector<2x8xf32>
    %118 = vector.shape_cast %117 : vector<2x8xf32> to vector<2x8x1xf32>
    %cst_40 = arith.constant 3.200000e+01 : f32
    %119 = vector.broadcast %cst_40 : f32 to vector<2x8x1xf32>
    %120 = arith.divf %118, %119 : vector<2x8x1xf32>
    %121 = vector.broadcast %120 : vector<2x8x1xf32> to vector<2x8x32xf32>
    %122 = arith.subf %116, %121 : vector<2x8x32xf32>
    %123 = arith.mulf %122, %122 : vector<2x8x32xf32>
    %cst_41 = arith.constant dense<0.000000e+00> : vector<2x8xf32>
    %124 = vector.multi_reduction <add>, %123, %cst_41 [2] : vector<2x8x32xf32> to vector<2x8xf32>
    %125 = vector.shape_cast %124 : vector<2x8xf32> to vector<2x8x1xf32>
    %cst_42 = arith.constant 3.200000e+01 : f32
    %126 = vector.broadcast %cst_42 : f32 to vector<2x8x1xf32>
    %127 = arith.divf %125, %126 : vector<2x8x1xf32>
    %128 = vector.broadcast %120 : vector<2x8x1xf32> to vector<2x8x32xf32>
    %129 = arith.subf %116, %128 : vector<2x8x32xf32>
    %cst_43 = arith.constant 9.99999974E-6 : f32
    %130 = vector.broadcast %cst_43 : f32 to vector<2x8x1xf32>
    %131 = arith.addf %127, %130 : vector<2x8x1xf32>
    %132 = math.rsqrt %131 : vector<2x8x1xf32>
    %133 = vector.broadcast %132 : vector<2x8x1xf32> to vector<2x8x32xf32>
    %134 = arith.mulf %129, %133 : vector<2x8x32xf32>
    %c0_44 = arith.constant 0 : index
    %c0_45 = arith.constant 0 : index
    %c0_46 = arith.constant 0 : index
    %135 = vector.load %arg10[%c0_44, %c0_45, %c0_46] : memref<2x1x32xf32, #tpu.memory_space<vmem>>, vector<1x1x32xf32>
    %136 = vector.shape_cast %135 : vector<1x1x32xf32> to vector<1x32xf32>
    %137 = vector.shape_cast %136 : vector<1x32xf32> to vector<1x1x32xf32>
    %138 = vector.broadcast %137 : vector<1x1x32xf32> to vector<2x8x32xf32>
    %139 = arith.mulf %134, %138 : vector<2x8x32xf32>
    %c0_47 = arith.constant 0 : index
    %c0_48 = arith.constant 0 : index
    %c0_49 = arith.constant 0 : index
    %140 = vector.load %arg11[%c0_47, %c0_48, %c0_49] : memref<2x1x32xf32, #tpu.memory_space<vmem>>, vector<1x1x32xf32>
    %141 = vector.shape_cast %140 : vector<1x1x32xf32> to vector<1x32xf32>
    %142 = vector.shape_cast %141 : vector<1x32xf32> to vector<1x1x32xf32>
    %143 = vector.broadcast %142 : vector<1x1x32xf32> to vector<2x8x32xf32>
    %144 = arith.addf %139, %143 : vector<2x8x32xf32>
    %145 = vector.shape_cast %144 : vector<2x8x32xf32> to vector<16x32xf32>
    %146 = arith.truncf %145 : vector<16x32xf32> to vector<16x32xbf16>
    %c0_50 = arith.constant 0 : index
    %c0_51 = arith.constant 0 : index
    %c0_52 = arith.constant 0 : index
    %147 = vector.load %arg6[%c0_50, %c0_51, %c0_52] : memref<2x32x64xbf16, #tpu.memory_space<vmem>>, vector<1x32x64xbf16>
    %148 = vector.shape_cast %147 : vector<1x32x64xbf16> to vector<32x64xbf16>
    %cst_53 = arith.constant dense<0.000000e+00> : vector<16x64xf32>
    %149 = tpu.matmul %146, %148, %cst_53 {dimension_numbers = #tpu.dot_dimension_numbers<[1], [0], [0], [1], [0, 0, 1, 1], [], []>} : vector<16x32xbf16>, vector<32x64xbf16>, vector<16x64xf32> -> vector<16x64xf32>
    %c0_54 = arith.constant 0 : index
    %c0_55 = arith.constant 0 : index
    %c0_56 = arith.constant 0 : index
    %150 = vector.load %arg7[%c0_54, %c0_55, %c0_56] : memref<2x1x64xf32, #tpu.memory_space<vmem>>, vector<1x1x64xf32>
    %151 = vector.shape_cast %150 : vector<1x1x64xf32> to vector<1x64xf32>
    %152 = vector.broadcast %151 : vector<1x64xf32> to vector<16x64xf32>
    %153 = arith.addf %149, %152 : vector<16x64xf32>
    %cst_57 = arith.constant 0.000000e+00 : f32
    %154 = vector.broadcast %cst_57 : f32 to vector<16x64xf32>
    %155 = arith.maximumf %153, %154 : vector<16x64xf32>
    %156 = arith.truncf %155 : vector<16x64xf32> to vector<16x64xbf16>
    %c0_58 = arith.constant 0 : index
    %c0_59 = arith.constant 0 : index
    %c0_60 = arith.constant 0 : index
    %157 = vector.load %arg8[%c0_58, %c0_59, %c0_60] : memref<2x64x32xbf16, #tpu.memory_space<vmem>>, vector<1x64x32xbf16>
    %158 = vector.shape_cast %157 : vector<1x64x32xbf16> to vector<64x32xbf16>
    %cst_61 = arith.constant dense<0.000000e+00> : vector<16x32xf32>
    %159 = tpu.matmul %156, %158, %cst_61 {dimension_numbers = #tpu.dot_dimension_numbers<[1], [0], [0], [1], [0, 0, 1, 1], [], []>} : vector<16x64xbf16>, vector<64x32xbf16>, vector<16x32xf32> -> vector<16x32xf32>
    %c0_62 = arith.constant 0 : index
    %c0_63 = arith.constant 0 : index
    %c0_64 = arith.constant 0 : index
    %160 = vector.load %arg9[%c0_62, %c0_63, %c0_64] : memref<2x1x32xf32, #tpu.memory_space<vmem>>, vector<1x1x32xf32>
    %161 = vector.shape_cast %160 : vector<1x1x32xf32> to vector<1x32xf32>
    %162 = vector.broadcast %161 : vector<1x32xf32> to vector<16x32xf32>
    %163 = arith.addf %159, %162 : vector<16x32xf32>
    %164 = vector.shape_cast %163 : vector<16x32xf32> to vector<2x8x32xf32>
    %165 = arith.addf %144, %164 : vector<2x8x32xf32>
    %cst_65 = arith.constant dense<0.000000e+00> : vector<2x8xf32>
    %166 = vector.multi_reduction <add>, %165, %cst_65 [2] : vector<2x8x32xf32> to vector<2x8xf32>
    %167 = vector.shape_cast %166 : vector<2x8xf32> to vector<2x8x1xf32>
    %cst_66 = arith.constant 3.200000e+01 : f32
    %168 = vector.broadcast %cst_66 : f32 to vector<2x8x1xf32>
    %169 = arith.divf %167, %168 : vector<2x8x1xf32>
    %170 = vector.broadcast %169 : vector<2x8x1xf32> to vector<2x8x32xf32>
    %171 = arith.subf %165, %170 : vector<2x8x32xf32>
    %172 = arith.mulf %171, %171 : vector<2x8x32xf32>
    %cst_67 = arith.constant dense<0.000000e+00> : vector<2x8xf32>
    %173 = vector.multi_reduction <add>, %172, %cst_67 [2] : vector<2x8x32xf32> to vector<2x8xf32>
    %174 = vector.shape_cast %173 : vector<2x8xf32> to vector<2x8x1xf32>
    %cst_68 = arith.constant 3.200000e+01 : f32
    %175 = vector.broadcast %cst_68 : f32 to vector<2x8x1xf32>
    %176 = arith.divf %174, %175 : vector<2x8x1xf32>
    %177 = vector.broadcast %169 : vector<2x8x1xf32> to vector<2x8x32xf32>
    %178 = arith.subf %165, %177 : vector<2x8x32xf32>
    %cst_69 = arith.constant 9.99999974E-6 : f32
    %179 = vector.broadcast %cst_69 : f32 to vector<2x8x1xf32>
    %180 = arith.addf %176, %179 : vector<2x8x1xf32>
    %181 = math.rsqrt %180 : vector<2x8x1xf32>
    %182 = vector.broadcast %181 : vector<2x8x1xf32> to vector<2x8x32xf32>
    %183 = arith.mulf %178, %182 : vector<2x8x32xf32>
    %c0_70 = arith.constant 0 : index
    %c0_71 = arith.constant 0 : index
    %c0_72 = arith.constant 0 : index
    %184 = vector.load %arg12[%c0_70, %c0_71, %c0_72] : memref<2x1x32xf32, #tpu.memory_space<vmem>>, vector<1x1x32xf32>
    %185 = vector.shape_cast %184 : vector<1x1x32xf32> to vector<1x32xf32>
    %186 = vector.shape_cast %185 : vector<1x32xf32> to vector<1x1x32xf32>
    %187 = vector.broadcast %186 : vector<1x1x32xf32> to vector<2x8x32xf32>
    %188 = arith.mulf %183, %187 : vector<2x8x32xf32>
    %c0_73 = arith.constant 0 : index
    %c0_74 = arith.constant 0 : index
    %c0_75 = arith.constant 0 : index
    %189 = vector.load %arg13[%c0_73, %c0_74, %c0_75] : memref<2x1x32xf32, #tpu.memory_space<vmem>>, vector<1x1x32xf32>
    %190 = vector.shape_cast %189 : vector<1x1x32xf32> to vector<1x32xf32>
    %191 = vector.shape_cast %190 : vector<1x32xf32> to vector<1x1x32xf32>
    %192 = vector.broadcast %191 : vector<1x1x32xf32> to vector<2x8x32xf32>
    %193 = arith.addf %188, %192 : vector<2x8x32xf32>
    %194 = vector.shape_cast %193 : vector<2x8x32xf32> to vector<16x32xf32>
    %195 = arith.truncf %194 : vector<16x32xf32> to vector<16x32xbf16>
    %c1 = arith.constant 1 : index
    %c0_76 = arith.constant 0 : index
    %c0_77 = arith.constant 0 : index
    %196 = vector.load %arg2[%c1, %c0_76, %c0_77] : memref<2x32x96xbf16, #tpu.memory_space<vmem>>, vector<1x32x96xbf16>
    %197 = vector.shape_cast %196 : vector<1x32x96xbf16> to vector<32x96xbf16>
    %cst_78 = arith.constant dense<0.000000e+00> : vector<16x96xf32>
    %198 = tpu.matmul %195, %197, %cst_78 {dimension_numbers = #tpu.dot_dimension_numbers<[1], [0], [0], [1], [0, 0, 1, 1], [], []>} : vector<16x32xbf16>, vector<32x96xbf16>, vector<16x96xf32> -> vector<16x96xf32>
    %c1_79 = arith.constant 1 : index
    %c0_80 = arith.constant 0 : index
    %c0_81 = arith.constant 0 : index
    %199 = vector.load %arg3[%c1_79, %c0_80, %c0_81] : memref<2x1x96xf32, #tpu.memory_space<vmem>>, vector<1x1x96xf32>
    %200 = vector.shape_cast %199 : vector<1x1x96xf32> to vector<1x96xf32>
    %201 = vector.broadcast %200 : vector<1x96xf32> to vector<16x96xf32>
    %202 = arith.addf %198, %201 : vector<16x96xf32>
    %203 = vector.extract_strided_slice %202 {offsets = [0, 0], sizes = [16, 32], strides = [1, 1]} : vector<16x96xf32> to vector<16x32xf32>
    %204 = vector.shape_cast %203 : vector<16x32xf32> to vector<2x8x32xf32>
    %205 = arith.truncf %204 : vector<2x8x32xf32> to vector<2x8x32xbf16>
    %206 = vector.extract_strided_slice %202 {offsets = [0, 32], sizes = [16, 32], strides = [1, 1]} : vector<16x96xf32> to vector<16x32xf32>
    %207 = vector.shape_cast %206 : vector<16x32xf32> to vector<2x8x32xf32>
    %208 = arith.truncf %207 : vector<2x8x32xf32> to vector<2x8x32xbf16>
    %209 = vector.extract_strided_slice %202 {offsets = [0, 64], sizes = [16, 32], strides = [1, 1]} : vector<16x96xf32> to vector<16x32xf32>
    %210 = vector.shape_cast %209 : vector<16x32xf32> to vector<2x8x32xf32>
    %211 = arith.truncf %210 : vector<2x8x32xf32> to vector<2x8x32xbf16>
    %212 = vector.extract_strided_slice %205 {offsets = [0, 0, 0], sizes = [2, 8, 8], strides = [1, 1, 1]} : vector<2x8x32xbf16> to vector<2x8x8xbf16>
    %213 = vector.extract_strided_slice %208 {offsets = [0, 0, 0], sizes = [2, 8, 8], strides = [1, 1, 1]} : vector<2x8x32xbf16> to vector<2x8x8xbf16>
    %214 = vector.extract_strided_slice %211 {offsets = [0, 0, 0], sizes = [2, 8, 8], strides = [1, 1, 1]} : vector<2x8x32xbf16> to vector<2x8x8xbf16>
    "tpu.trace_start"() <{level = 10 : i32, message = "bld,bmd->blm"}> : () -> ()
    %cst_82 = arith.constant dense<0.000000e+00> : vector<2x8x8xf32>
    %215 = tpu.matmul %212, %213, %cst_82 {dimension_numbers = #tpu.dot_dimension_numbers<[2], [2], [1], [1], [0, 0, 0, 1, 1, 1], [0], [0]>} : vector<2x8x8xbf16>, vector<2x8x8xbf16>, vector<2x8x8xf32> -> vector<2x8x8xf32>
    "tpu.trace_stop"() : () -> ()
    %cst_83 = arith.constant 0.353553385 : f32
    %216 = vector.broadcast %cst_83 : f32 to vector<2x8x8xf32>
    %217 = arith.mulf %215, %216 : vector<2x8x8xf32>
    %218 = vector.broadcast %5 : vector<2x1x8xf32> to vector<2x8x8xf32>
    %219 = arith.addf %217, %218 : vector<2x8x8xf32>
    %cst_84 = arith.constant dense<0xFF800000> : vector<2x8xf32>
    %220 = vector.multi_reduction <maximumf>, %219, %cst_84 [2] : vector<2x8x8xf32> to vector<2x8xf32>
    %221 = vector.shape_cast %220 : vector<2x8xf32> to vector<2x8x1xf32>
    %222 = vector.broadcast %221 : vector<2x8x1xf32> to vector<2x8x8xf32>
    %223 = arith.subf %219, %222 : vector<2x8x8xf32>
    %224 = math.exp %223 : vector<2x8x8xf32>
    %cst_85 = arith.constant dense<0.000000e+00> : vector<2x8xf32>
    %225 = vector.multi_reduction <add>, %224, %cst_85 [2] : vector<2x8x8xf32> to vector<2x8xf32>
    %226 = vector.shape_cast %225 : vector<2x8xf32> to vector<2x8x1xf32>
    %227 = tpu.reciprocal %226 {approx = true} : vector<2x8x1xf32> -> vector<2x8x1xf32>
    %228 = vector.broadcast %227 : vector<2x8x1xf32> to vector<2x8x8xf32>
    %229 = arith.mulf %224, %228 : vector<2x8x8xf32>
    %230 = arith.truncf %229 : vector<2x8x8xf32> to vector<2x8x8xbf16>
    "tpu.trace_start"() <{level = 10 : i32, message = "blm,bmd->bld"}> : () -> ()
    %cst_86 = arith.constant dense<0.000000e+00> : vector<2x8x8xf32>
    %231 = tpu.matmul %230, %214, %cst_86 {dimension_numbers = #tpu.dot_dimension_numbers<[2], [1], [1], [2], [0, 0, 0, 1, 1, 2], [0], [0]>} : vector<2x8x8xbf16>, vector<2x8x8xbf16>, vector<2x8x8xf32> -> vector<2x8x8xf32>
    "tpu.trace_stop"() : () -> ()
    %232 = vector.extract_strided_slice %205 {offsets = [0, 0, 8], sizes = [2, 8, 8], strides = [1, 1, 1]} : vector<2x8x32xbf16> to vector<2x8x8xbf16>
    %233 = vector.extract_strided_slice %208 {offsets = [0, 0, 8], sizes = [2, 8, 8], strides = [1, 1, 1]} : vector<2x8x32xbf16> to vector<2x8x8xbf16>
    %234 = vector.extract_strided_slice %211 {offsets = [0, 0, 8], sizes = [2, 8, 8], strides = [1, 1, 1]} : vector<2x8x32xbf16> to vector<2x8x8xbf16>
    "tpu.trace_start"() <{level = 10 : i32, message = "bld,bmd->blm"}> : () -> ()
    %cst_87 = arith.constant dense<0.000000e+00> : vector<2x8x8xf32>
    %235 = tpu.matmul %232, %233, %cst_87 {dimension_numbers = #tpu.dot_dimension_numbers<[2], [2], [1], [1], [0, 0, 0, 1, 1, 1], [0], [0]>} : vector<2x8x8xbf16>, vector<2x8x8xbf16>, vector<2x8x8xf32> -> vector<2x8x8xf32>
    "tpu.trace_stop"() : () -> ()
    %cst_88 = arith.constant 0.353553385 : f32
    %236 = vector.broadcast %cst_88 : f32 to vector<2x8x8xf32>
    %237 = arith.mulf %235, %236 : vector<2x8x8xf32>
    %238 = vector.broadcast %5 : vector<2x1x8xf32> to vector<2x8x8xf32>
    %239 = arith.addf %237, %238 : vector<2x8x8xf32>
    %cst_89 = arith.constant dense<0xFF800000> : vector<2x8xf32>
    %240 = vector.multi_reduction <maximumf>, %239, %cst_89 [2] : vector<2x8x8xf32> to vector<2x8xf32>
    %241 = vector.shape_cast %240 : vector<2x8xf32> to vector<2x8x1xf32>
    %242 = vector.broadcast %241 : vector<2x8x1xf32> to vector<2x8x8xf32>
    %243 = arith.subf %239, %242 : vector<2x8x8xf32>
    %244 = math.exp %243 : vector<2x8x8xf32>
    %cst_90 = arith.constant dense<0.000000e+00> : vector<2x8xf32>
    %245 = vector.multi_reduction <add>, %244, %cst_90 [2] : vector<2x8x8xf32> to vector<2x8xf32>
    %246 = vector.shape_cast %245 : vector<2x8xf32> to vector<2x8x1xf32>
    %247 = tpu.reciprocal %246 {approx = true} : vector<2x8x1xf32> -> vector<2x8x1xf32>
    %248 = vector.broadcast %247 : vector<2x8x1xf32> to vector<2x8x8xf32>
    %249 = arith.mulf %244, %248 : vector<2x8x8xf32>
    %250 = arith.truncf %249 : vector<2x8x8xf32> to vector<2x8x8xbf16>
    "tpu.trace_start"() <{level = 10 : i32, message = "blm,bmd->bld"}> : () -> ()
    %cst_91 = arith.constant dense<0.000000e+00> : vector<2x8x8xf32>
    %251 = tpu.matmul %250, %234, %cst_91 {dimension_numbers = #tpu.dot_dimension_numbers<[2], [1], [1], [2], [0, 0, 0, 1, 1, 2], [0], [0]>} : vector<2x8x8xbf16>, vector<2x8x8xbf16>, vector<2x8x8xf32> -> vector<2x8x8xf32>
    "tpu.trace_stop"() : () -> ()
    %252 = vector.extract_strided_slice %205 {offsets = [0, 0, 16], sizes = [2, 8, 8], strides = [1, 1, 1]} : vector<2x8x32xbf16> to vector<2x8x8xbf16>
    %253 = vector.extract_strided_slice %208 {offsets = [0, 0, 16], sizes = [2, 8, 8], strides = [1, 1, 1]} : vector<2x8x32xbf16> to vector<2x8x8xbf16>
    %254 = vector.extract_strided_slice %211 {offsets = [0, 0, 16], sizes = [2, 8, 8], strides = [1, 1, 1]} : vector<2x8x32xbf16> to vector<2x8x8xbf16>
    "tpu.trace_start"() <{level = 10 : i32, message = "bld,bmd->blm"}> : () -> ()
    %cst_92 = arith.constant dense<0.000000e+00> : vector<2x8x8xf32>
    %255 = tpu.matmul %252, %253, %cst_92 {dimension_numbers = #tpu.dot_dimension_numbers<[2], [2], [1], [1], [0, 0, 0, 1, 1, 1], [0], [0]>} : vector<2x8x8xbf16>, vector<2x8x8xbf16>, vector<2x8x8xf32> -> vector<2x8x8xf32>
    "tpu.trace_stop"() : () -> ()
    %cst_93 = arith.constant 0.353553385 : f32
    %256 = vector.broadcast %cst_93 : f32 to vector<2x8x8xf32>
    %257 = arith.mulf %255, %256 : vector<2x8x8xf32>
    %258 = vector.broadcast %5 : vector<2x1x8xf32> to vector<2x8x8xf32>
    %259 = arith.addf %257, %258 : vector<2x8x8xf32>
    %cst_94 = arith.constant dense<0xFF800000> : vector<2x8xf32>
    %260 = vector.multi_reduction <maximumf>, %259, %cst_94 [2] : vector<2x8x8xf32> to vector<2x8xf32>
    %261 = vector.shape_cast %260 : vector<2x8xf32> to vector<2x8x1xf32>
    %262 = vector.broadcast %261 : vector<2x8x1xf32> to vector<2x8x8xf32>
    %263 = arith.subf %259, %262 : vector<2x8x8xf32>
    %264 = math.exp %263 : vector<2x8x8xf32>
    %cst_95 = arith.constant dense<0.000000e+00> : vector<2x8xf32>
    %265 = vector.multi_reduction <add>, %264, %cst_95 [2] : vector<2x8x8xf32> to vector<2x8xf32>
    %266 = vector.shape_cast %265 : vector<2x8xf32> to vector<2x8x1xf32>
    %267 = tpu.reciprocal %266 {approx = true} : vector<2x8x1xf32> -> vector<2x8x1xf32>
    %268 = vector.broadcast %267 : vector<2x8x1xf32> to vector<2x8x8xf32>
    %269 = arith.mulf %264, %268 : vector<2x8x8xf32>
    %270 = arith.truncf %269 : vector<2x8x8xf32> to vector<2x8x8xbf16>
    "tpu.trace_start"() <{level = 10 : i32, message = "blm,bmd->bld"}> : () -> ()
    %cst_96 = arith.constant dense<0.000000e+00> : vector<2x8x8xf32>
    %271 = tpu.matmul %270, %254, %cst_96 {dimension_numbers = #tpu.dot_dimension_numbers<[2], [1], [1], [2], [0, 0, 0, 1, 1, 2], [0], [0]>} : vector<2x8x8xbf16>, vector<2x8x8xbf16>, vector<2x8x8xf32> -> vector<2x8x8xf32>
    "tpu.trace_stop"() : () -> ()
    %272 = vector.extract_strided_slice %205 {offsets = [0, 0, 24], sizes = [2, 8, 8], strides = [1, 1, 1]} : vector<2x8x32xbf16> to vector<2x8x8xbf16>
    %273 = vector.extract_strided_slice %208 {offsets = [0, 0, 24], sizes = [2, 8, 8], strides = [1, 1, 1]} : vector<2x8x32xbf16> to vector<2x8x8xbf16>
    %274 = vector.extract_strided_slice %211 {offsets = [0, 0, 24], sizes = [2, 8, 8], strides = [1, 1, 1]} : vector<2x8x32xbf16> to vector<2x8x8xbf16>
    "tpu.trace_start"() <{level = 10 : i32, message = "bld,bmd->blm"}> : () -> ()
    %cst_97 = arith.constant dense<0.000000e+00> : vector<2x8x8xf32>
    %275 = tpu.matmul %272, %273, %cst_97 {dimension_numbers = #tpu.dot_dimension_numbers<[2], [2], [1], [1], [0, 0, 0, 1, 1, 1], [0], [0]>} : vector<2x8x8xbf16>, vector<2x8x8xbf16>, vector<2x8x8xf32> -> vector<2x8x8xf32>
    "tpu.trace_stop"() : () -> ()
    %cst_98 = arith.constant 0.353553385 : f32
    %276 = vector.broadcast %cst_98 : f32 to vector<2x8x8xf32>
    %277 = arith.mulf %275, %276 : vector<2x8x8xf32>
    %278 = vector.broadcast %5 : vector<2x1x8xf32> to vector<2x8x8xf32>
    %279 = arith.addf %277, %278 : vector<2x8x8xf32>
    %cst_99 = arith.constant dense<0xFF800000> : vector<2x8xf32>
    %280 = vector.multi_reduction <maximumf>, %279, %cst_99 [2] : vector<2x8x8xf32> to vector<2x8xf32>
    %281 = vector.shape_cast %280 : vector<2x8xf32> to vector<2x8x1xf32>
    %282 = vector.broadcast %281 : vector<2x8x1xf32> to vector<2x8x8xf32>
    %283 = arith.subf %279, %282 : vector<2x8x8xf32>
    %284 = math.exp %283 : vector<2x8x8xf32>
    %cst_100 = arith.constant dense<0.000000e+00> : vector<2x8xf32>
    %285 = vector.multi_reduction <add>, %284, %cst_100 [2] : vector<2x8x8xf32> to vector<2x8xf32>
    %286 = vector.shape_cast %285 : vector<2x8xf32> to vector<2x8x1xf32>
    %287 = tpu.reciprocal %286 {approx = true} : vector<2x8x1xf32> -> vector<2x8x1xf32>
    %288 = vector.broadcast %287 : vector<2x8x1xf32> to vector<2x8x8xf32>
    %289 = arith.mulf %284, %288 : vector<2x8x8xf32>
    %290 = arith.truncf %289 : vector<2x8x8xf32> to vector<2x8x8xbf16>
    "tpu.trace_start"() <{level = 10 : i32, message = "blm,bmd->bld"}> : () -> ()
    %cst_101 = arith.constant dense<0.000000e+00> : vector<2x8x8xf32>
    %291 = tpu.matmul %290, %274, %cst_101 {dimension_numbers = #tpu.dot_dimension_numbers<[2], [1], [1], [2], [0, 0, 0, 1, 1, 2], [0], [0]>} : vector<2x8x8xbf16>, vector<2x8x8xbf16>, vector<2x8x8xf32> -> vector<2x8x8xf32>
    "tpu.trace_stop"() : () -> ()
    %292 = tpu.concatenate %231, %251, %271, %291 in 2 : vector<2x8x8xf32>, vector<2x8x8xf32>, vector<2x8x8xf32>, vector<2x8x8xf32> -> vector<2x8x32xf32>
    %293 = vector.shape_cast %292 : vector<2x8x32xf32> to vector<16x32xf32>
    %294 = arith.truncf %293 : vector<16x32xf32> to vector<16x32xbf16>
    %c1_102 = arith.constant 1 : index
    %c0_103 = arith.constant 0 : index
    %c0_104 = arith.constant 0 : index
    %295 = vector.load %arg4[%c1_102, %c0_103, %c0_104] : memref<2x32x32xbf16, #tpu.memory_space<vmem>>, vector<1x32x32xbf16>
    %296 = vector.shape_cast %295 : vector<1x32x32xbf16> to vector<32x32xbf16>
    %cst_105 = arith.constant dense<0.000000e+00> : vector<16x32xf32>
    %297 = tpu.matmul %294, %296, %cst_105 {dimension_numbers = #tpu.dot_dimension_numbers<[1], [0], [0], [1], [0, 0, 1, 1], [], []>} : vector<16x32xbf16>, vector<32x32xbf16>, vector<16x32xf32> -> vector<16x32xf32>
    %c1_106 = arith.constant 1 : index
    %c0_107 = arith.constant 0 : index
    %c0_108 = arith.constant 0 : index
    %298 = vector.load %arg5[%c1_106, %c0_107, %c0_108] : memref<2x1x32xf32, #tpu.memory_space<vmem>>, vector<1x1x32xf32>
    %299 = vector.shape_cast %298 : vector<1x1x32xf32> to vector<1x32xf32>
    %300 = vector.broadcast %299 : vector<1x32xf32> to vector<16x32xf32>
    %301 = arith.addf %297, %300 : vector<16x32xf32>
    %302 = vector.shape_cast %301 : vector<16x32xf32> to vector<2x8x32xf32>
    %303 = arith.addf %193, %302 : vector<2x8x32xf32>
    %cst_109 = arith.constant dense<0.000000e+00> : vector<2x8xf32>
    %304 = vector.multi_reduction <add>, %303, %cst_109 [2] : vector<2x8x32xf32> to vector<2x8xf32>
    %305 = vector.shape_cast %304 : vector<2x8xf32> to vector<2x8x1xf32>
    %cst_110 = arith.constant 3.200000e+01 : f32
    %306 = vector.broadcast %cst_110 : f32 to vector<2x8x1xf32>
    %307 = arith.divf %305, %306 : vector<2x8x1xf32>
    %308 = vector.broadcast %307 : vector<2x8x1xf32> to vector<2x8x32xf32>
    %309 = arith.subf %303, %308 : vector<2x8x32xf32>
    %310 = arith.mulf %309, %309 : vector<2x8x32xf32>
    %cst_111 = arith.constant dense<0.000000e+00> : vector<2x8xf32>
    %311 = vector.multi_reduction <add>, %310, %cst_111 [2] : vector<2x8x32xf32> to vector<2x8xf32>
    %312 = vector.shape_cast %311 : vector<2x8xf32> to vector<2x8x1xf32>
    %cst_112 = arith.constant 3.200000e+01 : f32
    %313 = vector.broadcast %cst_112 : f32 to vector<2x8x1xf32>
    %314 = arith.divf %312, %313 : vector<2x8x1xf32>
    %315 = vector.broadcast %307 : vector<2x8x1xf32> to vector<2x8x32xf32>
    %316 = arith.subf %303, %315 : vector<2x8x32xf32>
    %cst_113 = arith.constant 9.99999974E-6 : f32
    %317 = vector.broadcast %cst_113 : f32 to vector<2x8x1xf32>
    %318 = arith.addf %314, %317 : vector<2x8x1xf32>
    %319 = math.rsqrt %318 : vector<2x8x1xf32>
    %320 = vector.broadcast %319 : vector<2x8x1xf32> to vector<2x8x32xf32>
    %321 = arith.mulf %316, %320 : vector<2x8x32xf32>
    %c1_114 = arith.constant 1 : index
    %c0_115 = arith.constant 0 : index
    %c0_116 = arith.constant 0 : index
    %322 = vector.load %arg10[%c1_114, %c0_115, %c0_116] : memref<2x1x32xf32, #tpu.memory_space<vmem>>, vector<1x1x32xf32>
    %323 = vector.shape_cast %322 : vector<1x1x32xf32> to vector<1x32xf32>
    %324 = vector.shape_cast %323 : vector<1x32xf32> to vector<1x1x32xf32>
    %325 = vector.broadcast %324 : vector<1x1x32xf32> to vector<2x8x32xf32>
    %326 = arith.mulf %321, %325 : vector<2x8x32xf32>
    %c1_117 = arith.constant 1 : index
    %c0_118 = arith.constant 0 : index
    %c0_119 = arith.constant 0 : index
    %327 = vector.load %arg11[%c1_117, %c0_118, %c0_119] : memref<2x1x32xf32, #tpu.memory_space<vmem>>, vector<1x1x32xf32>
    %328 = vector.shape_cast %327 : vector<1x1x32xf32> to vector<1x32xf32>
    %329 = vector.shape_cast %328 : vector<1x32xf32> to vector<1x1x32xf32>
    %330 = vector.broadcast %329 : vector<1x1x32xf32> to vector<2x8x32xf32>
    %331 = arith.addf %326, %330 : vector<2x8x32xf32>
    %332 = vector.shape_cast %331 : vector<2x8x32xf32> to vector<16x32xf32>
    %333 = arith.truncf %332 : vector<16x32xf32> to vector<16x32xbf16>
    %c1_120 = arith.constant 1 : index
    %c0_121 = arith.constant 0 : index
    %c0_122 = arith.constant 0 : index
    %334 = vector.load %arg6[%c1_120, %c0_121, %c0_122] : memref<2x32x64xbf16, #tpu.memory_space<vmem>>, vector<1x32x64xbf16>
    %335 = vector.shape_cast %334 : vector<1x32x64xbf16> to vector<32x64xbf16>
    %cst_123 = arith.constant dense<0.000000e+00> : vector<16x64xf32>
    %336 = tpu.matmul %333, %335, %cst_123 {dimension_numbers = #tpu.dot_dimension_numbers<[1], [0], [0], [1], [0, 0, 1, 1], [], []>} : vector<16x32xbf16>, vector<32x64xbf16>, vector<16x64xf32> -> vector<16x64xf32>
    %c1_124 = arith.constant 1 : index
    %c0_125 = arith.constant 0 : index
    %c0_126 = arith.constant 0 : index
    %337 = vector.load %arg7[%c1_124, %c0_125, %c0_126] : memref<2x1x64xf32, #tpu.memory_space<vmem>>, vector<1x1x64xf32>
    %338 = vector.shape_cast %337 : vector<1x1x64xf32> to vector<1x64xf32>
    %339 = vector.broadcast %338 : vector<1x64xf32> to vector<16x64xf32>
    %340 = arith.addf %336, %339 : vector<16x64xf32>
    %cst_127 = arith.constant 0.000000e+00 : f32
    %341 = vector.broadcast %cst_127 : f32 to vector<16x64xf32>
    %342 = arith.maximumf %340, %341 : vector<16x64xf32>
    %343 = arith.truncf %342 : vector<16x64xf32> to vector<16x64xbf16>
    %c1_128 = arith.constant 1 : index
    %c0_129 = arith.constant 0 : index
    %c0_130 = arith.constant 0 : index
    %344 = vector.load %arg8[%c1_128, %c0_129, %c0_130] : memref<2x64x32xbf16, #tpu.memory_space<vmem>>, vector<1x64x32xbf16>
    %345 = vector.shape_cast %344 : vector<1x64x32xbf16> to vector<64x32xbf16>
    %cst_131 = arith.constant dense<0.000000e+00> : vector<16x32xf32>
    %346 = tpu.matmul %343, %345, %cst_131 {dimension_numbers = #tpu.dot_dimension_numbers<[1], [0], [0], [1], [0, 0, 1, 1], [], []>} : vector<16x64xbf16>, vector<64x32xbf16>, vector<16x32xf32> -> vector<16x32xf32>
    %c1_132 = arith.constant 1 : index
    %c0_133 = arith.constant 0 : index
    %c0_134 = arith.constant 0 : index
    %347 = vector.load %arg9[%c1_132, %c0_133, %c0_134] : memref<2x1x32xf32, #tpu.memory_space<vmem>>, vector<1x1x32xf32>
    %348 = vector.shape_cast %347 : vector<1x1x32xf32> to vector<1x32xf32>
    %349 = vector.broadcast %348 : vector<1x32xf32> to vector<16x32xf32>
    %350 = arith.addf %346, %349 : vector<16x32xf32>
    %351 = vector.shape_cast %350 : vector<16x32xf32> to vector<2x8x32xf32>
    %352 = arith.addf %331, %351 : vector<2x8x32xf32>
    %cst_135 = arith.constant dense<0.000000e+00> : vector<2x8xf32>
    %353 = vector.multi_reduction <add>, %352, %cst_135 [2] : vector<2x8x32xf32> to vector<2x8xf32>
    %354 = vector.shape_cast %353 : vector<2x8xf32> to vector<2x8x1xf32>
    %cst_136 = arith.constant 3.200000e+01 : f32
    %355 = vector.broadcast %cst_136 : f32 to vector<2x8x1xf32>
    %356 = arith.divf %354, %355 : vector<2x8x1xf32>
    %357 = vector.broadcast %356 : vector<2x8x1xf32> to vector<2x8x32xf32>
    %358 = arith.subf %352, %357 : vector<2x8x32xf32>
    %359 = arith.mulf %358, %358 : vector<2x8x32xf32>
    %cst_137 = arith.constant dense<0.000000e+00> : vector<2x8xf32>
    %360 = vector.multi_reduction <add>, %359, %cst_137 [2] : vector<2x8x32xf32> to vector<2x8xf32>
    %361 = vector.shape_cast %360 : vector<2x8xf32> to vector<2x8x1xf32>
    %cst_138 = arith.constant 3.200000e+01 : f32
    %362 = vector.broadcast %cst_138 : f32 to vector<2x8x1xf32>
    %363 = arith.divf %361, %362 : vector<2x8x1xf32>
    %364 = vector.broadcast %356 : vector<2x8x1xf32> to vector<2x8x32xf32>
    %365 = arith.subf %352, %364 : vector<2x8x32xf32>
    %cst_139 = arith.constant 9.99999974E-6 : f32
    %366 = vector.broadcast %cst_139 : f32 to vector<2x8x1xf32>
    %367 = arith.addf %363, %366 : vector<2x8x1xf32>
    %368 = math.rsqrt %367 : vector<2x8x1xf32>
    %369 = vector.broadcast %368 : vector<2x8x1xf32> to vector<2x8x32xf32>
    %370 = arith.mulf %365, %369 : vector<2x8x32xf32>
    %c1_140 = arith.constant 1 : index
    %c0_141 = arith.constant 0 : index
    %c0_142 = arith.constant 0 : index
    %371 = vector.load %arg12[%c1_140, %c0_141, %c0_142] : memref<2x1x32xf32, #tpu.memory_space<vmem>>, vector<1x1x32xf32>
    %372 = vector.shape_cast %371 : vector<1x1x32xf32> to vector<1x32xf32>
    %373 = vector.shape_cast %372 : vector<1x32xf32> to vector<1x1x32xf32>
    %374 = vector.broadcast %373 : vector<1x1x32xf32> to vector<2x8x32xf32>
    %375 = arith.mulf %370, %374 : vector<2x8x32xf32>
    %c1_143 = arith.constant 1 : index
    %c0_144 = arith.constant 0 : index
    %c0_145 = arith.constant 0 : index
    %376 = vector.load %arg13[%c1_143, %c0_144, %c0_145] : memref<2x1x32xf32, #tpu.memory_space<vmem>>, vector<1x1x32xf32>
    %377 = vector.shape_cast %376 : vector<1x1x32xf32> to vector<1x32xf32>
    %378 = vector.shape_cast %377 : vector<1x32xf32> to vector<1x1x32xf32>
    %379 = vector.broadcast %378 : vector<1x1x32xf32> to vector<2x8x32xf32>
    %380 = arith.addf %375, %379 : vector<2x8x32xf32>
    %381 = vector.shape_cast %380 : vector<2x8x32xf32> to vector<16x32xf32>
    %382 = arith.truncf %381 : vector<16x32xf32> to vector<16x32xbf16>
    %c0_146 = arith.constant 0 : index
    %c0_147 = arith.constant 0 : index
    %383 = vector.load %arg14[%c0_146, %c0_147] : memref<32x8xbf16, #tpu.memory_space<vmem>>, vector<32x8xbf16>
    %cst_148 = arith.constant dense<0.000000e+00> : vector<16x8xf32>
    %384 = tpu.matmul %382, %383, %cst_148 {dimension_numbers = #tpu.dot_dimension_numbers<[1], [0], [0], [1], [0, 0, 1, 1], [], []>} : vector<16x32xbf16>, vector<32x8xbf16>, vector<16x8xf32> -> vector<16x8xf32>
    %c0_149 = arith.constant 0 : index
    %c0_150 = arith.constant 0 : index
    %385 = vector.load %arg15[%c0_149, %c0_150] : memref<1x8xf32, #tpu.memory_space<vmem>>, vector<1x8xf32>
    %386 = vector.broadcast %385 : vector<1x8xf32> to vector<16x8xf32>
    %387 = arith.addf %384, %386 : vector<16x8xf32>
    %388 = vector.shape_cast %387 : vector<16x8xf32> to vector<2x8x8xf32>
    %c0_151 = arith.constant 0 : index
    %c0_152 = arith.constant 0 : index
    %389 = vector.load %arg16[%c0_151, %c0_152] : memref<8x8xf32, #tpu.memory_space<vmem>>, vector<8x8xf32>
    %390 = vector.shape_cast %389 : vector<8x8xf32> to vector<1x8x8xf32>
    %391 = vector.shape_cast %390 : vector<1x8x8xf32> to vector<1x8x8xf32>
    %392 = vector.broadcast %391 : vector<1x8x8xf32> to vector<2x8x8xf32>
    %393 = tpu.iota {dimensions = array<i32: 1>} : vector<2x8xi32>
    %c6_i32 = arith.constant 6 : i32
    %394 = vector.broadcast %c6_i32 : i32 to vector<2x8xi32>
    %395 = arith.cmpi eq, %393, %394 : vector<2x8xi32>
    %cst_153 = arith.constant 0.000000e+00 : f32
    %cst_154 = arith.constant -1.000000e+04 : f32
    %396 = vector.broadcast %cst_153 : f32 to vector<2x8xf32>
    %397 = vector.broadcast %cst_154 : f32 to vector<2x8xf32>
    %398 = arith.select %395, %396, %397 : vector<2x8xi1>, vector<2x8xf32>
    %399 = vector.shape_cast %398 : vector<2x8xf32> to vector<2x1x8xf32>
    %400 = vector.broadcast %399 : vector<2x1x8xf32> to vector<2x8x8xf32>
    %401 = arith.addf %392, %400 : vector<2x8x8xf32>
    %cst_155 = arith.constant dense<0xFF800000> : vector<2x8xf32>
    %402 = vector.multi_reduction <maximumf>, %401, %cst_155 [2] : vector<2x8x8xf32> to vector<2x8xf32>
    %403 = vector.extract_strided_slice %388 {offsets = [0, 0, 0], sizes = [2, 1, 8], strides = [1, 1, 1]} : vector<2x8x8xf32> to vector<2x1x8xf32>
    %404 = vector.shape_cast %403 : vector<2x1x8xf32> to vector<2x8xf32>
    %405 = arith.addf %402, %404 : vector<2x8xf32>
    %406 = vector.extract_strided_slice %0 {offsets = [0, 0], sizes = [2, 1], strides = [1, 1]} : vector<2x8xf32> to vector<2x1xf32>
    %407 = vector.broadcast %406 : vector<2x1xf32> to vector<2x8xf32>
    %408 = arith.mulf %405, %407 : vector<2x8xf32>
    %cst_156 = arith.constant 1.000000e+00 : f32
    %409 = vector.broadcast %cst_156 : f32 to vector<2x1xf32>
    %410 = arith.subf %409, %406 : vector<2x1xf32>
    %411 = vector.broadcast %410 : vector<2x1xf32> to vector<2x8xf32>
    %412 = arith.mulf %398, %411 : vector<2x8xf32>
    %413 = arith.addf %408, %412 : vector<2x8xf32>
    %414 = vector.shape_cast %413 : vector<2x8xf32> to vector<2x1x8xf32>
    %415 = vector.broadcast %414 : vector<2x1x8xf32> to vector<2x8x8xf32>
    %416 = arith.addf %392, %415 : vector<2x8x8xf32>
    %cst_157 = arith.constant dense<0xFF800000> : vector<2x8xf32>
    %417 = vector.multi_reduction <maximumf>, %416, %cst_157 [2] : vector<2x8x8xf32> to vector<2x8xf32>
    %418 = tpu.reduce_index %416 {axis = 2 : i32, kind = #tpu.reduction_kind<arg_max>} : vector<2x8x8xf32> -> vector<2x8xi32>
    %419 = vector.extract_strided_slice %388 {offsets = [0, 1, 0], sizes = [2, 1, 8], strides = [1, 1, 1]} : vector<2x8x8xf32> to vector<2x1x8xf32>
    %420 = vector.shape_cast %419 : vector<2x1x8xf32> to vector<2x8xf32>
    %421 = arith.addf %417, %420 : vector<2x8xf32>
    %422 = vector.extract_strided_slice %0 {offsets = [0, 1], sizes = [2, 1], strides = [1, 1]} : vector<2x8xf32> to vector<2x1xf32>
    %423 = vector.broadcast %422 : vector<2x1xf32> to vector<2x8xf32>
    %424 = arith.mulf %421, %423 : vector<2x8xf32>
    %cst_158 = arith.constant 1.000000e+00 : f32
    %425 = vector.broadcast %cst_158 : f32 to vector<2x1xf32>
    %426 = arith.subf %425, %422 : vector<2x1xf32>
    %427 = vector.broadcast %426 : vector<2x1xf32> to vector<2x8xf32>
    %428 = arith.mulf %413, %427 : vector<2x8xf32>
    %429 = arith.addf %424, %428 : vector<2x8xf32>
    %430 = vector.shape_cast %429 : vector<2x8xf32> to vector<2x1x8xf32>
    %431 = vector.broadcast %430 : vector<2x1x8xf32> to vector<2x8x8xf32>
    %432 = arith.addf %392, %431 : vector<2x8x8xf32>
    %cst_159 = arith.constant dense<0xFF800000> : vector<2x8xf32>
    %433 = vector.multi_reduction <maximumf>, %432, %cst_159 [2] : vector<2x8x8xf32> to vector<2x8xf32>
    %434 = tpu.reduce_index %432 {axis = 2 : i32, kind = #tpu.reduction_kind<arg_max>} : vector<2x8x8xf32> -> vector<2x8xi32>
    %435 = vector.extract_strided_slice %388 {offsets = [0, 2, 0], sizes = [2, 1, 8], strides = [1, 1, 1]} : vector<2x8x8xf32> to vector<2x1x8xf32>
    %436 = vector.shape_cast %435 : vector<2x1x8xf32> to vector<2x8xf32>
    %437 = arith.addf %433, %436 : vector<2x8xf32>
    %438 = vector.extract_strided_slice %0 {offsets = [0, 2], sizes = [2, 1], strides = [1, 1]} : vector<2x8xf32> to vector<2x1xf32>
    %439 = vector.broadcast %438 : vector<2x1xf32> to vector<2x8xf32>
    %440 = arith.mulf %437, %439 : vector<2x8xf32>
    %cst_160 = arith.constant 1.000000e+00 : f32
    %441 = vector.broadcast %cst_160 : f32 to vector<2x1xf32>
    %442 = arith.subf %441, %438 : vector<2x1xf32>
    %443 = vector.broadcast %442 : vector<2x1xf32> to vector<2x8xf32>
    %444 = arith.mulf %429, %443 : vector<2x8xf32>
    %445 = arith.addf %440, %444 : vector<2x8xf32>
    %446 = vector.shape_cast %445 : vector<2x8xf32> to vector<2x1x8xf32>
    %447 = vector.broadcast %446 : vector<2x1x8xf32> to vector<2x8x8xf32>
    %448 = arith.addf %392, %447 : vector<2x8x8xf32>
    %cst_161 = arith.constant dense<0xFF800000> : vector<2x8xf32>
    %449 = vector.multi_reduction <maximumf>, %448, %cst_161 [2] : vector<2x8x8xf32> to vector<2x8xf32>
    %450 = tpu.reduce_index %448 {axis = 2 : i32, kind = #tpu.reduction_kind<arg_max>} : vector<2x8x8xf32> -> vector<2x8xi32>
    %451 = vector.extract_strided_slice %388 {offsets = [0, 3, 0], sizes = [2, 1, 8], strides = [1, 1, 1]} : vector<2x8x8xf32> to vector<2x1x8xf32>
    %452 = vector.shape_cast %451 : vector<2x1x8xf32> to vector<2x8xf32>
    %453 = arith.addf %449, %452 : vector<2x8xf32>
    %454 = vector.extract_strided_slice %0 {offsets = [0, 3], sizes = [2, 1], strides = [1, 1]} : vector<2x8xf32> to vector<2x1xf32>
    %455 = vector.broadcast %454 : vector<2x1xf32> to vector<2x8xf32>
    %456 = arith.mulf %453, %455 : vector<2x8xf32>
    %cst_162 = arith.constant 1.000000e+00 : f32
    %457 = vector.broadcast %cst_162 : f32 to vector<2x1xf32>
    %458 = arith.subf %457, %454 : vector<2x1xf32>
    %459 = vector.broadcast %458 : vector<2x1xf32> to vector<2x8xf32>
    %460 = arith.mulf %445, %459 : vector<2x8xf32>
    %461 = arith.addf %456, %460 : vector<2x8xf32>
    %462 = vector.shape_cast %461 : vector<2x8xf32> to vector<2x1x8xf32>
    %463 = vector.broadcast %462 : vector<2x1x8xf32> to vector<2x8x8xf32>
    %464 = arith.addf %392, %463 : vector<2x8x8xf32>
    %cst_163 = arith.constant dense<0xFF800000> : vector<2x8xf32>
    %465 = vector.multi_reduction <maximumf>, %464, %cst_163 [2] : vector<2x8x8xf32> to vector<2x8xf32>
    %466 = tpu.reduce_index %464 {axis = 2 : i32, kind = #tpu.reduction_kind<arg_max>} : vector<2x8x8xf32> -> vector<2x8xi32>
    %467 = vector.extract_strided_slice %388 {offsets = [0, 4, 0], sizes = [2, 1, 8], strides = [1, 1, 1]} : vector<2x8x8xf32> to vector<2x1x8xf32>
    %468 = vector.shape_cast %467 : vector<2x1x8xf32> to vector<2x8xf32>
    %469 = arith.addf %465, %468 : vector<2x8xf32>
    %470 = vector.extract_strided_slice %0 {offsets = [0, 4], sizes = [2, 1], strides = [1, 1]} : vector<2x8xf32> to vector<2x1xf32>
    %471 = vector.broadcast %470 : vector<2x1xf32> to vector<2x8xf32>
    %472 = arith.mulf %469, %471 : vector<2x8xf32>
    %cst_164 = arith.constant 1.000000e+00 : f32
    %473 = vector.broadcast %cst_164 : f32 to vector<2x1xf32>
    %474 = arith.subf %473, %470 : vector<2x1xf32>
    %475 = vector.broadcast %474 : vector<2x1xf32> to vector<2x8xf32>
    %476 = arith.mulf %461, %475 : vector<2x8xf32>
    %477 = arith.addf %472, %476 : vector<2x8xf32>
    %478 = vector.shape_cast %477 : vector<2x8xf32> to vector<2x1x8xf32>
    %479 = vector.broadcast %478 : vector<2x1x8xf32> to vector<2x8x8xf32>
    %480 = arith.addf %392, %479 : vector<2x8x8xf32>
    %cst_165 = arith.constant dense<0xFF800000> : vector<2x8xf32>
    %481 = vector.multi_reduction <maximumf>, %480, %cst_165 [2] : vector<2x8x8xf32> to vector<2x8xf32>
    %482 = tpu.reduce_index %480 {axis = 2 : i32, kind = #tpu.reduction_kind<arg_max>} : vector<2x8x8xf32> -> vector<2x8xi32>
    %483 = vector.extract_strided_slice %388 {offsets = [0, 5, 0], sizes = [2, 1, 8], strides = [1, 1, 1]} : vector<2x8x8xf32> to vector<2x1x8xf32>
    %484 = vector.shape_cast %483 : vector<2x1x8xf32> to vector<2x8xf32>
    %485 = arith.addf %481, %484 : vector<2x8xf32>
    %486 = vector.extract_strided_slice %0 {offsets = [0, 5], sizes = [2, 1], strides = [1, 1]} : vector<2x8xf32> to vector<2x1xf32>
    %487 = vector.broadcast %486 : vector<2x1xf32> to vector<2x8xf32>
    %488 = arith.mulf %485, %487 : vector<2x8xf32>
    %cst_166 = arith.constant 1.000000e+00 : f32
    %489 = vector.broadcast %cst_166 : f32 to vector<2x1xf32>
    %490 = arith.subf %489, %486 : vector<2x1xf32>
    %491 = vector.broadcast %490 : vector<2x1xf32> to vector<2x8xf32>
    %492 = arith.mulf %477, %491 : vector<2x8xf32>
    %493 = arith.addf %488, %492 : vector<2x8xf32>
    %494 = vector.shape_cast %493 : vector<2x8xf32> to vector<2x1x8xf32>
    %495 = vector.broadcast %494 : vector<2x1x8xf32> to vector<2x8x8xf32>
    %496 = arith.addf %392, %495 : vector<2x8x8xf32>
    %cst_167 = arith.constant dense<0xFF800000> : vector<2x8xf32>
    %497 = vector.multi_reduction <maximumf>, %496, %cst_167 [2] : vector<2x8x8xf32> to vector<2x8xf32>
    %498 = tpu.reduce_index %496 {axis = 2 : i32, kind = #tpu.reduction_kind<arg_max>} : vector<2x8x8xf32> -> vector<2x8xi32>
    %499 = vector.extract_strided_slice %388 {offsets = [0, 6, 0], sizes = [2, 1, 8], strides = [1, 1, 1]} : vector<2x8x8xf32> to vector<2x1x8xf32>
    %500 = vector.shape_cast %499 : vector<2x1x8xf32> to vector<2x8xf32>
    %501 = arith.addf %497, %500 : vector<2x8xf32>
    %502 = vector.extract_strided_slice %0 {offsets = [0, 6], sizes = [2, 1], strides = [1, 1]} : vector<2x8xf32> to vector<2x1xf32>
    %503 = vector.broadcast %502 : vector<2x1xf32> to vector<2x8xf32>
    %504 = arith.mulf %501, %503 : vector<2x8xf32>
    %cst_168 = arith.constant 1.000000e+00 : f32
    %505 = vector.broadcast %cst_168 : f32 to vector<2x1xf32>
    %506 = arith.subf %505, %502 : vector<2x1xf32>
    %507 = vector.broadcast %506 : vector<2x1xf32> to vector<2x8xf32>
    %508 = arith.mulf %493, %507 : vector<2x8xf32>
    %509 = arith.addf %504, %508 : vector<2x8xf32>
    %510 = vector.shape_cast %509 : vector<2x8xf32> to vector<2x1x8xf32>
    %511 = vector.broadcast %510 : vector<2x1x8xf32> to vector<2x8x8xf32>
    %512 = arith.addf %392, %511 : vector<2x8x8xf32>
    %cst_169 = arith.constant dense<0xFF800000> : vector<2x8xf32>
    %513 = vector.multi_reduction <maximumf>, %512, %cst_169 [2] : vector<2x8x8xf32> to vector<2x8xf32>
    %514 = tpu.reduce_index %512 {axis = 2 : i32, kind = #tpu.reduction_kind<arg_max>} : vector<2x8x8xf32> -> vector<2x8xi32>
    %515 = vector.extract_strided_slice %388 {offsets = [0, 7, 0], sizes = [2, 1, 8], strides = [1, 1, 1]} : vector<2x8x8xf32> to vector<2x1x8xf32>
    %516 = vector.shape_cast %515 : vector<2x1x8xf32> to vector<2x8xf32>
    %517 = arith.addf %513, %516 : vector<2x8xf32>
    %518 = vector.extract_strided_slice %0 {offsets = [0, 7], sizes = [2, 1], strides = [1, 1]} : vector<2x8xf32> to vector<2x1xf32>
    %519 = vector.broadcast %518 : vector<2x1xf32> to vector<2x8xf32>
    %520 = arith.mulf %517, %519 : vector<2x8xf32>
    %cst_170 = arith.constant 1.000000e+00 : f32
    %521 = vector.broadcast %cst_170 : f32 to vector<2x1xf32>
    %522 = arith.subf %521, %518 : vector<2x1xf32>
    %523 = vector.broadcast %522 : vector<2x1xf32> to vector<2x8xf32>
    %524 = arith.mulf %509, %523 : vector<2x8xf32>
    %525 = arith.addf %520, %524 : vector<2x8xf32>
    %526 = vector.extract_strided_slice %389 {offsets = [7, 0], sizes = [1, 8], strides = [1, 1]} : vector<8x8xf32> to vector<1x8xf32>
    %527 = vector.broadcast %526 : vector<1x8xf32> to vector<2x8xf32>
    %528 = arith.addf %525, %527 : vector<2x8xf32>
    %cst_171 = arith.constant dense<0xFF800000> : vector<2xf32>
    %529 = vector.multi_reduction <maximumf>, %528, %cst_171 [1] : vector<2x8xf32> to vector<2xf32>
    %530 = vector.shape_cast %529 : vector<2xf32> to vector<2x1xf32>
    %c0_172 = arith.constant 0 : index
    %c0_173 = arith.constant 0 : index
    %531 = vector.load %arg17[%c0_172, %c0_173] : memref<2x1xf32, #tpu.memory_space<vmem>>, vector<2x1xf32>
    tpu.vector_store %arg17[%c0_172, %c0_173], %530 {strides = array<i32>} : memref<2x1xf32, #tpu.memory_space<vmem>>, vector<2x1xf32>,
    %532 = tpu.reduce_index %528 {axis = 1 : i32, kind = #tpu.reduction_kind<arg_max>} : vector<2x8xf32> -> vector<2xi32>
    %533 = vector.shape_cast %532 : vector<2xi32> to vector<2x1xi32>
    %534 = tpu.iota {dimensions = array<i32: 1>} : vector<2x8xi32>
    %c0_i32 = arith.constant 0 : i32
    %535 = vector.broadcast %c0_i32 : i32 to vector<2x8xi32>
    %536 = vector.extract_strided_slice %0 {offsets = [0, 7], sizes = [2, 1], strides = [1, 1]} : vector<2x8xf32> to vector<2x1xf32>
    %cst_174 = arith.constant 5.000000e-01 : f32
    %537 = vector.broadcast %cst_174 : f32 to vector<2x1xf32>
    %538 = arith.cmpf ogt, %536, %537 : vector<2x1xf32>
    %c7_i32 = arith.constant 7 : i32
    %539 = vector.broadcast %c7_i32 : i32 to vector<2x8xi32>
    %540 = arith.cmpi eq, %534, %539 : vector<2x8xi32>
    %c0_i32_175 = arith.constant 0 : i32
    %541 = vector.broadcast %c0_i32_175 : i32 to vector<2x1xi32>
    %542 = arith.select %538, %533, %541 : vector<2x1xi1>, vector<2x1xi32>
    %543 = vector.shape_cast %542 : vector<2x1xi32> to vector<2x1xi32>
    %544 = vector.broadcast %543 : vector<2x1xi32> to vector<2x8xi32>
    %545 = arith.select %540, %544, %535 : vector<2x8xi1>, vector<2x8xi32>
    %546 = vector.broadcast %533 : vector<2x1xi32> to vector<2x8xi32>
    %547 = arith.cmpi eq, %393, %546 : vector<2x8xi32>
    %548 = arith.sitofp %514 : vector<2x8xi32> to vector<2x8xf32>
    %cst_176 = arith.constant 0.000000e+00 : f32
    %549 = vector.broadcast %cst_176 : f32 to vector<2x8xf32>
    %550 = arith.select %547, %548, %549 : vector<2x8xi1>, vector<2x8xf32>
    %cst_177 = arith.constant dense<0.000000e+00> : vector<2xf32>
    %551 = vector.multi_reduction <add>, %550, %cst_177 [1] : vector<2x8xf32> to vector<2xf32>
    %552 = vector.shape_cast %551 : vector<2xf32> to vector<2x1xf32>
    %553 = arith.fptosi %552 : vector<2x1xf32> to vector<2x1xi32>
    %554 = arith.select %538, %553, %533 : vector<2x1xi1>, vector<2x1xi32>
    %555 = vector.extract_strided_slice %0 {offsets = [0, 6], sizes = [2, 1], strides = [1, 1]} : vector<2x8xf32> to vector<2x1xf32>
    %cst_178 = arith.constant 5.000000e-01 : f32
    %556 = vector.broadcast %cst_178 : f32 to vector<2x1xf32>
    %557 = arith.cmpf ogt, %555, %556 : vector<2x1xf32>
    %c6_i32_179 = arith.constant 6 : i32
    %558 = vector.broadcast %c6_i32_179 : i32 to vector<2x8xi32>
    %559 = arith.cmpi eq, %534, %558 : vector<2x8xi32>
    %c0_i32_180 = arith.constant 0 : i32
    %560 = vector.broadcast %c0_i32_180 : i32 to vector<2x1xi32>
    %561 = arith.select %557, %554, %560 : vector<2x1xi1>, vector<2x1xi32>
    %562 = vector.shape_cast %561 : vector<2x1xi32> to vector<2x1xi32>
    %563 = vector.broadcast %562 : vector<2x1xi32> to vector<2x8xi32>
    %564 = arith.select %559, %563, %545 : vector<2x8xi1>, vector<2x8xi32>
    %565 = vector.broadcast %554 : vector<2x1xi32> to vector<2x8xi32>
    %566 = arith.cmpi eq, %393, %565 : vector<2x8xi32>
    %567 = arith.sitofp %498 : vector<2x8xi32> to vector<2x8xf32>
    %cst_181 = arith.constant 0.000000e+00 : f32
    %568 = vector.broadcast %cst_181 : f32 to vector<2x8xf32>
    %569 = arith.select %566, %567, %568 : vector<2x8xi1>, vector<2x8xf32>
    %cst_182 = arith.constant dense<0.000000e+00> : vector<2xf32>
    %570 = vector.multi_reduction <add>, %569, %cst_182 [1] : vector<2x8xf32> to vector<2xf32>
    %571 = vector.shape_cast %570 : vector<2xf32> to vector<2x1xf32>
    %572 = arith.fptosi %571 : vector<2x1xf32> to vector<2x1xi32>
    %573 = arith.select %557, %572, %554 : vector<2x1xi1>, vector<2x1xi32>
    %574 = vector.extract_strided_slice %0 {offsets = [0, 5], sizes = [2, 1], strides = [1, 1]} : vector<2x8xf32> to vector<2x1xf32>
    %cst_183 = arith.constant 5.000000e-01 : f32
    %575 = vector.broadcast %cst_183 : f32 to vector<2x1xf32>
    %576 = arith.cmpf ogt, %574, %575 : vector<2x1xf32>
    %c5_i32 = arith.constant 5 : i32
    %577 = vector.broadcast %c5_i32 : i32 to vector<2x8xi32>
    %578 = arith.cmpi eq, %534, %577 : vector<2x8xi32>
    %c0_i32_184 = arith.constant 0 : i32
    %579 = vector.broadcast %c0_i32_184 : i32 to vector<2x1xi32>
    %580 = arith.select %576, %573, %579 : vector<2x1xi1>, vector<2x1xi32>
    %581 = vector.shape_cast %580 : vector<2x1xi32> to vector<2x1xi32>
    %582 = vector.broadcast %581 : vector<2x1xi32> to vector<2x8xi32>
    %583 = arith.select %578, %582, %564 : vector<2x8xi1>, vector<2x8xi32>
    %584 = vector.broadcast %573 : vector<2x1xi32> to vector<2x8xi32>
    %585 = arith.cmpi eq, %393, %584 : vector<2x8xi32>
    %586 = arith.sitofp %482 : vector<2x8xi32> to vector<2x8xf32>
    %cst_185 = arith.constant 0.000000e+00 : f32
    %587 = vector.broadcast %cst_185 : f32 to vector<2x8xf32>
    %588 = arith.select %585, %586, %587 : vector<2x8xi1>, vector<2x8xf32>
    %cst_186 = arith.constant dense<0.000000e+00> : vector<2xf32>
    %589 = vector.multi_reduction <add>, %588, %cst_186 [1] : vector<2x8xf32> to vector<2xf32>
    %590 = vector.shape_cast %589 : vector<2xf32> to vector<2x1xf32>
    %591 = arith.fptosi %590 : vector<2x1xf32> to vector<2x1xi32>
    %592 = arith.select %576, %591, %573 : vector<2x1xi1>, vector<2x1xi32>
    %593 = vector.extract_strided_slice %0 {offsets = [0, 4], sizes = [2, 1], strides = [1, 1]} : vector<2x8xf32> to vector<2x1xf32>
    %cst_187 = arith.constant 5.000000e-01 : f32
    %594 = vector.broadcast %cst_187 : f32 to vector<2x1xf32>
    %595 = arith.cmpf ogt, %593, %594 : vector<2x1xf32>
    %c4_i32 = arith.constant 4 : i32
    %596 = vector.broadcast %c4_i32 : i32 to vector<2x8xi32>
    %597 = arith.cmpi eq, %534, %596 : vector<2x8xi32>
    %c0_i32_188 = arith.constant 0 : i32
    %598 = vector.broadcast %c0_i32_188 : i32 to vector<2x1xi32>
    %599 = arith.select %595, %592, %598 : vector<2x1xi1>, vector<2x1xi32>
    %600 = vector.shape_cast %599 : vector<2x1xi32> to vector<2x1xi32>
    %601 = vector.broadcast %600 : vector<2x1xi32> to vector<2x8xi32>
    %602 = arith.select %597, %601, %583 : vector<2x8xi1>, vector<2x8xi32>
    %603 = vector.broadcast %592 : vector<2x1xi32> to vector<2x8xi32>
    %604 = arith.cmpi eq, %393, %603 : vector<2x8xi32>
    %605 = arith.sitofp %466 : vector<2x8xi32> to vector<2x8xf32>
    %cst_189 = arith.constant 0.000000e+00 : f32
    %606 = vector.broadcast %cst_189 : f32 to vector<2x8xf32>
    %607 = arith.select %604, %605, %606 : vector<2x8xi1>, vector<2x8xf32>
    %cst_190 = arith.constant dense<0.000000e+00> : vector<2xf32>
    %608 = vector.multi_reduction <add>, %607, %cst_190 [1] : vector<2x8xf32> to vector<2xf32>
    %609 = vector.shape_cast %608 : vector<2xf32> to vector<2x1xf32>
    %610 = arith.fptosi %609 : vector<2x1xf32> to vector<2x1xi32>
    %611 = arith.select %595, %610, %592 : vector<2x1xi1>, vector<2x1xi32>
    %612 = vector.extract_strided_slice %0 {offsets = [0, 3], sizes = [2, 1], strides = [1, 1]} : vector<2x8xf32> to vector<2x1xf32>
    %cst_191 = arith.constant 5.000000e-01 : f32
    %613 = vector.broadcast %cst_191 : f32 to vector<2x1xf32>
    %614 = arith.cmpf ogt, %612, %613 : vector<2x1xf32>
    %c3_i32 = arith.constant 3 : i32
    %615 = vector.broadcast %c3_i32 : i32 to vector<2x8xi32>
    %616 = arith.cmpi eq, %534, %615 : vector<2x8xi32>
    %c0_i32_192 = arith.constant 0 : i32
    %617 = vector.broadcast %c0_i32_192 : i32 to vector<2x1xi32>
    %618 = arith.select %614, %611, %617 : vector<2x1xi1>, vector<2x1xi32>
    %619 = vector.shape_cast %618 : vector<2x1xi32> to vector<2x1xi32>
    %620 = vector.broadcast %619 : vector<2x1xi32> to vector<2x8xi32>
    %621 = arith.select %616, %620, %602 : vector<2x8xi1>, vector<2x8xi32>
    %622 = vector.broadcast %611 : vector<2x1xi32> to vector<2x8xi32>
    %623 = arith.cmpi eq, %393, %622 : vector<2x8xi32>
    %624 = arith.sitofp %450 : vector<2x8xi32> to vector<2x8xf32>
    %cst_193 = arith.constant 0.000000e+00 : f32
    %625 = vector.broadcast %cst_193 : f32 to vector<2x8xf32>
    %626 = arith.select %623, %624, %625 : vector<2x8xi1>, vector<2x8xf32>
    %cst_194 = arith.constant dense<0.000000e+00> : vector<2xf32>
    %627 = vector.multi_reduction <add>, %626, %cst_194 [1] : vector<2x8xf32> to vector<2xf32>
    %628 = vector.shape_cast %627 : vector<2xf32> to vector<2x1xf32>
    %629 = arith.fptosi %628 : vector<2x1xf32> to vector<2x1xi32>
    %630 = arith.select %614, %629, %611 : vector<2x1xi1>, vector<2x1xi32>
    %631 = vector.extract_strided_slice %0 {offsets = [0, 2], sizes = [2, 1], strides = [1, 1]} : vector<2x8xf32> to vector<2x1xf32>
    %cst_195 = arith.constant 5.000000e-01 : f32
    %632 = vector.broadcast %cst_195 : f32 to vector<2x1xf32>
    %633 = arith.cmpf ogt, %631, %632 : vector<2x1xf32>
    %c2_i32 = arith.constant 2 : i32
    %634 = vector.broadcast %c2_i32 : i32 to vector<2x8xi32>
    %635 = arith.cmpi eq, %534, %634 : vector<2x8xi32>
    %c0_i32_196 = arith.constant 0 : i32
    %636 = vector.broadcast %c0_i32_196 : i32 to vector<2x1xi32>
    %637 = arith.select %633, %630, %636 : vector<2x1xi1>, vector<2x1xi32>
    %638 = vector.shape_cast %637 : vector<2x1xi32> to vector<2x1xi32>
    %639 = vector.broadcast %638 : vector<2x1xi32> to vector<2x8xi32>
    %640 = arith.select %635, %639, %621 : vector<2x8xi1>, vector<2x8xi32>
    %641 = vector.broadcast %630 : vector<2x1xi32> to vector<2x8xi32>
    %642 = arith.cmpi eq, %393, %641 : vector<2x8xi32>
    %643 = arith.sitofp %434 : vector<2x8xi32> to vector<2x8xf32>
    %cst_197 = arith.constant 0.000000e+00 : f32
    %644 = vector.broadcast %cst_197 : f32 to vector<2x8xf32>
    %645 = arith.select %642, %643, %644 : vector<2x8xi1>, vector<2x8xf32>
    %cst_198 = arith.constant dense<0.000000e+00> : vector<2xf32>
    %646 = vector.multi_reduction <add>, %645, %cst_198 [1] : vector<2x8xf32> to vector<2xf32>
    %647 = vector.shape_cast %646 : vector<2xf32> to vector<2x1xf32>
    %648 = arith.fptosi %647 : vector<2x1xf32> to vector<2x1xi32>
    %649 = arith.select %633, %648, %630 : vector<2x1xi1>, vector<2x1xi32>
    %650 = vector.extract_strided_slice %0 {offsets = [0, 1], sizes = [2, 1], strides = [1, 1]} : vector<2x8xf32> to vector<2x1xf32>
    %cst_199 = arith.constant 5.000000e-01 : f32
    %651 = vector.broadcast %cst_199 : f32 to vector<2x1xf32>
    %652 = arith.cmpf ogt, %650, %651 : vector<2x1xf32>
    %c1_i32 = arith.constant 1 : i32
    %653 = vector.broadcast %c1_i32 : i32 to vector<2x8xi32>
    %654 = arith.cmpi eq, %534, %653 : vector<2x8xi32>
    %c0_i32_200 = arith.constant 0 : i32
    %655 = vector.broadcast %c0_i32_200 : i32 to vector<2x1xi32>
    %656 = arith.select %652, %649, %655 : vector<2x1xi1>, vector<2x1xi32>
    %657 = vector.shape_cast %656 : vector<2x1xi32> to vector<2x1xi32>
    %658 = vector.broadcast %657 : vector<2x1xi32> to vector<2x8xi32>
    %659 = arith.select %654, %658, %640 : vector<2x8xi1>, vector<2x8xi32>
    %660 = vector.broadcast %649 : vector<2x1xi32> to vector<2x8xi32>
    %661 = arith.cmpi eq, %393, %660 : vector<2x8xi32>
    %662 = arith.sitofp %418 : vector<2x8xi32> to vector<2x8xf32>
    %cst_201 = arith.constant 0.000000e+00 : f32
    %663 = vector.broadcast %cst_201 : f32 to vector<2x8xf32>
    %664 = arith.select %661, %662, %663 : vector<2x8xi1>, vector<2x8xf32>
    %cst_202 = arith.constant dense<0.000000e+00> : vector<2xf32>
    %665 = vector.multi_reduction <add>, %664, %cst_202 [1] : vector<2x8xf32> to vector<2xf32>
    %666 = vector.shape_cast %665 : vector<2xf32> to vector<2x1xf32>
    %667 = arith.fptosi %666 : vector<2x1xf32> to vector<2x1xi32>
    %668 = arith.select %652, %667, %649 : vector<2x1xi1>, vector<2x1xi32>
    %669 = vector.extract_strided_slice %0 {offsets = [0, 0], sizes = [2, 1], strides = [1, 1]} : vector<2x8xf32> to vector<2x1xf32>
    %cst_203 = arith.constant 5.000000e-01 : f32
    %670 = vector.broadcast %cst_203 : f32 to vector<2x1xf32>
    %671 = arith.cmpf ogt, %669, %670 : vector<2x1xf32>
    %c0_i32_204 = arith.constant 0 : i32
    %672 = vector.broadcast %c0_i32_204 : i32 to vector<2x8xi32>
    %673 = arith.cmpi eq, %534, %672 : vector<2x8xi32>
    %c0_i32_205 = arith.constant 0 : i32
    %674 = vector.broadcast %c0_i32_205 : i32 to vector<2x1xi32>
    %675 = arith.select %671, %668, %674 : vector<2x1xi1>, vector<2x1xi32>
    %676 = vector.shape_cast %675 : vector<2x1xi32> to vector<2x1xi32>
    %677 = vector.broadcast %676 : vector<2x1xi32> to vector<2x8xi32>
    %678 = arith.select %673, %677, %659 : vector<2x8xi1>, vector<2x8xi32>
    %c0_206 = arith.constant 0 : index
    %c0_207 = arith.constant 0 : index
    %679 = vector.load %arg18[%c0_206, %c0_207] : memref<2x8xi32, #tpu.memory_space<vmem>>, vector<2x8xi32>
    tpu.vector_store %arg18[%c0_206, %c0_207], %678 {strides = array<i32>} : memref<2x8xi32, #tpu.memory_space<vmem>>, vector<2x8xi32>,
    return
  }
}

</mosaic_0001>

<llo_original>
// kernel: _device_forward.1
$region0: #{_device_forward.1}
  #allocation0 [shape = 'u32[]', space=smem, size = 0x4, offset = 0x4, fixed_abs, tag = 'smem constant byte address 0x4 - core index']
  #allocation1 [shape = 'u32[144,128]{1,0:T(1,128)}', space=vmem, size = 0x12000, scoped, tag = 'internal scratch']
  %s0 = inlined_call_operand.vmem [shape: f32[2,8,32], index: 0, kind: input, shape index: {}]
  %s1 = inlined_call_operand.vmem [shape: f32[2,8], index: 1, kind: input, shape index: {}]
  %s2 = inlined_call_operand.vmem [shape: bf16[2,32,96], index: 2, kind: input, shape index: {}]
  %s3 = inlined_call_operand.vmem [shape: f32[2,1,96], index: 3, kind: input, shape index: {}]
  %s4 = inlined_call_operand.vmem [shape: bf16[2,32,32], index: 4, kind: input, shape index: {}]
  %s5 = inlined_call_operand.vmem [shape: f32[2,1,32], index: 5, kind: input, shape index: {}]
  %s6 = inlined_call_operand.vmem [shape: bf16[2,32,64], index: 6, kind: input, shape index: {}]
  %s7 = inlined_call_operand.vmem [shape: f32[2,1,64], index: 7, kind: input, shape index: {}]
  %s8 = inlined_call_operand.vmem [shape: bf16[2,64,32], index: 8, kind: input, shape index: {}]
  %s9 = inlined_call_operand.vmem [shape: f32[2,1,32], index: 9, kind: input, shape index: {}]
  %s10 = inlined_call_operand.vmem [shape: f32[2,1,32], index: 10, kind: input, shape index: {}]
  %s11 = inlined_call_operand.vmem [shape: f32[2,1,32], index: 11, kind: input, shape index: {}]
  %s12 = inlined_call_operand.vmem [shape: f32[2,1,32], index: 12, kind: input, shape index: {}]
  %s13 = inlined_call_operand.vmem [shape: f32[2,1,32], index: 13, kind: input, shape index: {}]
  %s14 = inlined_call_operand.vmem [shape: bf16[32,8], index: 14, kind: input, shape index: {}]
  %s15 = inlined_call_operand.vmem [shape: f32[1,8], index: 15, kind: input, shape index: {}]
  %s16 = inlined_call_operand.vmem [shape: f32[8,8], index: 16, kind: input, shape index: {}]
  %s17 = inlined_call_operand.vmem [shape: f32[2,1], index: 17, kind: output, shape index: {0}]
  %s18 = inlined_call_operand.hbm [shape: s32[2,8], index: 18, kind: output, shape index: {1}]
  %19 = xla_tuple %s17, %s18
  %s20 = sld [smem:[#allocation0]]
  $region86: #{_device_forward.1} parent=0
    _
  %s22 = ssub.s32 1, %s20
  %s23 = scalar_select 0, %s22, %s20
  $region1: #{_device_forward.1} parent=0
    #allocation2 [shape = 'u8[1024]{0}', space=vmem, size = 0x400, scoped, tag = 'output window, operand 1, single buffered']
    #allocation3 [shape = 's32[1]{0}', space=sflag, size = 0x4, scoped, tag = 'scoped memory for _device_forward.1']
    %24 = vsyncpa [#allocation3], 0
    // Predicated region
    $region2: #{_device_forward.1} parent=1 // pred_check
      _
    $region3: #{_device_forward.1} parent=1 // pred_check_branch
      %26 = sbr.rel (0) target = $region5
    $region4: #{_device_forward.1} parent=1 // pred_region
      _
    $region5: #{_device_forward.1} parent=1 // pred_fallthru
      _
    // Predicated region
    $region6: #{_device_forward.1} parent=1 // pred_check
      _
    $region7: #{_device_forward.1} parent=1 // pred_check_branch
      %28 = sbr.rel (0) target = $region9
    $region8: #{_device_forward.1} parent=1 // pred_region
      _
    $region9: #{_device_forward.1} parent=1 // pred_fallthru
      _
    // Predicated region
    $region10: #{_device_forward.1} parent=1 // pred_check
      _
    $region11: #{_device_forward.1} parent=1 // pred_check_branch
      %30 = sbr.rel (0) target = $region13
    $region12: #{_device_forward.1} parent=1 // pred_region
      _
    $region13: #{_device_forward.1} parent=1 // pred_fallthru
      _
    // Predicated region
    $region14: #{_device_forward.1} parent=1 // pred_check
      _
    $region15: #{_device_forward.1} parent=1 // pred_check_branch
      %32 = sbr.rel (0) target = $region17
    $region16: #{_device_forward.1} parent=1 // pred_region
      _
    $region17: #{_device_forward.1} parent=1 // pred_fallthru
      _
    // Predicated region
    $region18: #{_device_forward.1} parent=1 // pred_check
      _
    $region19: #{_device_forward.1} parent=1 // pred_check_branch
      %34 = sbr.rel (0) target = $region21
    $region20: #{_device_forward.1} parent=1 // pred_region
      _
    $region21: #{_device_forward.1} parent=1 // pred_fallthru
      _
    // Predicated region
    $region22: #{_device_forward.1} parent=1 // pred_check
      _
    $region23: #{_device_forward.1} parent=1 // pred_check_branch
      %36 = sbr.rel (0) target = $region25
    $region24: #{_device_forward.1} parent=1 // pred_region
      _
    $region25: #{_device_forward.1} parent=1 // pred_fallthru
      _
    // Predicated region
    $region26: #{_device_forward.1} parent=1 // pred_check
      _
    $region27: #{_device_forward.1} parent=1 // pred_check_branch
      %38 = sbr.rel (0) target = $region29
    $region28: #{_device_forward.1} parent=1 // pred_region
      _
    $region29: #{_device_forward.1} parent=1 // pred_fallthru
      _
    // Predicated region
    $region30: #{_device_forward.1} parent=1 // pred_check
      _
    $region31: #{_device_forward.1} parent=1 // pred_check_branch
      %40 = sbr.rel (0) target = $region33
    $region32: #{_device_forward.1} parent=1 // pred_region
      _
    $region33: #{_device_forward.1} parent=1 // pred_fallthru
      _
    // Predicated region
    $region34: #{_device_forward.1} parent=1 // pred_check
      _
    $region35: #{_device_forward.1} parent=1 // pred_check_branch
      %42 = sbr.rel (0) target = $region37
    $region36: #{_device_forward.1} parent=1 // pred_region
      _
    $region37: #{_device_forward.1} parent=1 // pred_fallthru
      _
    // Predicated region
    $region38: #{_device_forward.1} parent=1 // pred_check
      _
    $region39: #{_device_forward.1} parent=1 // pred_check_branch
      %44 = sbr.rel (0) target = $region41
    $region40: #{_device_forward.1} parent=1 // pred_region
      _
    $region41: #{_device_forward.1} parent=1 // pred_fallthru
      _
    // Predicated region
    $region42: #{_device_forward.1} parent=1 // pred_check
      _
    $region43: #{_device_forward.1} parent=1 // pred_check_branch
      %46 = sbr.rel (0) target = $region45
    $region44: #{_device_forward.1} parent=1 // pred_region
      _
    $region45: #{_device_forward.1} parent=1 // pred_fallthru
      _
    // Predicated region
    $region46: #{_device_forward.1} parent=1 // pred_check
      _
    $region47: #{_device_forward.1} parent=1 // pred_check_branch
      %48 = sbr.rel (0) target = $region49
    $region48: #{_device_forward.1} parent=1 // pred_region
      _
    $region49: #{_device_forward.1} parent=1 // pred_fallthru
      _
    // Predicated region
    $region50: #{_device_forward.1} parent=1 // pred_check
      _
    $region51: #{_device_forward.1} parent=1 // pred_check_branch
      %50 = sbr.rel (0) target = $region53
    $region52: #{_device_forward.1} parent=1 // pred_region
      _
    $region53: #{_device_forward.1} parent=1 // pred_fallthru
      _
    // Predicated region
    $region54: #{_device_forward.1} parent=1 // pred_check
      _
    $region55: #{_device_forward.1} parent=1 // pred_check_branch
      %52 = sbr.rel (0) target = $region57
    $region56: #{_device_forward.1} parent=1 // pred_region
      _
    $region57: #{_device_forward.1} parent=1 // pred_fallthru
      _
    // Predicated region
    $region58: #{_device_forward.1} parent=1 // pred_check
      _
    $region59: #{_device_forward.1} parent=1 // pred_check_branch
      %54 = sbr.rel (0) target = $region61
    $region60: #{_device_forward.1} parent=1 // pred_region
      _
    $region61: #{_device_forward.1} parent=1 // pred_fallthru
      _
    // Predicated region
    $region62: #{_device_forward.1} parent=1 // pred_check
      _
    $region63: #{_device_forward.1} parent=1 // pred_check_branch
      %56 = sbr.rel (0) target = $region65
    $region64: #{_device_forward.1} parent=1 // pred_region
      _
    $region65: #{_device_forward.1} parent=1 // pred_fallthru
      _
    // Predicated region
    $region66: #{_device_forward.1} parent=1 // pred_check
      _
    $region67: #{_device_forward.1} parent=1 // pred_check_branch
      %58 = sbr.rel (0) target = $region69
    $region68: #{_device_forward.1} parent=1 // pred_region
      _
    $region69: #{_device_forward.1} parent=1 // pred_fallthru
      _
    %v60 = vld [vmem:[%s1] sm:$0x3]
    %v61 = vsub.f32 1.0, %v60
    %v62 = vmul.f32 %v61, -10000.0
    %v65 = vunpack.c.l.s4 1966171168
    %v66 = vunpack.c.0.s8 %v65
    %v67 = vlaneseq
    %v68 = vshrl.u32 %v67, 7
    %v69 = vsub.s32 %v66, %v68
    %v70 = vrot.slane %v62, %v69
    %v71 = vcombine.high %v70, %v70
    %v73 = vunpack.c.l.s4 1966171168
    %v74 = vunpack.c.0.s8 %v73
    %v75 = vlaneseq
    %v76 = vshrl.u32 %v75, 7
    %v77 = vsub.s32 %v74, %v76
    %v78 = vrot.slane %v70, %v77
    %v80 = vunpack.c.l.s4 1966171168
    %v81 = vunpack.c.0.s8 %v80
    %v82 = vlaneseq
    %v83 = vshrl.u32 %v82, 7
    %v84 = vsub.s32 %v81, %v83
    %v85 = vrot.slane %v71, %v84
    %v86 = vld [vmem:[%s0] sm:$0xff]
    %v87 = vld [vmem:[%s0 + $0x8] sm:$0xff]
    %v88 = vpack.c.bf16 %v87, %v86
    %v89 = vld [vmem:[%s2] sm:$0xf]
    %v90 = vld [vmem:[%s2 + $0x4] sm:$0xf]
    %v91 = vld [vmem:[%s2 + $0x8] sm:$0xf]
    %v92 = vld [vmem:[%s2 + $0xc] sm:$0xf]
    %v93 = vld [vmem:[%s3] sm:$0x1]
    %v95 = vlaneseq
    %v96 = vshrl.u32 %v95, 7
    %v97 = vsub.s32 0, %v96
    %v98 = vrot.slane %v93, %v97
    %v104 = vunpack.c.l.b16 %v89
    %v105 = vunpack.c.l.b16 %v90
    %v106 = vunpack.c.l.b16 %v91
    %v107 = vunpack.c.l.b16 %v92
    %v108 = vpack.c.b16 %v105, %v104
    %v109 = vpack.c.b16 %v107, %v106
    %vm112 = vcmask 261120
    %v114 = vsel %vm112, %v88, 0
    %116 = vmatprep.subr.bf16.mxu0 0
    %117 = vmatpush1.bf16.msra.mxu0 %v108
    %118 = vmatprep.subr.bf16.mxu0 0
    %119 = vmatpush1.bf16.msra.mxu0 %v109
    %120 = vmatprep.subr.bf16.mxu0 0
    %121 = vmatpush1.bf16.msra.mxu0 0
    %122 = vmatprep.subr.bf16.mxu0 0
    %123 = vmatpush1.bf16.msra.mxu0 0
    %124 = vmatprep.subr.bf16.mxu0 0
    %125 = vmatpush1.bf16.msra.mxu0 0
    %126 = vmatprep.subr.bf16.mxu0 0
    %127 = vmatpush1.bf16.msra.mxu0 0
    %128 = vmatprep.subr.bf16.mxu0 0
    %129 = vmatpush1.bf16.msra.mxu0 0
    %130 = vmatprep.subr.bf16.mxu0 0
    %131 = vmatpush1.bf16.msra.mxu0 0
    %132 = vmatprep.subr.bf16.mxu0 0
    %133 = vmatpush1.bf16.msra.mxu0 0
    %134 = vmatprep.subr.bf16.mxu0 0
    %135 = vmatpush1.bf16.msra.mxu0 0
    %136 = vmatprep.subr.bf16.mxu0 0
    %137 = vmatpush1.bf16.msra.mxu0 0
    %138 = vmatprep.subr.bf16.mxu0 0
    %139 = vmatpush1.bf16.msra.mxu0 0
    %140 = vmatprep.subr.bf16.mxu0 0
    %141 = vmatpush1.bf16.msra.mxu0 0
    %142 = vmatprep.subr.bf16.mxu0 0
    %143 = vmatpush1.bf16.msra.mxu0 0
    %144 = vmatprep.subr.bf16.mxu0 0
    %145 = vmatpush1.bf16.msra.mxu0 0
    %146 = vmatprep.subr.bf16.mxu0 0
    %147 = vmatpush1.bf16.msra.mxu0 0
    %148 = vmatprep.mubr.bf16.mxu0 0
    %149 = vmatmul.mubr.bf16.gmra.mrb[0].mxu0 %v114
    %v150 = vpop.f32.mrb[0].mxu0
    %v151 = vadd.f32 %v98, %v150
    %v152 = vpop.f32.mrb[0].mxu0
    %v153 = vpop.f32.mrb[0].mxu0
    %v154 = vadd.f32 %v98, %v153
    %v155 = vpop.f32.mrb[0].mxu0
    %156 = vdwg.mxu0
    %v157 = vpack.c.bf16 %v151, %v151
    %v158 = vpack.c.bf16 %v154, %v154
    %160 = vrot.lane.b32.xlu0 %v157, 96
    %v161 = vpop.permute.xlu0 %160
    %vm162 = vcmask 64512
    %v164 = vsel %vm162, %v157, 0
    %v167 = vsel %vm162, %v161, 0
    %169 = vmatprep.subr.bf16.mxu0 0
    %170 = vmatpush1.bf16.xpose.msra.mxu0 %v167
    %171 = vmatprep.subr.bf16.mxu0 0
    %172 = vmatpush1.bf16.xpose.msra.mxu0 0
    %173 = vmatprep.subr.bf16.mxu0 0
    %174 = vmatpush1.bf16.xpose.msra.mxu0 0
    %175 = vmatprep.subr.bf16.mxu0 0
    %176 = vmatpush1.bf16.xpose.msra.mxu0 0
    %177 = vmatprep.subr.bf16.mxu0 0
    %178 = vmatpush1.bf16.xpose.msra.mxu0 0
    %179 = vmatprep.subr.bf16.mxu0 0
    %180 = vmatpush1.bf16.xpose.msra.mxu0 0
    %181 = vmatprep.subr.bf16.mxu0 0
    %182 = vmatpush1.bf16.xpose.msra.mxu0 0
    %183 = vmatprep.subr.bf16.mxu0 0
    %184 = vmatpush1.bf16.xpose.msra.mxu0 0
    %185 = vmatprep.subr.bf16.mxu0 0
    %186 = vmatpush1.bf16.xpose.msra.mxu0 0
    %187 = vmatprep.subr.bf16.mxu0 0
    %188 = vmatpush1.bf16.xpose.msra.mxu0 0
    %189 = vmatprep.subr.bf16.mxu0 0
    %190 = vmatpush1.bf16.xpose.msra.mxu0 0
    %191 = vmatprep.subr.bf16.mxu0 0
    %192 = vmatpush1.bf16.xpose.msra.mxu0 0
    %193 = vmatprep.subr.bf16.mxu0 0
    %194 = vmatpush1.bf16.xpose.msra.mxu0 0
    %195 = vmatprep.subr.bf16.mxu0 0
    %196 = vmatpush1.bf16.xpose.msra.mxu0 0
    %197 = vmatprep.subr.bf16.mxu0 0
    %198 = vmatpush1.bf16.xpose.msra.mxu0 0
    %199 = vmatprep.subr.bf16.mxu0 0
    %200 = vmatpush1.bf16.xpose.msra.mxu0 0
    %201 = vmatprep.mubr.bf16.mxu0 0
    %202 = vmatmul.mubr.bf16.gmra.mrb[0].mxu0 %v164
    %v203 = vpop.f32.mrb[0].mxu0
    %v204 = vadd.f32 0.0, %v203
    %v205 = vpop.f32.mrb[0].mxu0
    %v206 = vpop.f32.mrb[0].mxu0
    %v207 = vpop.f32.mrb[0].mxu0
    %208 = vdwg.mxu0
    %210 = vrot.lane.b32.xlu0 %v158, 96
    %v211 = vpop.permute.xlu0 %210
    %v213 = vsel %vm162, %v158, 0
    %v216 = vsel %vm162, %v211, 0
    %218 = vmatprep.subr.bf16.mxu0 0
    %219 = vmatpush1.bf16.xpose.msra.mxu0 %v216
    %220 = vmatprep.subr.bf16.mxu0 0
    %221 = vmatpush1.bf16.xpose.msra.mxu0 0
    %222 = vmatprep.subr.bf16.mxu0 0
    %223 = vmatpush1.bf16.xpose.msra.mxu0 0
    %224 = vmatprep.subr.bf16.mxu0 0
    %225 = vmatpush1.bf16.xpose.msra.mxu0 0
    %226 = vmatprep.subr.bf16.mxu0 0
    %227 = vmatpush1.bf16.xpose.msra.mxu0 0
    %228 = vmatprep.subr.bf16.mxu0 0
    %229 = vmatpush1.bf16.xpose.msra.mxu0 0
    %230 = vmatprep.subr.bf16.mxu0 0
    %231 = vmatpush1.bf16.xpose.msra.mxu0 0
    %232 = vmatprep.subr.bf16.mxu0 0
    %233 = vmatpush1.bf16.xpose.msra.mxu0 0
    %234 = vmatprep.subr.bf16.mxu0 0
    %235 = vmatpush1.bf16.xpose.msra.mxu0 0
    %236 = vmatprep.subr.bf16.mxu0 0
    %237 = vmatpush1.bf16.xpose.msra.mxu0 0
    %238 = vmatprep.subr.bf16.mxu0 0
    %239 = vmatpush1.bf16.xpose.msra.mxu0 0
    %240 = vmatprep.subr.bf16.mxu0 0
    %241 = vmatpush1.bf16.xpose.msra.mxu0 0
    %242 = vmatprep.subr.bf16.mxu0 0
    %243 = vmatpush1.bf16.xpose.msra.mxu0 0
    %244 = vmatprep.subr.bf16.mxu0 0
    %245 = vmatpush1.bf16.xpose.msra.mxu0 0
    %246 = vmatprep.subr.bf16.mxu0 0
    %247 = vmatpush1.bf16.xpose.msra.mxu0 0
    %248 = vmatprep.subr.bf16.mxu0 0
    %249 = vmatpush1.bf16.xpose.msra.mxu0 0
    %250 = vmatprep.mubr.bf16.mxu0 0
    %251 = vmatmul.mubr.bf16.gmra.mrb[0].mxu0 %v213
    %v252 = vpop.f32.mrb[0].mxu0
    %v253 = vadd.f32 0.0, %v252
    %v254 = vpop.f32.mrb[0].mxu0
    %v255 = vpop.f32.mrb[0].mxu0
    %v256 = vpop.f32.mrb[0].mxu0
    %257 = vdwg.mxu0
    %v258 = vmul.f32 %v204, 0.35355338
    %v259 = vmul.f32 %v253, 0.35355338
    %v260 = vlaneseq
    %v261 = vshrl.u32 %v260, 7
    %v262 = vsub.s32 0, %v261
    %v263 = vrot.slane %v78, %v262
    %v264 = vlaneseq
    %v265 = vshrl.u32 %v264, 7
    %v266 = vsub.s32 0, %v265
    %v267 = vrot.slane %v85, %v266
    %v270 = vadd.f32 %v258, %v263
    %v271 = vadd.f32 %v259, %v267
    %v272 = vsel %vm162, %v270, -inf
    %273 = vmax.xlane.f32.xlu0 %v272
    %v274 = vpop.xlane.xlu0 %273
    %v275 = vsel %vm162, %v271, -inf
    %276 = vmax.xlane.f32.xlu0 %v275
    %v277 = vpop.xlane.xlu0 %276
    %v278 = vsub.f32 %v270, %v274
    %v279 = vsub.f32 %v271, %v277
    %v280 = vmul.f32 %v278, 1.442695
    %v281 = vpow.pop %v280
    %v282 = vmul.f32 %v279, 1.442695
    %v283 = vpow.pop %v282
    %v284 = vsel %vm162, %v281, 0.0
    %285 = vadd.xlane.f32.xlu0 %v284
    %v286 = vpop.xlane.xlu0 %285
    %v287 = vsel %vm162, %v283, 0.0
    %288 = vadd.xlane.f32.xlu0 %v287
    %v289 = vpop.xlane.xlu0 %288
    %v290 = vrcp.pop %v286
    %v291 = vrcp.pop %v289
    %v292 = vmul.f32 %v281, %v290
    %v293 = vmul.f32 %v283, %v291
    %v294 = vpack.c.bf16 %v292, %v292
    %v295 = vpack.c.bf16 %v293, %v293
    %296 = vrot.lane.b32.xlu0 %v157, 64
    %v297 = vpop.permute.xlu0 %296
    %v299 = vsel %vm162, %v294, 0
    %vm301 = vcmask 1043456
    %v303 = vsel %vm301, %v297, 0
    %305 = vmatprep.subr.bf16.mxu0 0
    %306 = vmatpush1.bf16.msra.mxu0 %v303
    %307 = vmatprep.subr.bf16.mxu0 0
    %308 = vmatpush1.bf16.msra.mxu0 0
    %309 = vmatprep.subr.bf16.mxu0 0
    %310 = vmatpush1.bf16.msra.mxu0 0
    %311 = vmatprep.subr.bf16.mxu0 0
    %312 = vmatpush1.bf16.msra.mxu0 0
    %313 = vmatprep.subr.bf16.mxu0 0
    %314 = vmatpush1.bf16.msra.mxu0 0
    %315 = vmatprep.subr.bf16.mxu0 0
    %316 = vmatpush1.bf16.msra.mxu0 0
    %317 = vmatprep.subr.bf16.mxu0 0
    %318 = vmatpush1.bf16.msra.mxu0 0
    %319 = vmatprep.subr.bf16.mxu0 0
    %320 = vmatpush1.bf16.msra.mxu0 0
    %321 = vmatprep.subr.bf16.mxu0 0
    %322 = vmatpush1.bf16.msra.mxu0 0
    %323 = vmatprep.subr.bf16.mxu0 0
    %324 = vmatpush1.bf16.msra.mxu0 0
    %325 = vmatprep.subr.bf16.mxu0 0
    %326 = vmatpush1.bf16.msra.mxu0 0
    %327 = vmatprep.subr.bf16.mxu0 0
    %328 = vmatpush1.bf16.msra.mxu0 0
    %329 = vmatprep.subr.bf16.mxu0 0
    %330 = vmatpush1.bf16.msra.mxu0 0
    %331 = vmatprep.subr.bf16.mxu0 0
    %332 = vmatpush1.bf16.msra.mxu0 0
    %333 = vmatprep.subr.bf16.mxu0 0
    %334 = vmatpush1.bf16.msra.mxu0 0
    %335 = vmatprep.subr.bf16.mxu0 0
    %336 = vmatpush1.bf16.msra.mxu0 0
    %337 = vmatprep.mubr.bf16.mxu0 0
    %338 = vmatmul.mubr.bf16.gmra.mrb[0].mxu0 %v299
    %v339 = vpop.f32.mrb[0].mxu0
    %v340 = vadd.f32 0.0, %v339
    %v341 = vpop.f32.mrb[0].mxu0
    %v342 = vpop.f32.mrb[0].mxu0
    %v343 = vpop.f32.mrb[0].mxu0
    %344 = vdwg.mxu0
    %345 = vrot.lane.b32.xlu0 %v158, 64
    %v346 = vpop.permute.xlu0 %345
    %v348 = vsel %vm162, %v295, 0
    %v351 = vsel %vm301, %v346, 0
    %353 = vmatprep.subr.bf16.mxu0 0
    %354 = vmatpush1.bf16.msra.mxu0 %v351
    %355 = vmatprep.subr.bf16.mxu0 0
    %356 = vmatpush1.bf16.msra.mxu0 0
    %357 = vmatprep.subr.bf16.mxu0 0
    %358 = vmatpush1.bf16.msra.mxu0 0
    %359 = vmatprep.subr.bf16.mxu0 0
    %360 = vmatpush1.bf16.msra.mxu0 0
    %361 = vmatprep.subr.bf16.mxu0 0
    %362 = vmatpush1.bf16.msra.mxu0 0
    %363 = vmatprep.subr.bf16.mxu0 0
    %364 = vmatpush1.bf16.msra.mxu0 0
    %365 = vmatprep.subr.bf16.mxu0 0
    %366 = vmatpush1.bf16.msra.mxu0 0
    %367 = vmatprep.subr.bf16.mxu0 0
    %368 = vmatpush1.bf16.msra.mxu0 0
    %369 = vmatprep.subr.bf16.mxu0 0
    %370 = vmatpush1.bf16.msra.mxu0 0
    %371 = vmatprep.subr.bf16.mxu0 0
    %372 = vmatpush1.bf16.msra.mxu0 0
    %373 = vmatprep.subr.bf16.mxu0 0
    %374 = vmatpush1.bf16.msra.mxu0 0
    %375 = vmatprep.subr.bf16.mxu0 0
    %376 = vmatpush1.bf16.msra.mxu0 0
    %377 = vmatprep.subr.bf16.mxu0 0
    %378 = vmatpush1.bf16.msra.mxu0 0
    %379 = vmatprep.subr.bf16.mxu0 0
    %380 = vmatpush1.bf16.msra.mxu0 0
    %381 = vmatprep.subr.bf16.mxu0 0
    %382 = vmatpush1.bf16.msra.mxu0 0
    %383 = vmatprep.subr.bf16.mxu0 0
    %384 = vmatpush1.bf16.msra.mxu0 0
    %385 = vmatprep.mubr.bf16.mxu0 0
    %386 = vmatmul.mubr.bf16.gmra.mrb[0].mxu0 %v348
    %v387 = vpop.f32.mrb[0].mxu0
    %v388 = vadd.f32 0.0, %v387
    %v389 = vpop.f32.mrb[0].mxu0
    %v390 = vpop.f32.mrb[0].mxu0
    %v391 = vpop.f32.mrb[0].mxu0
    %392 = vdwg.mxu0
    %393 = vrot.lane.b32.xlu0 %v157, 120
    %v394 = vpop.permute.xlu0 %393
    %395 = vrot.lane.b32.xlu0 %v157, 88
    %v396 = vpop.permute.xlu0 %395
    %v398 = vsel %vm162, %v394, 0
    %v401 = vsel %vm162, %v396, 0
    %403 = vmatprep.subr.bf16.mxu0 0
    %404 = vmatpush1.bf16.xpose.msra.mxu0 %v401
    %405 = vmatprep.subr.bf16.mxu0 0
    %406 = vmatpush1.bf16.xpose.msra.mxu0 0
    %407 = vmatprep.subr.bf16.mxu0 0
    %408 = vmatpush1.bf16.xpose.msra.mxu0 0
    %409 = vmatprep.subr.bf16.mxu0 0
    %410 = vmatpush1.bf16.xpose.msra.mxu0 0
    %411 = vmatprep.subr.bf16.mxu0 0
    %412 = vmatpush1.bf16.xpose.msra.mxu0 0
    %413 = vmatprep.subr.bf16.mxu0 0
    %414 = vmatpush1.bf16.xpose.msra.mxu0 0
    %415 = vmatprep.subr.bf16.mxu0 0
    %416 = vmatpush1.bf16.xpose.msra.mxu0 0
    %417 = vmatprep.subr.bf16.mxu0 0
    %418 = vmatpush1.bf16.xpose.msra.mxu0 0
    %419 = vmatprep.subr.bf16.mxu0 0
    %420 = vmatpush1.bf16.xpose.msra.mxu0 0
    %421 = vmatprep.subr.bf16.mxu0 0
    %422 = vmatpush1.bf16.xpose.msra.mxu0 0
    %423 = vmatprep.subr.bf16.mxu0 0
    %424 = vmatpush1.bf16.xpose.msra.mxu0 0
    %425 = vmatprep.subr.bf16.mxu0 0
    %426 = vmatpush1.bf16.xpose.msra.mxu0 0
    %427 = vmatprep.subr.bf16.mxu0 0
    %428 = vmatpush1.bf16.xpose.msra.mxu0 0
    %429 = vmatprep.subr.bf16.mxu0 0
    %430 = vmatpush1.bf16.xpose.msra.mxu0 0
    %431 = vmatprep.subr.bf16.mxu0 0
    %432 = vmatpush1.bf16.xpose.msra.mxu0 0
    %433 = vmatprep.subr.bf16.mxu0 0
    %434 = vmatpush1.bf16.xpose.msra.mxu0 0
    %435 = vmatprep.mubr.bf16.mxu0 0
    %436 = vmatmul.mubr.bf16.gmra.mrb[0].mxu0 %v398
    %v437 = vpop.f32.mrb[0].mxu0
    %v438 = vadd.f32 0.0, %v437
    %v439 = vpop.f32.mrb[0].mxu0
    %v440 = vpop.f32.mrb[0].mxu0
    %v441 = vpop.f32.mrb[0].mxu0
    %442 = vdwg.mxu0
    %443 = vrot.lane.b32.xlu0 %v158, 120
    %v444 = vpop.permute.xlu0 %443
    %445 = vrot.lane.b32.xlu0 %v158, 88
    %v446 = vpop.permute.xlu0 %445
    %v448 = vsel %vm162, %v444, 0
    %v451 = vsel %vm162, %v446, 0
    %453 = vmatprep.subr.bf16.mxu0 0
    %454 = vmatpush1.bf16.xpose.msra.mxu0 %v451
    %455 = vmatprep.subr.bf16.mxu0 0
    %456 = vmatpush1.bf16.xpose.msra.mxu0 0
    %457 = vmatprep.subr.bf16.mxu0 0
    %458 = vmatpush1.bf16.xpose.msra.mxu0 0
    %459 = vmatprep.subr.bf16.mxu0 0
    %460 = vmatpush1.bf16.xpose.msra.mxu0 0
    %461 = vmatprep.subr.bf16.mxu0 0
    %462 = vmatpush1.bf16.xpose.msra.mxu0 0
    %463 = vmatprep.subr.bf16.mxu0 0
    %464 = vmatpush1.bf16.xpose.msra.mxu0 0
    %465 = vmatprep.subr.bf16.mxu0 0
    %466 = vmatpush1.bf16.xpose.msra.mxu0 0
    %467 = vmatprep.subr.bf16.mxu0 0
    %468 = vmatpush1.bf16.xpose.msra.mxu0 0
    %469 = vmatprep.subr.bf16.mxu0 0
    %470 = vmatpush1.bf16.xpose.msra.mxu0 0
    %471 = vmatprep.subr.bf16.mxu0 0
    %472 = vmatpush1.bf16.xpose.msra.mxu0 0
    %473 = vmatprep.subr.bf16.mxu0 0
    %474 = vmatpush1.bf16.xpose.msra.mxu0 0
    %475 = vmatprep.subr.bf16.mxu0 0
    %476 = vmatpush1.bf16.xpose.msra.mxu0 0
    %477 = vmatprep.subr.bf16.mxu0 0
    %478 = vmatpush1.bf16.xpose.msra.mxu0 0
    %479 = vmatprep.subr.bf16.mxu0 0
    %480 = vmatpush1.bf16.xpose.msra.mxu0 0
    %481 = vmatprep.subr.bf16.mxu0 0
    %482 = vmatpush1.bf16.xpose.msra.mxu0 0
    %483 = vmatprep.subr.bf16.mxu0 0
    %484 = vmatpush1.bf16.xpose.msra.mxu0 0
    %485 = vmatprep.mubr.bf16.mxu0 0
    %486 = vmatmul.mubr.bf16.gmra.mrb[0].mxu0 %v448
    %v487 = vpop.f32.mrb[0].mxu0
    %v488 = vadd.f32 0.0, %v487
    %v489 = vpop.f32.mrb[0].mxu0
    %v490 = vpop.f32.mrb[0].mxu0
    %v491 = vpop.f32.mrb[0].mxu0
    %492 = vdwg.mxu0
    %v493 = vmul.f32 %v438, 0.35355338
    %v494 = vmul.f32 %v488, 0.35355338
    %v495 = vadd.f32 %v493, %v263
    %v496 = vadd.f32 %v494, %v267
    %v497 = vsel %vm162, %v495, -inf
    %498 = vmax.xlane.f32.xlu0 %v497
    %v499 = vpop.xlane.xlu0 %498
    %v500 = vsel %vm162, %v496, -inf
    %501 = vmax.xlane.f32.xlu0 %v500
    %v502 = vpop.xlane.xlu0 %501
    %v503 = vsub.f32 %v495, %v499
    %v504 = vsub.f32 %v496, %v502
    %v505 = vmul.f32 %v503, 1.442695
    %v506 = vpow.pop %v505
    %v507 = vmul.f32 %v504, 1.442695
    %v508 = vpow.pop %v507
    %v509 = vsel %vm162, %v506, 0.0
    %510 = vadd.xlane.f32.xlu0 %v509
    %v511 = vpop.xlane.xlu0 %510
    %v512 = vsel %vm162, %v508, 0.0
    %513 = vadd.xlane.f32.xlu0 %v512
    %v514 = vpop.xlane.xlu0 %513
    %v515 = vrcp.pop %v511
    %v516 = vrcp.pop %v514
    %v517 = vmul.f32 %v506, %v515
    %v518 = vmul.f32 %v508, %v516
    %v519 = vpack.c.bf16 %v517, %v517
    %v520 = vpack.c.bf16 %v518, %v518
    %521 = vrot.lane.b32.xlu0 %v157, 56
    %v522 = vpop.permute.xlu0 %521
    %v524 = vsel %vm162, %v519, 0
    %v527 = vsel %vm301, %v522, 0
    %529 = vmatprep.subr.bf16.mxu0 0
    %530 = vmatpush1.bf16.msra.mxu0 %v527
    %531 = vmatprep.subr.bf16.mxu0 0
    %532 = vmatpush1.bf16.msra.mxu0 0
    %533 = vmatprep.subr.bf16.mxu0 0
    %534 = vmatpush1.bf16.msra.mxu0 0
    %535 = vmatprep.subr.bf16.mxu0 0
    %536 = vmatpush1.bf16.msra.mxu0 0
    %537 = vmatprep.subr.bf16.mxu0 0
    %538 = vmatpush1.bf16.msra.mxu0 0
    %539 = vmatprep.subr.bf16.mxu0 0
    %540 = vmatpush1.bf16.msra.mxu0 0
    %541 = vmatprep.subr.bf16.mxu0 0
    %542 = vmatpush1.bf16.msra.mxu0 0
    %543 = vmatprep.subr.bf16.mxu0 0
    %544 = vmatpush1.bf16.msra.mxu0 0
    %545 = vmatprep.subr.bf16.mxu0 0
    %546 = vmatpush1.bf16.msra.mxu0 0
    %547 = vmatprep.subr.bf16.mxu0 0
    %548 = vmatpush1.bf16.msra.mxu0 0
    %549 = vmatprep.subr.bf16.mxu0 0
    %550 = vmatpush1.bf16.msra.mxu0 0
    %551 = vmatprep.subr.bf16.mxu0 0
    %552 = vmatpush1.bf16.msra.mxu0 0
    %553 = vmatprep.subr.bf16.mxu0 0
    %554 = vmatpush1.bf16.msra.mxu0 0
    %555 = vmatprep.subr.bf16.mxu0 0
    %556 = vmatpush1.bf16.msra.mxu0 0
    %557 = vmatprep.subr.bf16.mxu0 0
    %558 = vmatpush1.bf16.msra.mxu0 0
    %559 = vmatprep.subr.bf16.mxu0 0
    %560 = vmatpush1.bf16.msra.mxu0 0
    %561 = vmatprep.mubr.bf16.mxu0 0
    %562 = vmatmul.mubr.bf16.gmra.mrb[0].mxu0 %v524
    %v563 = vpop.f32.mrb[0].mxu0
    %v564 = vadd.f32 0.0, %v563
    %v565 = vpop.f32.mrb[0].mxu0
    %v566 = vpop.f32.mrb[0].mxu0
    %v567 = vpop.f32.mrb[0].mxu0
    %568 = vdwg.mxu0
    %569 = vrot.lane.b32.xlu0 %v158, 56
    %v570 = vpop.permute.xlu0 %569
    %v572 = vsel %vm162, %v520, 0
    %v575 = vsel %vm301, %v570, 0
    %577 = vmatprep.subr.bf16.mxu0 0
    %578 = vmatpush1.bf16.msra.mxu0 %v575
    %579 = vmatprep.subr.bf16.mxu0 0
    %580 = vmatpush1.bf16.msra.mxu0 0
    %581 = vmatprep.subr.bf16.mxu0 0
    %582 = vmatpush1.bf16.msra.mxu0 0
    %583 = vmatprep.subr.bf16.mxu0 0
    %584 = vmatpush1.bf16.msra.mxu0 0
    %585 = vmatprep.subr.bf16.mxu0 0
    %586 = vmatpush1.bf16.msra.mxu0 0
    %587 = vmatprep.subr.bf16.mxu0 0
    %588 = vmatpush1.bf16.msra.mxu0 0
    %589 = vmatprep.subr.bf16.mxu0 0
    %590 = vmatpush1.bf16.msra.mxu0 0
    %591 = vmatprep.subr.bf16.mxu0 0
    %592 = vmatpush1.bf16.msra.mxu0 0
    %593 = vmatprep.subr.bf16.mxu0 0
    %594 = vmatpush1.bf16.msra.mxu0 0
    %595 = vmatprep.subr.bf16.mxu0 0
    %596 = vmatpush1.bf16.msra.mxu0 0
    %597 = vmatprep.subr.bf16.mxu0 0
    %598 = vmatpush1.bf16.msra.mxu0 0
    %599 = vmatprep.subr.bf16.mxu0 0
    %600 = vmatpush1.bf16.msra.mxu0 0
    %601 = vmatprep.subr.bf16.mxu0 0
    %602 = vmatpush1.bf16.msra.mxu0 0
    %603 = vmatprep.subr.bf16.mxu0 0
    %604 = vmatpush1.bf16.msra.mxu0 0
    %605 = vmatprep.subr.bf16.mxu0 0
    %606 = vmatpush1.bf16.msra.mxu0 0
    %607 = vmatprep.subr.bf16.mxu0 0
    %608 = vmatpush1.bf16.msra.mxu0 0
    %609 = vmatprep.mubr.bf16.mxu0 0
    %610 = vmatmul.mubr.bf16.gmra.mrb[0].mxu0 %v572
    %v611 = vpop.f32.mrb[0].mxu0
    %v612 = vadd.f32 0.0, %v611
    %v613 = vpop.f32.mrb[0].mxu0
    %v614 = vpop.f32.mrb[0].mxu0
    %v615 = vpop.f32.mrb[0].mxu0
    %616 = vdwg.mxu0
    %617 = vrot.lane.b32.xlu0 %v157, 112
    %v618 = vpop.permute.xlu0 %617
    %619 = vrot.lane.b32.xlu0 %v157, 80
    %v620 = vpop.permute.xlu0 %619
    %v622 = vsel %vm162, %v618, 0
    %v625 = vsel %vm162, %v620, 0
    %627 = vmatprep.subr.bf16.mxu0 0
    %628 = vmatpush1.bf16.xpose.msra.mxu0 %v625
    %629 = vmatprep.subr.bf16.mxu0 0
    %630 = vmatpush1.bf16.xpose.msra.mxu0 0
    %631 = vmatprep.subr.bf16.mxu0 0
    %632 = vmatpush1.bf16.xpose.msra.mxu0 0
    %633 = vmatprep.subr.bf16.mxu0 0
    %634 = vmatpush1.bf16.xpose.msra.mxu0 0
    %635 = vmatprep.subr.bf16.mxu0 0
    %636 = vmatpush1.bf16.xpose.msra.mxu0 0
    %637 = vmatprep.subr.bf16.mxu0 0
    %638 = vmatpush1.bf16.xpose.msra.mxu0 0
    %639 = vmatprep.subr.bf16.mxu0 0
    %640 = vmatpush1.bf16.xpose.msra.mxu0 0
    %641 = vmatprep.subr.bf16.mxu0 0
    %642 = vmatpush1.bf16.xpose.msra.mxu0 0
    %643 = vmatprep.subr.bf16.mxu0 0
    %644 = vmatpush1.bf16.xpose.msra.mxu0 0
    %645 = vmatprep.subr.bf16.mxu0 0
    %646 = vmatpush1.bf16.xpose.msra.mxu0 0
    %647 = vmatprep.subr.bf16.mxu0 0
    %648 = vmatpush1.bf16.xpose.msra.mxu0 0
    %649 = vmatprep.subr.bf16.mxu0 0
    %650 = vmatpush1.bf16.xpose.msra.mxu0 0
    %651 = vmatprep.subr.bf16.mxu0 0
    %652 = vmatpush1.bf16.xpose.msra.mxu0 0
    %653 = vmatprep.subr.bf16.mxu0 0
    %654 = vmatpush1.bf16.xpose.msra.mxu0 0
    %655 = vmatprep.subr.bf16.mxu0 0
    %656 = vmatpush1.bf16.xpose.msra.mxu0 0
    %657 = vmatprep.subr.bf16.mxu0 0
    %658 = vmatpush1.bf16.xpose.msra.mxu0 0
    %659 = vmatprep.mubr.bf16.mxu0 0
    %660 = vmatmul.mubr.bf16.gmra.mrb[0].mxu0 %v622
    %v661 = vpop.f32.mrb[0].mxu0
    %v662 = vadd.f32 0.0, %v661
    %v663 = vpop.f32.mrb[0].mxu0
    %v664 = vpop.f32.mrb[0].mxu0
    %v665 = vpop.f32.mrb[0].mxu0
    %666 = vdwg.mxu0
    %667 = vrot.lane.b32.xlu0 %v158, 112
    %v668 = vpop.permute.xlu0 %667
    %669 = vrot.lane.b32.xlu0 %v158, 80
    %v670 = vpop.permute.xlu0 %669
    %v672 = vsel %vm162, %v668, 0
    %v675 = vsel %vm162, %v670, 0
    %677 = vmatprep.subr.bf16.mxu0 0
    %678 = vmatpush1.bf16.xpose.msra.mxu0 %v675
    %679 = vmatprep.subr.bf16.mxu0 0
    %680 = vmatpush1.bf16.xpose.msra.mxu0 0
    %681 = vmatprep.subr.bf16.mxu0 0
    %682 = vmatpush1.bf16.xpose.msra.mxu0 0
    %683 = vmatprep.subr.bf16.mxu0 0
    %684 = vmatpush1.bf16.xpose.msra.mxu0 0
    %685 = vmatprep.subr.bf16.mxu0 0
    %686 = vmatpush1.bf16.xpose.msra.mxu0 0
    %687 = vmatprep.subr.bf16.mxu0 0
    %688 = vmatpush1.bf16.xpose.msra.mxu0 0
    %689 = vmatprep.subr.bf16.mxu0 0
    %690 = vmatpush1.bf16.xpose.msra.mxu0 0
    %691 = vmatprep.subr.bf16.mxu0 0
    %692 = vmatpush1.bf16.xpose.msra.mxu0 0
    %693 = vmatprep.subr.bf16.mxu0 0
    %694 = vmatpush1.bf16.xpose.msra.mxu0 0
    %695 = vmatprep.subr.bf16.mxu0 0
    %696 = vmatpush1.bf16.xpose.msra.mxu0 0
    %697 = vmatprep.subr.bf16.mxu0 0
    %698 = vmatpush1.bf16.xpose.msra.mxu0 0
    %699 = vmatprep.subr.bf16.mxu0 0
    %700 = vmatpush1.bf16.xpose.msra.mxu0 0
    %701 = vmatprep.subr.bf16.mxu0 0
    %702 = vmatpush1.bf16.xpose.msra.mxu0 0
    %703 = vmatprep.subr.bf16.mxu0 0
    %704 = vmatpush1.bf16.xpose.msra.mxu0 0
    %705 = vmatprep.subr.bf16.mxu0 0
    %706 = vmatpush1.bf16.xpose.msra.mxu0 0
    %707 = vmatprep.subr.bf16.mxu0 0
    %708 = vmatpush1.bf16.xpose.msra.mxu0 0
    %709 = vmatprep.mubr.bf16.mxu0 0
    %710 = vmatmul.mubr.bf16.gmra.mrb[0].mxu0 %v672
    %v711 = vpop.f32.mrb[0].mxu0
    %v712 = vadd.f32 0.0, %v711
    %v713 = vpop.f32.mrb[0].mxu0
    %v714 = vpop.f32.mrb[0].mxu0
    %v715 = vpop.f32.mrb[0].mxu0
    %716 = vdwg.mxu0
    %v717 = vmul.f32 %v662, 0.35355338
    %v718 = vmul.f32 %v712, 0.35355338
    %v719 = vadd.f32 %v717, %v263
    %v720 = vadd.f32 %v718, %v267
    %v721 = vsel %vm162, %v719, -inf
    %722 = vmax.xlane.f32.xlu0 %v721
    %v723 = vpop.xlane.xlu0 %722
    %v724 = vsel %vm162, %v720, -inf
    %725 = vmax.xlane.f32.xlu0 %v724
    %v726 = vpop.xlane.xlu0 %725
    %v727 = vsub.f32 %v719, %v723
    %v728 = vsub.f32 %v720, %v726
    %v729 = vmul.f32 %v727, 1.442695
    %v730 = vpow.pop %v729
    %v731 = vmul.f32 %v728, 1.442695
    %v732 = vpow.pop %v731
    %v733 = vsel %vm162, %v730, 0.0
    %734 = vadd.xlane.f32.xlu0 %v733
    %v735 = vpop.xlane.xlu0 %734
    %v736 = vsel %vm162, %v732, 0.0
    %737 = vadd.xlane.f32.xlu0 %v736
    %v738 = vpop.xlane.xlu0 %737
    %v739 = vrcp.pop %v735
    %v740 = vrcp.pop %v738
    %v741 = vmul.f32 %v730, %v739
    %v742 = vmul.f32 %v732, %v740
    %v743 = vpack.c.bf16 %v741, %v741
    %v744 = vpack.c.bf16 %v742, %v742
    %745 = vrot.lane.b32.xlu0 %v157, 48
    %v746 = vpop.permute.xlu0 %745
    %v748 = vsel %vm162, %v743, 0
    %v751 = vsel %vm301, %v746, 0
    %753 = vmatprep.subr.bf16.mxu0 0
    %754 = vmatpush1.bf16.msra.mxu0 %v751
    %755 = vmatprep.subr.bf16.mxu0 0
    %756 = vmatpush1.bf16.msra.mxu0 0
    %757 = vmatprep.subr.bf16.mxu0 0
    %758 = vmatpush1.bf16.msra.mxu0 0
    %759 = vmatprep.subr.bf16.mxu0 0
    %760 = vmatpush1.bf16.msra.mxu0 0
    %761 = vmatprep.subr.bf16.mxu0 0
    %762 = vmatpush1.bf16.msra.mxu0 0
    %763 = vmatprep.subr.bf16.mxu0 0
    %764 = vmatpush1.bf16.msra.mxu0 0
    %765 = vmatprep.subr.bf16.mxu0 0
    %766 = vmatpush1.bf16.msra.mxu0 0
    %767 = vmatprep.subr.bf16.mxu0 0
    %768 = vmatpush1.bf16.msra.mxu0 0
    %769 = vmatprep.subr.bf16.mxu0 0
    %770 = vmatpush1.bf16.msra.mxu0 0
    %771 = vmatprep.subr.bf16.mxu0 0
    %772 = vmatpush1.bf16.msra.mxu0 0
    %773 = vmatprep.subr.bf16.mxu0 0
    %774 = vmatpush1.bf16.msra.mxu0 0
    %775 = vmatprep.subr.bf16.mxu0 0
    %776 = vmatpush1.bf16.msra.mxu0 0
    %777 = vmatprep.subr.bf16.mxu0 0
    %778 = vmatpush1.bf16.msra.mxu0 0
    %779 = vmatprep.subr.bf16.mxu0 0
    %780 = vmatpush1.bf16.msra.mxu0 0
    %781 = vmatprep.subr.bf16.mxu0 0
    %782 = vmatpush1.bf16.msra.mxu0 0
    %783 = vmatprep.subr.bf16.mxu0 0
    %784 = vmatpush1.bf16.msra.mxu0 0
    %785 = vmatprep.mubr.bf16.mxu0 0
    %786 = vmatmul.mubr.bf16.gmra.mrb[0].mxu0 %v748
    %v787 = vpop.f32.mrb[0].mxu0
    %v788 = vadd.f32 0.0, %v787
    %v789 = vpop.f32.mrb[0].mxu0
    %v790 = vpop.f32.mrb[0].mxu0
    %v791 = vpop.f32.mrb[0].mxu0
    %792 = vdwg.mxu0
    %793 = vrot.lane.b32.xlu0 %v158, 48
    %v794 = vpop.permute.xlu0 %793
    %v796 = vsel %vm162, %v744, 0
    %v799 = vsel %vm301, %v794, 0
    %801 = vmatprep.subr.bf16.mxu0 0
    %802 = vmatpush1.bf16.msra.mxu0 %v799
    %803 = vmatprep.subr.bf16.mxu0 0
    %804 = vmatpush1.bf16.msra.mxu0 0
    %805 = vmatprep.subr.bf16.mxu0 0
    %806 = vmatpush1.bf16.msra.mxu0 0
    %807 = vmatprep.subr.bf16.mxu0 0
    %808 = vmatpush1.bf16.msra.mxu0 0
    %809 = vmatprep.subr.bf16.mxu0 0
    %810 = vmatpush1.bf16.msra.mxu0 0
    %811 = vmatprep.subr.bf16.mxu0 0
    %812 = vmatpush1.bf16.msra.mxu0 0
    %813 = vmatprep.subr.bf16.mxu0 0
    %814 = vmatpush1.bf16.msra.mxu0 0
    %815 = vmatprep.subr.bf16.mxu0 0
    %816 = vmatpush1.bf16.msra.mxu0 0
    %817 = vmatprep.subr.bf16.mxu0 0
    %818 = vmatpush1.bf16.msra.mxu0 0
    %819 = vmatprep.subr.bf16.mxu0 0
    %820 = vmatpush1.bf16.msra.mxu0 0
    %821 = vmatprep.subr.bf16.mxu0 0
    %822 = vmatpush1.bf16.msra.mxu0 0
    %823 = vmatprep.subr.bf16.mxu0 0
    %824 = vmatpush1.bf16.msra.mxu0 0
    %825 = vmatprep.subr.bf16.mxu0 0
    %826 = vmatpush1.bf16.msra.mxu0 0
    %827 = vmatprep.subr.bf16.mxu0 0
    %828 = vmatpush1.bf16.msra.mxu0 0
    %829 = vmatprep.subr.bf16.mxu0 0
    %830 = vmatpush1.bf16.msra.mxu0 0
    %831 = vmatprep.subr.bf16.mxu0 0
    %832 = vmatpush1.bf16.msra.mxu0 0
    %833 = vmatprep.mubr.bf16.mxu0 0
    %834 = vmatmul.mubr.bf16.gmra.mrb[0].mxu0 %v796
    %v835 = vpop.f32.mrb[0].mxu0
    %v836 = vadd.f32 0.0, %v835
    %v837 = vpop.f32.mrb[0].mxu0
    %v838 = vpop.f32.mrb[0].mxu0
    %v839 = vpop.f32.mrb[0].mxu0
    %840 = vdwg.mxu0
    %841 = vrot.lane.b32.xlu0 %v157, 104
    %v842 = vpop.permute.xlu0 %841
    %843 = vrot.lane.b32.xlu0 %v157, 72
    %v844 = vpop.permute.xlu0 %843
    %v846 = vsel %vm162, %v842, 0
    %v849 = vsel %vm162, %v844, 0
    %851 = vmatprep.subr.bf16.mxu0 0
    %852 = vmatpush1.bf16.xpose.msra.mxu0 %v849
    %853 = vmatprep.subr.bf16.mxu0 0
    %854 = vmatpush1.bf16.xpose.msra.mxu0 0
    %855 = vmatprep.subr.bf16.mxu0 0
    %856 = vmatpush1.bf16.xpose.msra.mxu0 0
    %857 = vmatprep.subr.bf16.mxu0 0
    %858 = vmatpush1.bf16.xpose.msra.mxu0 0
    %859 = vmatprep.subr.bf16.mxu0 0
    %860 = vmatpush1.bf16.xpose.msra.mxu0 0
    %861 = vmatprep.subr.bf16.mxu0 0
    %862 = vmatpush1.bf16.xpose.msra.mxu0 0
    %863 = vmatprep.subr.bf16.mxu0 0
    %864 = vmatpush1.bf16.xpose.msra.mxu0 0
    %865 = vmatprep.subr.bf16.mxu0 0
    %866 = vmatpush1.bf16.xpose.msra.mxu0 0
    %867 = vmatprep.subr.bf16.mxu0 0
    %868 = vmatpush1.bf16.xpose.msra.mxu0 0
    %869 = vmatprep.subr.bf16.mxu0 0
    %870 = vmatpush1.bf16.xpose.msra.mxu0 0
    %871 = vmatprep.subr.bf16.mxu0 0
    %872 = vmatpush1.bf16.xpose.msra.mxu0 0
    %873 = vmatprep.subr.bf16.mxu0 0
    %874 = vmatpush1.bf16.xpose.msra.mxu0 0
    %875 = vmatprep.subr.bf16.mxu0 0
    %876 = vmatpush1.bf16.xpose.msra.mxu0 0
    %877 = vmatprep.subr.bf16.mxu0 0
    %878 = vmatpush1.bf16.xpose.msra.mxu0 0
    %879 = vmatprep.subr.bf16.mxu0 0
    %880 = vmatpush1.bf16.xpose.msra.mxu0 0
    %881 = vmatprep.subr.bf16.mxu0 0
    %882 = vmatpush1.bf16.xpose.msra.mxu0 0
    %883 = vmatprep.mubr.bf16.mxu0 0
    %884 = vmatmul.mubr.bf16.gmra.mrb[0].mxu0 %v846
    %v885 = vpop.f32.mrb[0].mxu0
    %v886 = vadd.f32 0.0, %v885
    %v887 = vpop.f32.mrb[0].mxu0
    %v888 = vpop.f32.mrb[0].mxu0
    %v889 = vpop.f32.mrb[0].mxu0
    %890 = vdwg.mxu0
    %891 = vrot.lane.b32.xlu0 %v158, 104
    %v892 = vpop.permute.xlu0 %891
    %893 = vrot.lane.b32.xlu0 %v158, 72
    %v894 = vpop.permute.xlu0 %893
    %v896 = vsel %vm162, %v892, 0
    %v899 = vsel %vm162, %v894, 0
    %901 = vmatprep.subr.bf16.mxu0 0
    %902 = vmatpush1.bf16.xpose.msra.mxu0 %v899
    %903 = vmatprep.subr.bf16.mxu0 0
    %904 = vmatpush1.bf16.xpose.msra.mxu0 0
    %905 = vmatprep.subr.bf16.mxu0 0
    %906 = vmatpush1.bf16.xpose.msra.mxu0 0
    %907 = vmatprep.subr.bf16.mxu0 0
    %908 = vmatpush1.bf16.xpose.msra.mxu0 0
    %909 = vmatprep.subr.bf16.mxu0 0
    %910 = vmatpush1.bf16.xpose.msra.mxu0 0
    %911 = vmatprep.subr.bf16.mxu0 0
    %912 = vmatpush1.bf16.xpose.msra.mxu0 0
    %913 = vmatprep.subr.bf16.mxu0 0
    %914 = vmatpush1.bf16.xpose.msra.mxu0 0
    %915 = vmatprep.subr.bf16.mxu0 0
    %916 = vmatpush1.bf16.xpose.msra.mxu0 0
    %917 = vmatprep.subr.bf16.mxu0 0
    %918 = vmatpush1.bf16.xpose.msra.mxu0 0
    %919 = vmatprep.subr.bf16.mxu0 0
    %920 = vmatpush1.bf16.xpose.msra.mxu0 0
    %921 = vmatprep.subr.bf16.mxu0 0
    %922 = vmatpush1.bf16.xpose.msra.mxu0 0
    %923 = vmatprep.subr.bf16.mxu0 0
    %924 = vmatpush1.bf16.xpose.msra.mxu0 0
    %925 = vmatprep.subr.bf16.mxu0 0
    %926 = vmatpush1.bf16.xpose.msra.mxu0 0
    %927 = vmatprep.subr.bf16.mxu0 0
    %928 = vmatpush1.bf16.xpose.msra.mxu0 0
    %929 = vmatprep.subr.bf16.mxu0 0
    %930 = vmatpush1.bf16.xpose.msra.mxu0 0
    %931 = vmatprep.subr.bf16.mxu0 0
    %932 = vmatpush1.bf16.xpose.msra.mxu0 0
    %933 = vmatprep.mubr.bf16.mxu0 0
    %934 = vmatmul.mubr.bf16.gmra.mrb[0].mxu0 %v896
    %v935 = vpop.f32.mrb[0].mxu0
    %v936 = vadd.f32 0.0, %v935
    %v937 = vpop.f32.mrb[0].mxu0
    %v938 = vpop.f32.mrb[0].mxu0
    %v939 = vpop.f32.mrb[0].mxu0
    %940 = vdwg.mxu0
    %v941 = vmul.f32 %v886, 0.35355338
    %v942 = vmul.f32 %v936, 0.35355338
    %v943 = vadd.f32 %v941, %v263
    %v944 = vadd.f32 %v942, %v267
    %v945 = vsel %vm162, %v943, -inf
    %946 = vmax.xlane.f32.xlu0 %v945
    %v947 = vpop.xlane.xlu0 %946
    %v948 = vsel %vm162, %v944, -inf
    %949 = vmax.xlane.f32.xlu0 %v948
    %v950 = vpop.xlane.xlu0 %949
    %v951 = vsub.f32 %v943, %v947
    %v952 = vsub.f32 %v944, %v950
    %v953 = vmul.f32 %v951, 1.442695
    %v954 = vpow.pop %v953
    %v955 = vmul.f32 %v952, 1.442695
    %v956 = vpow.pop %v955
    %v957 = vsel %vm162, %v954, 0.0
    %958 = vadd.xlane.f32.xlu0 %v957
    %v959 = vpop.xlane.xlu0 %958
    %v960 = vsel %vm162, %v956, 0.0
    %961 = vadd.xlane.f32.xlu0 %v960
    %v962 = vpop.xlane.xlu0 %961
    %v963 = vrcp.pop %v959
    %v964 = vrcp.pop %v962
    %v965 = vmul.f32 %v954, %v963
    %v966 = vmul.f32 %v956, %v964
    %v967 = vpack.c.bf16 %v965, %v965
    %v968 = vpack.c.bf16 %v966, %v966
    %969 = vrot.lane.b32.xlu0 %v157, 40
    %v970 = vpop.permute.xlu0 %969
    %v972 = vsel %vm162, %v967, 0
    %v975 = vsel %vm301, %v970, 0
    %977 = vmatprep.subr.bf16.mxu0 0
    %978 = vmatpush1.bf16.msra.mxu0 %v975
    %979 = vmatprep.subr.bf16.mxu0 0
    %980 = vmatpush1.bf16.msra.mxu0 0
    %981 = vmatprep.subr.bf16.mxu0 0
    %982 = vmatpush1.bf16.msra.mxu0 0
    %983 = vmatprep.subr.bf16.mxu0 0
    %984 = vmatpush1.bf16.msra.mxu0 0
    %985 = vmatprep.subr.bf16.mxu0 0
    %986 = vmatpush1.bf16.msra.mxu0 0
    %987 = vmatprep.subr.bf16.mxu0 0
    %988 = vmatpush1.bf16.msra.mxu0 0
    %989 = vmatprep.subr.bf16.mxu0 0
    %990 = vmatpush1.bf16.msra.mxu0 0
    %991 = vmatprep.subr.bf16.mxu0 0
    %992 = vmatpush1.bf16.msra.mxu0 0
    %993 = vmatprep.subr.bf16.mxu0 0
    %994 = vmatpush1.bf16.msra.mxu0 0
    %995 = vmatprep.subr.bf16.mxu0 0
    %996 = vmatpush1.bf16.msra.mxu0 0
    %997 = vmatprep.subr.bf16.mxu0 0
    %998 = vmatpush1.bf16.msra.mxu0 0
    %999 = vmatprep.subr.bf16.mxu0 0
    %1000 = vmatpush1.bf16.msra.mxu0 0
    %1001 = vmatprep.subr.bf16.mxu0 0
    %1002 = vmatpush1.bf16.msra.mxu0 0
    %1003 = vmatprep.subr.bf16.mxu0 0
    %1004 = vmatpush1.bf16.msra.mxu0 0
    %1005 = vmatprep.subr.bf16.mxu0 0
    %1006 = vmatpush1.bf16.msra.mxu0 0
    %1007 = vmatprep.subr.bf16.mxu0 0
    %1008 = vmatpush1.bf16.msra.mxu0 0
    %1009 = vmatprep.mubr.bf16.mxu0 0
    %1010 = vmatmul.mubr.bf16.gmra.mrb[0].mxu0 %v972
    %v1011 = vpop.f32.mrb[0].mxu0
    %v1012 = vadd.f32 0.0, %v1011
    %v1013 = vpop.f32.mrb[0].mxu0
    %v1014 = vpop.f32.mrb[0].mxu0
    %v1015 = vpop.f32.mrb[0].mxu0
    %1016 = vdwg.mxu0
    %1017 = vrot.lane.b32.xlu0 %v158, 40
    %v1018 = vpop.permute.xlu0 %1017
    %v1020 = vsel %vm162, %v968, 0
    %v1023 = vsel %vm301, %v1018, 0
    %1025 = vmatprep.subr.bf16.mxu0 0
    %1026 = vmatpush1.bf16.msra.mxu0 %v1023
    %1027 = vmatprep.subr.bf16.mxu0 0
    %1028 = vmatpush1.bf16.msra.mxu0 0
    %1029 = vmatprep.subr.bf16.mxu0 0
    %1030 = vmatpush1.bf16.msra.mxu0 0
    %1031 = vmatprep.subr.bf16.mxu0 0
    %1032 = vmatpush1.bf16.msra.mxu0 0
    %1033 = vmatprep.subr.bf16.mxu0 0
    %1034 = vmatpush1.bf16.msra.mxu0 0
    %1035 = vmatprep.subr.bf16.mxu0 0
    %1036 = vmatpush1.bf16.msra.mxu0 0
    %1037 = vmatprep.subr.bf16.mxu0 0
    %1038 = vmatpush1.bf16.msra.mxu0 0
    %1039 = vmatprep.subr.bf16.mxu0 0
    %1040 = vmatpush1.bf16.msra.mxu0 0
    %1041 = vmatprep.subr.bf16.mxu0 0
    %1042 = vmatpush1.bf16.msra.mxu0 0
    %1043 = vmatprep.subr.bf16.mxu0 0
    %1044 = vmatpush1.bf16.msra.mxu0 0
    %1045 = vmatprep.subr.bf16.mxu0 0
    %1046 = vmatpush1.bf16.msra.mxu0 0
    %1047 = vmatprep.subr.bf16.mxu0 0
    %1048 = vmatpush1.bf16.msra.mxu0 0
    %1049 = vmatprep.subr.bf16.mxu0 0
    %1050 = vmatpush1.bf16.msra.mxu0 0
    %1051 = vmatprep.subr.bf16.mxu0 0
    %1052 = vmatpush1.bf16.msra.mxu0 0
    %1053 = vmatprep.subr.bf16.mxu0 0
    %1054 = vmatpush1.bf16.msra.mxu0 0
    %1055 = vmatprep.subr.bf16.mxu0 0
    %1056 = vmatpush1.bf16.msra.mxu0 0
    %1057 = vmatprep.mubr.bf16.mxu0 0
    %1058 = vmatmul.mubr.bf16.gmra.mrb[0].mxu0 %v1020
    %v1059 = vpop.f32.mrb[0].mxu0
    %v1060 = vadd.f32 0.0, %v1059
    %v1061 = vpop.f32.mrb[0].mxu0
    %v1062 = vpop.f32.mrb[0].mxu0
    %v1063 = vpop.f32.mrb[0].mxu0
    %1064 = vdwg.mxu0
    %1067 = vrot.lane.b32.xlu0 %v564, 8
    %v1068 = vpop.permute.xlu0 %1067
    %1069 = vrot.lane.b32.xlu0 %v612, 8
    %v1070 = vpop.permute.xlu0 %1069
    %1075 = vrot.lane.b32.xlu0 %v788, 16
    %v1076 = vpop.permute.xlu0 %1075
    %1077 = vrot.lane.b32.xlu0 %v836, 16
    %v1078 = vpop.permute.xlu0 %1077
    %1083 = vrot.lane.b32.xlu0 %v1012, 24
    %v1084 = vpop.permute.xlu0 %1083
    %1085 = vrot.lane.b32.xlu0 %v1060, 24
    %v1086 = vpop.permute.xlu0 %1085
    %v1089 = vsel %vm162, %v340, %v1068
    %v1090 = vsel %vm162, %v388, %v1070
    %vm1091 = vcmask 130048
    %v1092 = vsel %vm1091, %v1089, %v1076
    %v1093 = vsel %vm1091, %v1090, %v1078
    %vm1094 = vcmask 195584
    %v1095 = vsel %vm1094, %v1092, %v1084
    %v1096 = vsel %vm1094, %v1093, %v1086
    %v1097 = vpack.c.bf16 %v1096, %v1095
    %v1098 = vld [vmem:[%s4] sm:$0xf]
    %v1099 = vld [vmem:[%s4 + $0x4] sm:$0xf]
    %v1100 = vld [vmem:[%s4 + $0x8] sm:$0xf]
    %v1101 = vld [vmem:[%s4 + $0xc] sm:$0xf]
    %v1102 = vld [vmem:[%s5] sm:$0x1]
    %v1104 = vlaneseq
    %v1105 = vshrl.u32 %v1104, 7
    %v1106 = vsub.s32 0, %v1105
    %v1107 = vrot.slane %v1102, %v1106
    %v1113 = vunpack.c.l.b16 %v1098
    %v1114 = vunpack.c.l.b16 %v1099
    %v1115 = vunpack.c.l.b16 %v1100
    %v1116 = vunpack.c.l.b16 %v1101
    %v1117 = vpack.c.b16 %v1114, %v1113
    %v1118 = vpack.c.b16 %v1116, %v1115
    %v1122 = vsel %vm112, %v1097, 0
    %1124 = vmatprep.subr.bf16.mxu0 0
    %1125 = vmatpush1.bf16.msra.mxu0 %v1117
    %1126 = vmatprep.subr.bf16.mxu0 0
    %1127 = vmatpush1.bf16.msra.mxu0 %v1118
    %1128 = vmatprep.subr.bf16.mxu0 0
    %1129 = vmatpush1.bf16.msra.mxu0 0
    %1130 = vmatprep.subr.bf16.mxu0 0
    %1131 = vmatpush1.bf16.msra.mxu0 0
    %1132 = vmatprep.subr.bf16.mxu0 0
    %1133 = vmatpush1.bf16.msra.mxu0 0
    %1134 = vmatprep.subr.bf16.mxu0 0
    %1135 = vmatpush1.bf16.msra.mxu0 0
    %1136 = vmatprep.subr.bf16.mxu0 0
    %1137 = vmatpush1.bf16.msra.mxu0 0
    %1138 = vmatprep.subr.bf16.mxu0 0
    %1139 = vmatpush1.bf16.msra.mxu0 0
    %1140 = vmatprep.subr.bf16.mxu0 0
    %1141 = vmatpush1.bf16.msra.mxu0 0
    %1142 = vmatprep.subr.bf16.mxu0 0
    %1143 = vmatpush1.bf16.msra.mxu0 0
    %1144 = vmatprep.subr.bf16.mxu0 0
    %1145 = vmatpush1.bf16.msra.mxu0 0
    %1146 = vmatprep.subr.bf16.mxu0 0
    %1147 = vmatpush1.bf16.msra.mxu0 0
    %1148 = vmatprep.subr.bf16.mxu0 0
    %1149 = vmatpush1.bf16.msra.mxu0 0
    %1150 = vmatprep.subr.bf16.mxu0 0
    %1151 = vmatpush1.bf16.msra.mxu0 0
    %1152 = vmatprep.subr.bf16.mxu0 0
    %1153 = vmatpush1.bf16.msra.mxu0 0
    %1154 = vmatprep.subr.bf16.mxu0 0
    %1155 = vmatpush1.bf16.msra.mxu0 0
    %1156 = vmatprep.mubr.bf16.mxu0 0
    %1157 = vmatmul.mubr.bf16.gmra.mrb[0].mxu0 %v1122
    %v1158 = vpop.f32.mrb[0].mxu0
    %v1159 = vadd.f32 %v1107, %v1158
    %v1160 = vpop.f32.mrb[0].mxu0
    %v1161 = vpop.f32.mrb[0].mxu0
    %v1162 = vadd.f32 %v1107, %v1161
    %v1163 = vpop.f32.mrb[0].mxu0
    %1164 = vdwg.mxu0
    %v1165 = vadd.f32 %v86, %v1159
    %v1166 = vadd.f32 %v87, %v1162
    %v1167 = vsel %vm112, %v1165, 0.0
    %1168 = vadd.xlane.f32.xlu0 %v1167
    %v1169 = vpop.xlane.xlu0 %1168
    %v1170 = vsel %vm112, %v1166, 0.0
    %1171 = vadd.xlane.f32.xlu0 %v1170
    %v1172 = vpop.xlane.xlu0 %1171
    %v1173 = vrcp.pop 32.0
    %v1174 = vmul.f32 %v1169, %v1173
    %v1175 = vmul.f32 %v1172, %v1173
    %v1176 = vsub.f32 %v1165, %v1174
    %v1177 = vsub.f32 %v1166, %v1175
    %v1178 = vmul.f32 %v1176, %v1176
    %v1179 = vmul.f32 %v1177, %v1177
    %v1180 = vsel %vm112, %v1178, 0.0
    %1181 = vadd.xlane.f32.xlu0 %v1180
    %v1182 = vpop.xlane.xlu0 %1181
    %v1183 = vsel %vm112, %v1179, 0.0
    %1184 = vadd.xlane.f32.xlu0 %v1183
    %v1185 = vpop.xlane.xlu0 %1184
    %v1186 = vmul.f32 %v1182, %v1173
    %v1187 = vmul.f32 %v1185, %v1173
    %v1188 = vadd.f32 %v1186, 1e-05
    %v1189 = vadd.f32 %v1187, 1e-05
    %v1190 = vrsqrt.pop %v1188
    %v1191 = vrsqrt.pop %v1189
    %v1192 = vmul.f32 %v1176, %v1190
    %v1193 = vmul.f32 %v1177, %v1191
    %v1194 = vld [vmem:[%s10] sm:$0x1]
    %v1196 = vlaneseq
    %v1197 = vshrl.u32 %v1196, 7
    %v1198 = vsub.s32 0, %v1197
    %v1199 = vrot.slane %v1194, %v1198
    %v1201 = vmul.f32 %v1192, %v1199
    %v1202 = vmul.f32 %v1193, %v1199
    %v1203 = vld [vmem:[%s11] sm:$0x1]
    %v1205 = vlaneseq
    %v1206 = vshrl.u32 %v1205, 7
    %v1207 = vsub.s32 0, %v1206
    %v1208 = vrot.slane %v1203, %v1207
    %v1210 = vadd.f32 %v1201, %v1208
    %v1211 = vadd.f32 %v1202, %v1208
    %v1212 = vpack.c.bf16 %v1211, %v1210
    %v1213 = vld [vmem:[%s6] sm:$0xf]
    %v1214 = vld [vmem:[%s6 + $0x4] sm:$0xf]
    %v1215 = vld [vmem:[%s6 + $0x8] sm:$0xf]
    %v1216 = vld [vmem:[%s6 + $0xc] sm:$0xf]
    %v1217 = vld [vmem:[%s7] sm:$0x1]
    %v1219 = vlaneseq
    %v1220 = vshrl.u32 %v1219, 7
    %v1221 = vsub.s32 0, %v1220
    %v1222 = vrot.slane %v1217, %v1221
    %v1228 = vunpack.c.l.b16 %v1213
    %v1229 = vunpack.c.l.b16 %v1214
    %v1230 = vunpack.c.l.b16 %v1215
    %v1231 = vunpack.c.l.b16 %v1216
    %v1232 = vpack.c.b16 %v1229, %v1228
    %v1233 = vpack.c.b16 %v1231, %v1230
    %v1237 = vsel %vm112, %v1212, 0
    %1239 = vmatprep.subr.bf16.mxu0 0
    %1240 = vmatpush1.bf16.msra.mxu0 %v1232
    %1241 = vmatprep.subr.bf16.mxu0 0
    %1242 = vmatpush1.bf16.msra.mxu0 %v1233
    %1243 = vmatprep.subr.bf16.mxu0 0
    %1244 = vmatpush1.bf16.msra.mxu0 0
    %1245 = vmatprep.subr.bf16.mxu0 0
    %1246 = vmatpush1.bf16.msra.mxu0 0
    %1247 = vmatprep.subr.bf16.mxu0 0
    %1248 = vmatpush1.bf16.msra.mxu0 0
    %1249 = vmatprep.subr.bf16.mxu0 0
    %1250 = vmatpush1.bf16.msra.mxu0 0
    %1251 = vmatprep.subr.bf16.mxu0 0
    %1252 = vmatpush1.bf16.msra.mxu0 0
    %1253 = vmatprep.subr.bf16.mxu0 0
    %1254 = vmatpush1.bf16.msra.mxu0 0
    %1255 = vmatprep.subr.bf16.mxu0 0
    %1256 = vmatpush1.bf16.msra.mxu0 0
    %1257 = vmatprep.subr.bf16.mxu0 0
    %1258 = vmatpush1.bf16.msra.mxu0 0
    %1259 = vmatprep.subr.bf16.mxu0 0
    %1260 = vmatpush1.bf16.msra.mxu0 0
    %1261 = vmatprep.subr.bf16.mxu0 0
    %1262 = vmatpush1.bf16.msra.mxu0 0
    %1263 = vmatprep.subr.bf16.mxu0 0
    %1264 = vmatpush1.bf16.msra.mxu0 0
    %1265 = vmatprep.subr.bf16.mxu0 0
    %1266 = vmatpush1.bf16.msra.mxu0 0
    %1267 = vmatprep.subr.bf16.mxu0 0
    %1268 = vmatpush1.bf16.msra.mxu0 0
    %1269 = vmatprep.subr.bf16.mxu0 0
    %1270 = vmatpush1.bf16.msra.mxu0 0
    %1271 = vmatprep.mubr.bf16.mxu0 0
    %1272 = vmatmul.mubr.bf16.gmra.mrb[0].mxu0 %v1237
    %v1273 = vpop.f32.mrb[0].mxu0
    %v1274 = vadd.f32 %v1222, %v1273
    %v1275 = vpop.f32.mrb[0].mxu0
    %v1276 = vpop.f32.mrb[0].mxu0
    %v1277 = vadd.f32 %v1222, %v1276
    %v1278 = vpop.f32.mrb[0].mxu0
    %1279 = vdwg.mxu0
    %v1280 = vmax.f32 %v1274, 0.0
    %v1281 = vmax.f32 %v1277, 0.0
    %v1282 = vpack.c.bf16 %v1281, %v1280
    %v1283 = vld [vmem:[%s8] sm:$0xf]
    %v1284 = vld [vmem:[%s8 + $0x4] sm:$0xf]
    %v1285 = vld [vmem:[%s8 + $0x8] sm:$0xf]
    %v1286 = vld [vmem:[%s8 + $0xc] sm:$0xf]
    %v1287 = vld [vmem:[%s8 + $0x10] sm:$0xf]
    %v1288 = vld [vmem:[%s8 + $0x14] sm:$0xf]
    %v1289 = vld [vmem:[%s8 + $0x18] sm:$0xf]
    %v1290 = vld [vmem:[%s8 + $0x1c] sm:$0xf]
    %v1291 = vld [vmem:[%s9] sm:$0x1]
    %v1293 = vlaneseq
    %v1294 = vshrl.u32 %v1293, 7
    %v1295 = vsub.s32 0, %v1294
    %v1296 = vrot.slane %v1291, %v1295
    %v1306 = vunpack.c.l.b16 %v1283
    %v1307 = vunpack.c.l.b16 %v1284
    %v1308 = vunpack.c.l.b16 %v1285
    %v1309 = vunpack.c.l.b16 %v1286
    %v1310 = vunpack.c.l.b16 %v1287
    %v1311 = vunpack.c.l.b16 %v1288
    %v1312 = vunpack.c.l.b16 %v1289
    %v1313 = vunpack.c.l.b16 %v1290
    %v1314 = vpack.c.b16 %v1307, %v1306
    %v1315 = vpack.c.b16 %v1309, %v1308
    %v1316 = vpack.c.b16 %v1311, %v1310
    %v1317 = vpack.c.b16 %v1313, %v1312
    %vm1322 = vcmask 523264
    %v1324 = vsel %vm1322, %v1282, 0
    %1326 = vmatprep.subr.bf16.mxu0 0
    %1327 = vmatpush1.bf16.msra.mxu0 %v1314
    %1328 = vmatprep.subr.bf16.mxu0 0
    %1329 = vmatpush1.bf16.msra.mxu0 %v1315
    %1330 = vmatprep.subr.bf16.mxu0 0
    %1331 = vmatpush1.bf16.msra.mxu0 %v1316
    %1332 = vmatprep.subr.bf16.mxu0 0
    %1333 = vmatpush1.bf16.msra.mxu0 %v1317
    %1334 = vmatprep.subr.bf16.mxu0 0
    %1335 = vmatpush1.bf16.msra.mxu0 0
    %1336 = vmatprep.subr.bf16.mxu0 0
    %1337 = vmatpush1.bf16.msra.mxu0 0
    %1338 = vmatprep.subr.bf16.mxu0 0
    %1339 = vmatpush1.bf16.msra.mxu0 0
    %1340 = vmatprep.subr.bf16.mxu0 0
    %1341 = vmatpush1.bf16.msra.mxu0 0
    %1342 = vmatprep.subr.bf16.mxu0 0
    %1343 = vmatpush1.bf16.msra.mxu0 0
    %1344 = vmatprep.subr.bf16.mxu0 0
    %1345 = vmatpush1.bf16.msra.mxu0 0
    %1346 = vmatprep.subr.bf16.mxu0 0
    %1347 = vmatpush1.bf16.msra.mxu0 0
    %1348 = vmatprep.subr.bf16.mxu0 0
    %1349 = vmatpush1.bf16.msra.mxu0 0
    %1350 = vmatprep.subr.bf16.mxu0 0
    %1351 = vmatpush1.bf16.msra.mxu0 0
    %1352 = vmatprep.subr.bf16.mxu0 0
    %1353 = vmatpush1.bf16.msra.mxu0 0
    %1354 = vmatprep.subr.bf16.mxu0 0
    %1355 = vmatpush1.bf16.msra.mxu0 0
    %1356 = vmatprep.subr.bf16.mxu0 0
    %1357 = vmatpush1.bf16.msra.mxu0 0
    %1358 = vmatprep.mubr.bf16.mxu0 0
    %1359 = vmatmul.mubr.bf16.gmra.mrb[0].mxu0 %v1324
    %v1360 = vpop.f32.mrb[0].mxu0
    %v1361 = vadd.f32 %v1296, %v1360
    %v1362 = vpop.f32.mrb[0].mxu0
    %v1363 = vpop.f32.mrb[0].mxu0
    %v1364 = vadd.f32 %v1296, %v1363
    %v1365 = vpop.f32.mrb[0].mxu0
    %1366 = vdwg.mxu0
    %v1367 = vadd.f32 %v1210, %v1361
    %v1368 = vadd.f32 %v1211, %v1364
    %v1369 = vsel %vm112, %v1367, 0.0
    %1370 = vadd.xlane.f32.xlu0 %v1369
    %v1371 = vpop.xlane.xlu0 %1370
    %v1372 = vsel %vm112, %v1368, 0.0
    %1373 = vadd.xlane.f32.xlu0 %v1372
    %v1374 = vpop.xlane.xlu0 %1373
    %v1375 = vmul.f32 %v1371, %v1173
    %v1376 = vmul.f32 %v1374, %v1173
    %v1377 = vsub.f32 %v1367, %v1375
    %v1378 = vsub.f32 %v1368, %v1376
    %v1379 = vmul.f32 %v1377, %v1377
    %v1380 = vmul.f32 %v1378, %v1378
    %v1381 = vsel %vm112, %v1379, 0.0
    %1382 = vadd.xlane.f32.xlu0 %v1381
    %v1383 = vpop.xlane.xlu0 %1382
    %v1384 = vsel %vm112, %v1380, 0.0
    %1385 = vadd.xlane.f32.xlu0 %v1384
    %v1386 = vpop.xlane.xlu0 %1385
    %v1387 = vmul.f32 %v1383, %v1173
    %v1388 = vmul.f32 %v1386, %v1173
    %v1389 = vadd.f32 %v1387, 1e-05
    %v1390 = vadd.f32 %v1388, 1e-05
    %v1391 = vrsqrt.pop %v1389
    %v1392 = vrsqrt.pop %v1390
    %v1393 = vmul.f32 %v1377, %v1391
    %v1394 = vmul.f32 %v1378, %v1392
    %v1395 = vld [vmem:[%s12] sm:$0x1]
    %v1397 = vlaneseq
    %v1398 = vshrl.u32 %v1397, 7
    %v1399 = vsub.s32 0, %v1398
    %v1400 = vrot.slane %v1395, %v1399
    %v1402 = vmul.f32 %v1393, %v1400
    %v1403 = vmul.f32 %v1394, %v1400
    %v1404 = vld [vmem:[%s13] sm:$0x1]
    %v1406 = vlaneseq
    %v1407 = vshrl.u32 %v1406, 7
    %v1408 = vsub.s32 0, %v1407
    %v1409 = vrot.slane %v1404, %v1408
    %v1411 = vadd.f32 %v1402, %v1409
    %v1412 = vadd.f32 %v1403, %v1409
    %v1413 = vpack.c.bf16 %v1412, %v1411
    %s1414 = scalar_lea.vmem %s2, 16
    %v1415 = vld [vmem:[%s1414] sm:$0xf]
    %v1416 = vld [vmem:[%s1414 + $0x4] sm:$0xf]
    %v1417 = vld [vmem:[%s1414 + $0x8] sm:$0xf]
    %v1418 = vld [vmem:[%s1414 + $0xc] sm:$0xf]
    %s1419 = scalar_lea.vmem %s3, 1
    %v1420 = vld [vmem:[%s1419] sm:$0x1]
    %v1422 = vlaneseq
    %v1423 = vshrl.u32 %v1422, 7
    %v1424 = vsub.s32 0, %v1423
    %v1425 = vrot.slane %v1420, %v1424
    %v1431 = vunpack.c.l.b16 %v1415
    %v1432 = vunpack.c.l.b16 %v1416
    %v1433 = vunpack.c.l.b16 %v1417
    %v1434 = vunpack.c.l.b16 %v1418
    %v1435 = vpack.c.b16 %v1432, %v1431
    %v1436 = vpack.c.b16 %v1434, %v1433
    %v1440 = vsel %vm112, %v1413, 0
    %1442 = vmatprep.subr.bf16.mxu0 0
    %1443 = vmatpush1.bf16.msra.mxu0 %v1435
    %1444 = vmatprep.subr.bf16.mxu0 0
    %1445 = vmatpush1.bf16.msra.mxu0 %v1436
    %1446 = vmatprep.subr.bf16.mxu0 0
    %1447 = vmatpush1.bf16.msra.mxu0 0
    %1448 = vmatprep.subr.bf16.mxu0 0
    %1449 = vmatpush1.bf16.msra.mxu0 0
    %1450 = vmatprep.subr.bf16.mxu0 0
    %1451 = vmatpush1.bf16.msra.mxu0 0
    %1452 = vmatprep.subr.bf16.mxu0 0
    %1453 = vmatpush1.bf16.msra.mxu0 0
    %1454 = vmatprep.subr.bf16.mxu0 0
    %1455 = vmatpush1.bf16.msra.mxu0 0
    %1456 = vmatprep.subr.bf16.mxu0 0
    %1457 = vmatpush1.bf16.msra.mxu0 0
    %1458 = vmatprep.subr.bf16.mxu0 0
    %1459 = vmatpush1.bf16.msra.mxu0 0
    %1460 = vmatprep.subr.bf16.mxu0 0
    %1461 = vmatpush1.bf16.msra.mxu0 0
    %1462 = vmatprep.subr.bf16.mxu0 0
    %1463 = vmatpush1.bf16.msra.mxu0 0
    %1464 = vmatprep.subr.bf16.mxu0 0
    %1465 = vmatpush1.bf16.msra.mxu0 0
    %1466 = vmatprep.subr.bf16.mxu0 0
    %1467 = vmatpush1.bf16.msra.mxu0 0
    %1468 = vmatprep.subr.bf16.mxu0 0
    %1469 = vmatpush1.bf16.msra.mxu0 0
    %1470 = vmatprep.subr.bf16.mxu0 0
    %1471 = vmatpush1.bf16.msra.mxu0 0
    %1472 = vmatprep.subr.bf16.mxu0 0
    %1473 = vmatpush1.bf16.msra.mxu0 0
    %1474 = vmatprep.mubr.bf16.mxu0 0
    %1475 = vmatmul.mubr.bf16.gmra.mrb[0].mxu0 %v1440
    %v1476 = vpop.f32.mrb[0].mxu0
    %v1477 = vadd.f32 %v1425, %v1476
    %v1478 = vpop.f32.mrb[0].mxu0
    %v1479 = vpop.f32.mrb[0].mxu0
    %v1480 = vadd.f32 %v1425, %v1479
    %v1481 = vpop.f32.mrb[0].mxu0
    %1482 = vdwg.mxu0
    %v1483 = vpack.c.bf16 %v1477, %v1477
    %v1484 = vpack.c.bf16 %v1480, %v1480
    %1486 = vrot.lane.b32.xlu0 %v1483, 96
    %v1487 = vpop.permute.xlu0 %1486
    %v1489 = vsel %vm162, %v1483, 0
    %v1492 = vsel %vm162, %v1487, 0
    %1494 = vmatprep.subr.bf16.mxu0 0
    %1495 = vmatpush1.bf16.xpose.msra.mxu0 %v1492
    %1496 = vmatprep.subr.bf16.mxu0 0
    %1497 = vmatpush1.bf16.xpose.msra.mxu0 0
    %1498 = vmatprep.subr.bf16.mxu0 0
    %1499 = vmatpush1.bf16.xpose.msra.mxu0 0
    %1500 = vmatprep.subr.bf16.mxu0 0
    %1501 = vmatpush1.bf16.xpose.msra.mxu0 0
    %1502 = vmatprep.subr.bf16.mxu0 0
    %1503 = vmatpush1.bf16.xpose.msra.mxu0 0
    %1504 = vmatprep.subr.bf16.mxu0 0
    %1505 = vmatpush1.bf16.xpose.msra.mxu0 0
    %1506 = vmatprep.subr.bf16.mxu0 0
    %1507 = vmatpush1.bf16.xpose.msra.mxu0 0
    %1508 = vmatprep.subr.bf16.mxu0 0
    %1509 = vmatpush1.bf16.xpose.msra.mxu0 0
    %1510 = vmatprep.subr.bf16.mxu0 0
    %1511 = vmatpush1.bf16.xpose.msra.mxu0 0
    %1512 = vmatprep.subr.bf16.mxu0 0
    %1513 = vmatpush1.bf16.xpose.msra.mxu0 0
    %1514 = vmatprep.subr.bf16.mxu0 0
    %1515 = vmatpush1.bf16.xpose.msra.mxu0 0
    %1516 = vmatprep.subr.bf16.mxu0 0
    %1517 = vmatpush1.bf16.xpose.msra.mxu0 0
    %1518 = vmatprep.subr.bf16.mxu0 0
    %1519 = vmatpush1.bf16.xpose.msra.mxu0 0
    %1520 = vmatprep.subr.bf16.mxu0 0
    %1521 = vmatpush1.bf16.xpose.msra.mxu0 0
    %1522 = vmatprep.subr.bf16.mxu0 0
    %1523 = vmatpush1.bf16.xpose.msra.mxu0 0
    %1524 = vmatprep.subr.bf16.mxu0 0
    %1525 = vmatpush1.bf16.xpose.msra.mxu0 0
    %1526 = vmatprep.mubr.bf16.mxu0 0
    %1527 = vmatmul.mubr.bf16.gmra.mrb[0].mxu0 %v1489
    %v1528 = vpop.f32.mrb[0].mxu0
    %v1529 = vadd.f32 0.0, %v1528
    %v1530 = vpop.f32.mrb[0].mxu0
    %v1531 = vpop.f32.mrb[0].mxu0
    %v1532 = vpop.f32.mrb[0].mxu0
    %1533 = vdwg.mxu0
    %1535 = vrot.lane.b32.xlu0 %v1484, 96
    %v1536 = vpop.permute.xlu0 %1535
    %v1538 = vsel %vm162, %v1484, 0
    %v1541 = vsel %vm162, %v1536, 0
    %1543 = vmatprep.subr.bf16.mxu0 0
    %1544 = vmatpush1.bf16.xpose.msra.mxu0 %v1541
    %1545 = vmatprep.subr.bf16.mxu0 0
    %1546 = vmatpush1.bf16.xpose.msra.mxu0 0
    %1547 = vmatprep.subr.bf16.mxu0 0
    %1548 = vmatpush1.bf16.xpose.msra.mxu0 0
    %1549 = vmatprep.subr.bf16.mxu0 0
    %1550 = vmatpush1.bf16.xpose.msra.mxu0 0
    %1551 = vmatprep.subr.bf16.mxu0 0
    %1552 = vmatpush1.bf16.xpose.msra.mxu0 0
    %1553 = vmatprep.subr.bf16.mxu0 0
    %1554 = vmatpush1.bf16.xpose.msra.mxu0 0
    %1555 = vmatprep.subr.bf16.mxu0 0
    %1556 = vmatpush1.bf16.xpose.msra.mxu0 0
    %1557 = vmatprep.subr.bf16.mxu0 0
    %1558 = vmatpush1.bf16.xpose.msra.mxu0 0
    %1559 = vmatprep.subr.bf16.mxu0 0
    %1560 = vmatpush1.bf16.xpose.msra.mxu0 0
    %1561 = vmatprep.subr.bf16.mxu0 0
    %1562 = vmatpush1.bf16.xpose.msra.mxu0 0
    %1563 = vmatprep.subr.bf16.mxu0 0
    %1564 = vmatpush1.bf16.xpose.msra.mxu0 0
    %1565 = vmatprep.subr.bf16.mxu0 0
    %1566 = vmatpush1.bf16.xpose.msra.mxu0 0
    %1567 = vmatprep.subr.bf16.mxu0 0
    %1568 = vmatpush1.bf16.xpose.msra.mxu0 0
    %1569 = vmatprep.subr.bf16.mxu0 0
    %1570 = vmatpush1.bf16.xpose.msra.mxu0 0
    %1571 = vmatprep.subr.bf16.mxu0 0
    %1572 = vmatpush1.bf16.xpose.msra.mxu0 0
    %1573 = vmatprep.subr.bf16.mxu0 0
    %1574 = vmatpush1.bf16.xpose.msra.mxu0 0
    %1575 = vmatprep.mubr.bf16.mxu0 0
    %1576 = vmatmul.mubr.bf16.gmra.mrb[0].mxu0 %v1538
    %v1577 = vpop.f32.mrb[0].mxu0
    %v1578 = vadd.f32 0.0, %v1577
    %v1579 = vpop.f32.mrb[0].mxu0
    %v1580 = vpop.f32.mrb[0].mxu0
    %v1581 = vpop.f32.mrb[0].mxu0
    %1582 = vdwg.mxu0
    %v1583 = vmul.f32 %v1529, 0.35355338
    %v1584 = vmul.f32 %v1578, 0.35355338
    %v1585 = vadd.f32 %v1583, %v263
    %v1586 = vadd.f32 %v1584, %v267
    %v1587 = vsel %vm162, %v1585, -inf
    %1588 = vmax.xlane.f32.xlu0 %v1587
    %v1589 = vpop.xlane.xlu0 %1588
    %v1590 = vsel %vm162, %v1586, -inf
    %1591 = vmax.xlane.f32.xlu0 %v1590
    %v1592 = vpop.xlane.xlu0 %1591
    %v1593 = vsub.f32 %v1585, %v1589
    %v1594 = vsub.f32 %v1586, %v1592
    %v1595 = vmul.f32 %v1593, 1.442695
    %v1596 = vpow.pop %v1595
    %v1597 = vmul.f32 %v1594, 1.442695
    %v1598 = vpow.pop %v1597
    %v1599 = vsel %vm162, %v1596, 0.0
    %1600 = vadd.xlane.f32.xlu0 %v1599
    %v1601 = vpop.xlane.xlu0 %1600
    %v1602 = vsel %vm162, %v1598, 0.0
    %1603 = vadd.xlane.f32.xlu0 %v1602
    %v1604 = vpop.xlane.xlu0 %1603
    %v1605 = vrcp.pop %v1601
    %v1606 = vrcp.pop %v1604
    %v1607 = vmul.f32 %v1596, %v1605
    %v1608 = vmul.f32 %v1598, %v1606
    %v1609 = vpack.c.bf16 %v1607, %v1607
    %v1610 = vpack.c.bf16 %v1608, %v1608
    %1611 = vrot.lane.b32.xlu0 %v1483, 64
    %v1612 = vpop.permute.xlu0 %1611
    %v1614 = vsel %vm162, %v1609, 0
    %v1617 = vsel %vm301, %v1612, 0
    %1619 = vmatprep.subr.bf16.mxu0 0
    %1620 = vmatpush1.bf16.msra.mxu0 %v1617
    %1621 = vmatprep.subr.bf16.mxu0 0
    %1622 = vmatpush1.bf16.msra.mxu0 0
    %1623 = vmatprep.subr.bf16.mxu0 0
    %1624 = vmatpush1.bf16.msra.mxu0 0
    %1625 = vmatprep.subr.bf16.mxu0 0
    %1626 = vmatpush1.bf16.msra.mxu0 0
    %1627 = vmatprep.subr.bf16.mxu0 0
    %1628 = vmatpush1.bf16.msra.mxu0 0
    %1629 = vmatprep.subr.bf16.mxu0 0
    %1630 = vmatpush1.bf16.msra.mxu0 0
    %1631 = vmatprep.subr.bf16.mxu0 0
    %1632 = vmatpush1.bf16.msra.mxu0 0
    %1633 = vmatprep.subr.bf16.mxu0 0
    %1634 = vmatpush1.bf16.msra.mxu0 0
    %1635 = vmatprep.subr.bf16.mxu0 0
    %1636 = vmatpush1.bf16.msra.mxu0 0
    %1637 = vmatprep.subr.bf16.mxu0 0
    %1638 = vmatpush1.bf16.msra.mxu0 0
    %1639 = vmatprep.subr.bf16.mxu0 0
    %1640 = vmatpush1.bf16.msra.mxu0 0
    %1641 = vmatprep.subr.bf16.mxu0 0
    %1642 = vmatpush1.bf16.msra.mxu0 0
    %1643 = vmatprep.subr.bf16.mxu0 0
    %1644 = vmatpush1.bf16.msra.mxu0 0
    %1645 = vmatprep.subr.bf16.mxu0 0
    %1646 = vmatpush1.bf16.msra.mxu0 0
    %1647 = vmatprep.subr.bf16.mxu0 0
    %1648 = vmatpush1.bf16.msra.mxu0 0
    %1649 = vmatprep.subr.bf16.mxu0 0
    %1650 = vmatpush1.bf16.msra.mxu0 0
    %1651 = vmatprep.mubr.bf16.mxu0 0
    %1652 = vmatmul.mubr.bf16.gmra.mrb[0].mxu0 %v1614
    %v1653 = vpop.f32.mrb[0].mxu0
    %v1654 = vadd.f32 0.0, %v1653
    %v1655 = vpop.f32.mrb[0].mxu0
    %v1656 = vpop.f32.mrb[0].mxu0
    %v1657 = vpop.f32.mrb[0].mxu0
    %1658 = vdwg.mxu0
    %1659 = vrot.lane.b32.xlu0 %v1484, 64
    %v1660 = vpop.permute.xlu0 %1659
    %v1662 = vsel %vm162, %v1610, 0
    %v1665 = vsel %vm301, %v1660, 0
    %1667 = vmatprep.subr.bf16.mxu0 0
    %1668 = vmatpush1.bf16.msra.mxu0 %v1665
    %1669 = vmatprep.subr.bf16.mxu0 0
    %1670 = vmatpush1.bf16.msra.mxu0 0
    %1671 = vmatprep.subr.bf16.mxu0 0
    %1672 = vmatpush1.bf16.msra.mxu0 0
    %1673 = vmatprep.subr.bf16.mxu0 0
    %1674 = vmatpush1.bf16.msra.mxu0 0
    %1675 = vmatprep.subr.bf16.mxu0 0
    %1676 = vmatpush1.bf16.msra.mxu0 0
    %1677 = vmatprep.subr.bf16.mxu0 0
    %1678 = vmatpush1.bf16.msra.mxu0 0
    %1679 = vmatprep.subr.bf16.mxu0 0
    %1680 = vmatpush1.bf16.msra.mxu0 0
    %1681 = vmatprep.subr.bf16.mxu0 0
    %1682 = vmatpush1.bf16.msra.mxu0 0
    %1683 = vmatprep.subr.bf16.mxu0 0
    %1684 = vmatpush1.bf16.msra.mxu0 0
    %1685 = vmatprep.subr.bf16.mxu0 0
    %1686 = vmatpush1.bf16.msra.mxu0 0
    %1687 = vmatprep.subr.bf16.mxu0 0
    %1688 = vmatpush1.bf16.msra.mxu0 0
    %1689 = vmatprep.subr.bf16.mxu0 0
    %1690 = vmatpush1.bf16.msra.mxu0 0
    %1691 = vmatprep.subr.bf16.mxu0 0
    %1692 = vmatpush1.bf16.msra.mxu0 0
    %1693 = vmatprep.subr.bf16.mxu0 0
    %1694 = vmatpush1.bf16.msra.mxu0 0
    %1695 = vmatprep.subr.bf16.mxu0 0
    %1696 = vmatpush1.bf16.msra.mxu0 0
    %1697 = vmatprep.subr.bf16.mxu0 0
    %1698 = vmatpush1.bf16.msra.mxu0 0
    %1699 = vmatprep.mubr.bf16.mxu0 0
    %1700 = vmatmul.mubr.bf16.gmra.mrb[0].mxu0 %v1662
    %v1701 = vpop.f32.mrb[0].mxu0
    %v1702 = vadd.f32 0.0, %v1701
    %v1703 = vpop.f32.mrb[0].mxu0
    %v1704 = vpop.f32.mrb[0].mxu0
    %v1705 = vpop.f32.mrb[0].mxu0
    %1706 = vdwg.mxu0
    %1707 = vrot.lane.b32.xlu0 %v1483, 120
    %v1708 = vpop.permute.xlu0 %1707
    %1709 = vrot.lane.b32.xlu0 %v1483, 88
    %v1710 = vpop.permute.xlu0 %1709
    %v1712 = vsel %vm162, %v1708, 0
    %v1715 = vsel %vm162, %v1710, 0
    %1717 = vmatprep.subr.bf16.mxu0 0
    %1718 = vmatpush1.bf16.xpose.msra.mxu0 %v1715
    %1719 = vmatprep.subr.bf16.mxu0 0
    %1720 = vmatpush1.bf16.xpose.msra.mxu0 0
    %1721 = vmatprep.subr.bf16.mxu0 0
    %1722 = vmatpush1.bf16.xpose.msra.mxu0 0
    %1723 = vmatprep.subr.bf16.mxu0 0
    %1724 = vmatpush1.bf16.xpose.msra.mxu0 0
    %1725 = vmatprep.subr.bf16.mxu0 0
    %1726 = vmatpush1.bf16.xpose.msra.mxu0 0
    %1727 = vmatprep.subr.bf16.mxu0 0
    %1728 = vmatpush1.bf16.xpose.msra.mxu0 0
    %1729 = vmatprep.subr.bf16.mxu0 0
    %1730 = vmatpush1.bf16.xpose.msra.mxu0 0
    %1731 = vmatprep.subr.bf16.mxu0 0
    %1732 = vmatpush1.bf16.xpose.msra.mxu0 0
    %1733 = vmatprep.subr.bf16.mxu0 0
    %1734 = vmatpush1.bf16.xpose.msra.mxu0 0
    %1735 = vmatprep.subr.bf16.mxu0 0
    %1736 = vmatpush1.bf16.xpose.msra.mxu0 0
    %1737 = vmatprep.subr.bf16.mxu0 0
    %1738 = vmatpush1.bf16.xpose.msra.mxu0 0
    %1739 = vmatprep.subr.bf16.mxu0 0
    %1740 = vmatpush1.bf16.xpose.msra.mxu0 0
    %1741 = vmatprep.subr.bf16.mxu0 0
    %1742 = vmatpush1.bf16.xpose.msra.mxu0 0
    %1743 = vmatprep.subr.bf16.mxu0 0
    %1744 = vmatpush1.bf16.xpose.msra.mxu0 0
    %1745 = vmatprep.subr.bf16.mxu0 0
    %1746 = vmatpush1.bf16.xpose.msra.mxu0 0
    %1747 = vmatprep.subr.bf16.mxu0 0
    %1748 = vmatpush1.bf16.xpose.msra.mxu0 0
    %1749 = vmatprep.mubr.bf16.mxu0 0
    %1750 = vmatmul.mubr.bf16.gmra.mrb[0].mxu0 %v1712
    %v1751 = vpop.f32.mrb[0].mxu0
    %v1752 = vadd.f32 0.0, %v1751
    %v1753 = vpop.f32.mrb[0].mxu0
    %v1754 = vpop.f32.mrb[0].mxu0
    %v1755 = vpop.f32.mrb[0].mxu0
    %1756 = vdwg.mxu0
    %1757 = vrot.lane.b32.xlu0 %v1484, 120
    %v1758 = vpop.permute.xlu0 %1757
    %1759 = vrot.lane.b32.xlu0 %v1484, 88
    %v1760 = vpop.permute.xlu0 %1759
    %v1762 = vsel %vm162, %v1758, 0
    %v1765 = vsel %vm162, %v1760, 0
    %1767 = vmatprep.subr.bf16.mxu0 0
    %1768 = vmatpush1.bf16.xpose.msra.mxu0 %v1765
    %1769 = vmatprep.subr.bf16.mxu0 0
    %1770 = vmatpush1.bf16.xpose.msra.mxu0 0
    %1771 = vmatprep.subr.bf16.mxu0 0
    %1772 = vmatpush1.bf16.xpose.msra.mxu0 0
    %1773 = vmatprep.subr.bf16.mxu0 0
    %1774 = vmatpush1.bf16.xpose.msra.mxu0 0
    %1775 = vmatprep.subr.bf16.mxu0 0
    %1776 = vmatpush1.bf16.xpose.msra.mxu0 0
    %1777 = vmatprep.subr.bf16.mxu0 0
    %1778 = vmatpush1.bf16.xpose.msra.mxu0 0
    %1779 = vmatprep.subr.bf16.mxu0 0
    %1780 = vmatpush1.bf16.xpose.msra.mxu0 0
    %1781 = vmatprep.subr.bf16.mxu0 0
    %1782 = vmatpush1.bf16.xpose.msra.mxu0 0
    %1783 = vmatprep.subr.bf16.mxu0 0
    %1784 = vmatpush1.bf16.xpose.msra.mxu0 0
    %1785 = vmatprep.subr.bf16.mxu0 0
    %1786 = vmatpush1.bf16.xpose.msra.mxu0 0
    %1787 = vmatprep.subr.bf16.mxu0 0
    %1788 = vmatpush1.bf16.xpose.msra.mxu0 0
    %1789 = vmatprep.subr.bf16.mxu0 0
    %1790 = vmatpush1.bf16.xpose.msra.mxu0 0
    %1791 = vmatprep.subr.bf16.mxu0 0
    %1792 = vmatpush1.bf16.xpose.msra.mxu0 0
    %1793 = vmatprep.subr.bf16.mxu0 0
    %1794 = vmatpush1.bf16.xpose.msra.mxu0 0
    %1795 = vmatprep.subr.bf16.mxu0 0
    %1796 = vmatpush1.bf16.xpose.msra.mxu0 0
    %1797 = vmatprep.subr.bf16.mxu0 0
    %1798 = vmatpush1.bf16.xpose.msra.mxu0 0
    %1799 = vmatprep.mubr.bf16.mxu0 0
    %1800 = vmatmul.mubr.bf16.gmra.mrb[0].mxu0 %v1762
    %v1801 = vpop.f32.mrb[0].mxu0
    %v1802 = vadd.f32 0.0, %v1801
    %v1803 = vpop.f32.mrb[0].mxu0
    %v1804 = vpop.f32.mrb[0].mxu0
    %v1805 = vpop.f32.mrb[0].mxu0
    %1806 = vdwg.mxu0
    %v1807 = vmul.f32 %v1752, 0.35355338
    %v1808 = vmul.f32 %v1802, 0.35355338
    %v1809 = vadd.f32 %v1807, %v263
    %v1810 = vadd.f32 %v1808, %v267
    %v1811 = vsel %vm162, %v1809, -inf
    %1812 = vmax.xlane.f32.xlu0 %v1811
    %v1813 = vpop.xlane.xlu0 %1812
    %v1814 = vsel %vm162, %v1810, -inf
    %1815 = vmax.xlane.f32.xlu0 %v1814
    %v1816 = vpop.xlane.xlu0 %1815
    %v1817 = vsub.f32 %v1809, %v1813
    %v1818 = vsub.f32 %v1810, %v1816
    %v1819 = vmul.f32 %v1817, 1.442695
    %v1820 = vpow.pop %v1819
    %v1821 = vmul.f32 %v1818, 1.442695
    %v1822 = vpow.pop %v1821
    %v1823 = vsel %vm162, %v1820, 0.0
    %1824 = vadd.xlane.f32.xlu0 %v1823
    %v1825 = vpop.xlane.xlu0 %1824
    %v1826 = vsel %vm162, %v1822, 0.0
    %1827 = vadd.xlane.f32.xlu0 %v1826
    %v1828 = vpop.xlane.xlu0 %1827
    %v1829 = vrcp.pop %v1825
    %v1830 = vrcp.pop %v1828
    %v1831 = vmul.f32 %v1820, %v1829
    %v1832 = vmul.f32 %v1822, %v1830
    %v1833 = vpack.c.bf16 %v1831, %v1831
    %v1834 = vpack.c.bf16 %v1832, %v1832
    %1835 = vrot.lane.b32.xlu0 %v1483, 56
    %v1836 = vpop.permute.xlu0 %1835
    %v1838 = vsel %vm162, %v1833, 0
    %v1841 = vsel %vm301, %v1836, 0
    %1843 = vmatprep.subr.bf16.mxu0 0
    %1844 = vmatpush1.bf16.msra.mxu0 %v1841
    %1845 = vmatprep.subr.bf16.mxu0 0
    %1846 = vmatpush1.bf16.msra.mxu0 0
    %1847 = vmatprep.subr.bf16.mxu0 0
    %1848 = vmatpush1.bf16.msra.mxu0 0
    %1849 = vmatprep.subr.bf16.mxu0 0
    %1850 = vmatpush1.bf16.msra.mxu0 0
    %1851 = vmatprep.subr.bf16.mxu0 0
    %1852 = vmatpush1.bf16.msra.mxu0 0
    %1853 = vmatprep.subr.bf16.mxu0 0
    %1854 = vmatpush1.bf16.msra.mxu0 0
    %1855 = vmatprep.subr.bf16.mxu0 0
    %1856 = vmatpush1.bf16.msra.mxu0 0
    %1857 = vmatprep.subr.bf16.mxu0 0
    %1858 = vmatpush1.bf16.msra.mxu0 0
    %1859 = vmatprep.subr.bf16.mxu0 0
    %1860 = vmatpush1.bf16.msra.mxu0 0
    %1861 = vmatprep.subr.bf16.mxu0 0
    %1862 = vmatpush1.bf16.msra.mxu0 0
    %1863 = vmatprep.subr.bf16.mxu0 0
    %1864 = vmatpush1.bf16.msra.mxu0 0
    %1865 = vmatprep.subr.bf16.mxu0 0
    %1866 = vmatpush1.bf16.msra.mxu0 0
    %1867 = vmatprep.subr.bf16.mxu0 0
    %1868 = vmatpush1.bf16.msra.mxu0 0
    %1869 = vmatprep.subr.bf16.mxu0 0
    %1870 = vmatpush1.bf16.msra.mxu0 0
    %1871 = vmatprep.subr.bf16.mxu0 0
    %1872 = vmatpush1.bf16.msra.mxu0 0
    %1873 = vmatprep.subr.bf16.mxu0 0
    %1874 = vmatpush1.bf16.msra.mxu0 0
    %1875 = vmatprep.mubr.bf16.mxu0 0
    %1876 = vmatmul.mubr.bf16.gmra.mrb[0].mxu0 %v1838
    %v1877 = vpop.f32.mrb[0].mxu0
    %v1878 = vadd.f32 0.0, %v1877
    %v1879 = vpop.f32.mrb[0].mxu0
    %v1880 = vpop.f32.mrb[0].mxu0
    %v1881 = vpop.f32.mrb[0].mxu0
    %1882 = vdwg.mxu0
    %1883 = vrot.lane.b32.xlu0 %v1484, 56
    %v1884 = vpop.permute.xlu0 %1883
    %v1886 = vsel %vm162, %v1834, 0
    %v1889 = vsel %vm301, %v1884, 0
    %1891 = vmatprep.subr.bf16.mxu0 0
    %1892 = vmatpush1.bf16.msra.mxu0 %v1889
    %1893 = vmatprep.subr.bf16.mxu0 0
    %1894 = vmatpush1.bf16.msra.mxu0 0
    %1895 = vmatprep.subr.bf16.mxu0 0
    %1896 = vmatpush1.bf16.msra.mxu0 0
    %1897 = vmatprep.subr.bf16.mxu0 0
    %1898 = vmatpush1.bf16.msra.mxu0 0
    %1899 = vmatprep.subr.bf16.mxu0 0
    %1900 = vmatpush1.bf16.msra.mxu0 0
    %1901 = vmatprep.subr.bf16.mxu0 0
    %1902 = vmatpush1.bf16.msra.mxu0 0
    %1903 = vmatprep.subr.bf16.mxu0 0
    %1904 = vmatpush1.bf16.msra.mxu0 0
    %1905 = vmatprep.subr.bf16.mxu0 0
    %1906 = vmatpush1.bf16.msra.mxu0 0
    %1907 = vmatprep.subr.bf16.mxu0 0
    %1908 = vmatpush1.bf16.msra.mxu0 0
    %1909 = vmatprep.subr.bf16.mxu0 0
    %1910 = vmatpush1.bf16.msra.mxu0 0
    %1911 = vmatprep.subr.bf16.mxu0 0
    %1912 = vmatpush1.bf16.msra.mxu0 0
    %1913 = vmatprep.subr.bf16.mxu0 0
    %1914 = vmatpush1.bf16.msra.mxu0 0
    %1915 = vmatprep.subr.bf16.mxu0 0
    %1916 = vmatpush1.bf16.msra.mxu0 0
    %1917 = vmatprep.subr.bf16.mxu0 0
    %1918 = vmatpush1.bf16.msra.mxu0 0
    %1919 = vmatprep.subr.bf16.mxu0 0
    %1920 = vmatpush1.bf16.msra.mxu0 0
    %1921 = vmatprep.subr.bf16.mxu0 0
    %1922 = vmatpush1.bf16.msra.mxu0 0
    %1923 = vmatprep.mubr.bf16.mxu0 0
    %1924 = vmatmul.mubr.bf16.gmra.mrb[0].mxu0 %v1886
    %v1925 = vpop.f32.mrb[0].mxu0
    %v1926 = vadd.f32 0.0, %v1925
    %v1927 = vpop.f32.mrb[0].mxu0
    %v1928 = vpop.f32.mrb[0].mxu0
    %v1929 = vpop.f32.mrb[0].mxu0
    %1930 = vdwg.mxu0
    %1931 = vrot.lane.b32.xlu0 %v1483, 112
    %v1932 = vpop.permute.xlu0 %1931
    %1933 = vrot.lane.b32.xlu0 %v1483, 80
    %v1934 = vpop.permute.xlu0 %1933
    %v1936 = vsel %vm162, %v1932, 0
    %v1939 = vsel %vm162, %v1934, 0
    %1941 = vmatprep.subr.bf16.mxu0 0
    %1942 = vmatpush1.bf16.xpose.msra.mxu0 %v1939
    %1943 = vmatprep.subr.bf16.mxu0 0
    %1944 = vmatpush1.bf16.xpose.msra.mxu0 0
    %1945 = vmatprep.subr.bf16.mxu0 0
    %1946 = vmatpush1.bf16.xpose.msra.mxu0 0
    %1947 = vmatprep.subr.bf16.mxu0 0
    %1948 = vmatpush1.bf16.xpose.msra.mxu0 0
    %1949 = vmatprep.subr.bf16.mxu0 0
    %1950 = vmatpush1.bf16.xpose.msra.mxu0 0
    %1951 = vmatprep.subr.bf16.mxu0 0
    %1952 = vmatpush1.bf16.xpose.msra.mxu0 0
    %1953 = vmatprep.subr.bf16.mxu0 0
    %1954 = vmatpush1.bf16.xpose.msra.mxu0 0
    %1955 = vmatprep.subr.bf16.mxu0 0
    %1956 = vmatpush1.bf16.xpose.msra.mxu0 0
    %1957 = vmatprep.subr.bf16.mxu0 0
    %1958 = vmatpush1.bf16.xpose.msra.mxu0 0
    %1959 = vmatprep.subr.bf16.mxu0 0
    %1960 = vmatpush1.bf16.xpose.msra.mxu0 0
    %1961 = vmatprep.subr.bf16.mxu0 0
    %1962 = vmatpush1.bf16.xpose.msra.mxu0 0
    %1963 = vmatprep.subr.bf16.mxu0 0
    %1964 = vmatpush1.bf16.xpose.msra.mxu0 0
    %1965 = vmatprep.subr.bf16.mxu0 0
    %1966 = vmatpush1.bf16.xpose.msra.mxu0 0
    %1967 = vmatprep.subr.bf16.mxu0 0
    %1968 = vmatpush1.bf16.xpose.msra.mxu0 0
    %1969 = vmatprep.subr.bf16.mxu0 0
    %1970 = vmatpush1.bf16.xpose.msra.mxu0 0
    %1971 = vmatprep.subr.bf16.mxu0 0
    %1972 = vmatpush1.bf16.xpose.msra.mxu0 0
    %1973 = vmatprep.mubr.bf16.mxu0 0
    %1974 = vmatmul.mubr.bf16.gmra.mrb[0].mxu0 %v1936
    %v1975 = vpop.f32.mrb[0].mxu0
    %v1976 = vadd.f32 0.0, %v1975
    %v1977 = vpop.f32.mrb[0].mxu0
    %v1978 = vpop.f32.mrb[0].mxu0
    %v1979 = vpop.f32.mrb[0].mxu0
    %1980 = vdwg.mxu0
    %1981 = vrot.lane.b32.xlu0 %v1484, 112
    %v1982 = vpop.permute.xlu0 %1981
    %1983 = vrot.lane.b32.xlu0 %v1484, 80
    %v1984 = vpop.permute.xlu0 %1983
    %v1986 = vsel %vm162, %v1982, 0
    %v1989 = vsel %vm162, %v1984, 0
    %1991 = vmatprep.subr.bf16.mxu0 0
    %1992 = vmatpush1.bf16.xpose.msra.mxu0 %v1989
    %1993 = vmatprep.subr.bf16.mxu0 0
    %1994 = vmatpush1.bf16.xpose.msra.mxu0 0
    %1995 = vmatprep.subr.bf16.mxu0 0
    %1996 = vmatpush1.bf16.xpose.msra.mxu0 0
    %1997 = vmatprep.subr.bf16.mxu0 0
    %1998 = vmatpush1.bf16.xpose.msra.mxu0 0
    %1999 = vmatprep.subr.bf16.mxu0 0
    %2000 = vmatpush1.bf16.xpose.msra.mxu0 0
    %2001 = vmatprep.subr.bf16.mxu0 0
    %2002 = vmatpush1.bf16.xpose.msra.mxu0 0
    %2003 = vmatprep.subr.bf16.mxu0 0
    %2004 = vmatpush1.bf16.xpose.msra.mxu0 0
    %2005 = vmatprep.subr.bf16.mxu0 0
    %2006 = vmatpush1.bf16.xpose.msra.mxu0 0
    %2007 = vmatprep.subr.bf16.mxu0 0
    %2008 = vmatpush1.bf16.xpose.msra.mxu0 0
    %2009 = vmatprep.subr.bf16.mxu0 0
    %2010 = vmatpush1.bf16.xpose.msra.mxu0 0
    %2011 = vmatprep.subr.bf16.mxu0 0
    %2012 = vmatpush1.bf16.xpose.msra.mxu0 0
    %2013 = vmatprep.subr.bf16.mxu0 0
    %2014 = vmatpush1.bf16.xpose.msra.mxu0 0
    %2015 = vmatprep.subr.bf16.mxu0 0
    %2016 = vmatpush1.bf16.xpose.msra.mxu0 0
    %2017 = vmatprep.subr.bf16.mxu0 0
    %2018 = vmatpush1.bf16.xpose.msra.mxu0 0
    %2019 = vmatprep.subr.bf16.mxu0 0
    %2020 = vmatpush1.bf16.xpose.msra.mxu0 0
    %2021 = vmatprep.subr.bf16.mxu0 0
    %2022 = vmatpush1.bf16.xpose.msra.mxu0 0
    %2023 = vmatprep.mubr.bf16.mxu0 0
    %2024 = vmatmul.mubr.bf16.gmra.mrb[0].mxu0 %v1986
    %v2025 = vpop.f32.mrb[0].mxu0
    %v2026 = vadd.f32 0.0, %v2025
    %v2027 = vpop.f32.mrb[0].mxu0
    %v2028 = vpop.f32.mrb[0].mxu0
    %v2029 = vpop.f32.mrb[0].mxu0
    %2030 = vdwg.mxu0
    %v2031 = vmul.f32 %v1976, 0.35355338
    %v2032 = vmul.f32 %v2026, 0.35355338
    %v2033 = vadd.f32 %v2031, %v263
    %v2034 = vadd.f32 %v2032, %v267
    %v2035 = vsel %vm162, %v2033, -inf
    %2036 = vmax.xlane.f32.xlu0 %v2035
    %v2037 = vpop.xlane.xlu0 %2036
    %v2038 = vsel %vm162, %v2034, -inf
    %2039 = vmax.xlane.f32.xlu0 %v2038
    %v2040 = vpop.xlane.xlu0 %2039
    %v2041 = vsub.f32 %v2033, %v2037
    %v2042 = vsub.f32 %v2034, %v2040
    %v2043 = vmul.f32 %v2041, 1.442695
    %v2044 = vpow.pop %v2043
    %v2045 = vmul.f32 %v2042, 1.442695
    %v2046 = vpow.pop %v2045
    %v2047 = vsel %vm162, %v2044, 0.0
    %2048 = vadd.xlane.f32.xlu0 %v2047
    %v2049 = vpop.xlane.xlu0 %2048
    %v2050 = vsel %vm162, %v2046, 0.0
    %2051 = vadd.xlane.f32.xlu0 %v2050
    %v2052 = vpop.xlane.xlu0 %2051
    %v2053 = vrcp.pop %v2049
    %v2054 = vrcp.pop %v2052
    %v2055 = vmul.f32 %v2044, %v2053
    %v2056 = vmul.f32 %v2046, %v2054
    %v2057 = vpack.c.bf16 %v2055, %v2055
    %v2058 = vpack.c.bf16 %v2056, %v2056
    %2059 = vrot.lane.b32.xlu0 %v1483, 48
    %v2060 = vpop.permute.xlu0 %2059
    %v2062 = vsel %vm162, %v2057, 0
    %v2065 = vsel %vm301, %v2060, 0
    %2067 = vmatprep.subr.bf16.mxu0 0
    %2068 = vmatpush1.bf16.msra.mxu0 %v2065
    %2069 = vmatprep.subr.bf16.mxu0 0
    %2070 = vmatpush1.bf16.msra.mxu0 0
    %2071 = vmatprep.subr.bf16.mxu0 0
    %2072 = vmatpush1.bf16.msra.mxu0 0
    %2073 = vmatprep.subr.bf16.mxu0 0
    %2074 = vmatpush1.bf16.msra.mxu0 0
    %2075 = vmatprep.subr.bf16.mxu0 0
    %2076 = vmatpush1.bf16.msra.mxu0 0
    %2077 = vmatprep.subr.bf16.mxu0 0
    %2078 = vmatpush1.bf16.msra.mxu0 0
    %2079 = vmatprep.subr.bf16.mxu0 0
    %2080 = vmatpush1.bf16.msra.mxu0 0
    %2081 = vmatprep.subr.bf16.mxu0 0
    %2082 = vmatpush1.bf16.msra.mxu0 0
    %2083 = vmatprep.subr.bf16.mxu0 0
    %2084 = vmatpush1.bf16.msra.mxu0 0
    %2085 = vmatprep.subr.bf16.mxu0 0
    %2086 = vmatpush1.bf16.msra.mxu0 0
    %2087 = vmatprep.subr.bf16.mxu0 0
    %2088 = vmatpush1.bf16.msra.mxu0 0
    %2089 = vmatprep.subr.bf16.mxu0 0
    %2090 = vmatpush1.bf16.msra.mxu0 0
    %2091 = vmatprep.subr.bf16.mxu0 0
    %2092 = vmatpush1.bf16.msra.mxu0 0
    %2093 = vmatprep.subr.bf16.mxu0 0
    %2094 = vmatpush1.bf16.msra.mxu0 0
    %2095 = vmatprep.subr.bf16.mxu0 0
    %2096 = vmatpush1.bf16.msra.mxu0 0
    %2097 = vmatprep.subr.bf16.mxu0 0
    %2098 = vmatpush1.bf16.msra.mxu0 0
    %2099 = vmatprep.mubr.bf16.mxu0 0
    %2100 = vmatmul.mubr.bf16.gmra.mrb[0].mxu0 %v2062
    %v2101 = vpop.f32.mrb[0].mxu0
    %v2102 = vadd.f32 0.0, %v2101
    %v2103 = vpop.f32.mrb[0].mxu0
    %v2104 = vpop.f32.mrb[0].mxu0
    %v2105 = vpop.f32.mrb[0].mxu0
    %2106 = vdwg.mxu0
    %2107 = vrot.lane.b32.xlu0 %v1484, 48
    %v2108 = vpop.permute.xlu0 %2107
    %v2110 = vsel %vm162, %v2058, 0
    %v2113 = vsel %vm301, %v2108, 0
    %2115 = vmatprep.subr.bf16.mxu0 0
    %2116 = vmatpush1.bf16.msra.mxu0 %v2113
    %2117 = vmatprep.subr.bf16.mxu0 0
    %2118 = vmatpush1.bf16.msra.mxu0 0
    %2119 = vmatprep.subr.bf16.mxu0 0
    %2120 = vmatpush1.bf16.msra.mxu0 0
    %2121 = vmatprep.subr.bf16.mxu0 0
    %2122 = vmatpush1.bf16.msra.mxu0 0
    %2123 = vmatprep.subr.bf16.mxu0 0
    %2124 = vmatpush1.bf16.msra.mxu0 0
    %2125 = vmatprep.subr.bf16.mxu0 0
    %2126 = vmatpush1.bf16.msra.mxu0 0
    %2127 = vmatprep.subr.bf16.mxu0 0
    %2128 = vmatpush1.bf16.msra.mxu0 0
    %2129 = vmatprep.subr.bf16.mxu0 0
    %2130 = vmatpush1.bf16.msra.mxu0 0
    %2131 = vmatprep.subr.bf16.mxu0 0
    %2132 = vmatpush1.bf16.msra.mxu0 0
    %2133 = vmatprep.subr.bf16.mxu0 0
    %2134 = vmatpush1.bf16.msra.mxu0 0
    %2135 = vmatprep.subr.bf16.mxu0 0
    %2136 = vmatpush1.bf16.msra.mxu0 0
    %2137 = vmatprep.subr.bf16.mxu0 0
    %2138 = vmatpush1.bf16.msra.mxu0 0
    %2139 = vmatprep.subr.bf16.mxu0 0
    %2140 = vmatpush1.bf16.msra.mxu0 0
    %2141 = vmatprep.subr.bf16.mxu0 0
    %2142 = vmatpush1.bf16.msra.mxu0 0
    %2143 = vmatprep.subr.bf16.mxu0 0
    %2144 = vmatpush1.bf16.msra.mxu0 0
    %2145 = vmatprep.subr.bf16.mxu0 0
    %2146 = vmatpush1.bf16.msra.mxu0 0
    %2147 = vmatprep.mubr.bf16.mxu0 0
    %2148 = vmatmul.mubr.bf16.gmra.mrb[0].mxu0 %v2110
    %v2149 = vpop.f32.mrb[0].mxu0
    %v2150 = vadd.f32 0.0, %v2149
    %v2151 = vpop.f32.mrb[0].mxu0
    %v2152 = vpop.f32.mrb[0].mxu0
    %v2153 = vpop.f32.mrb[0].mxu0
    %2154 = vdwg.mxu0
    %2155 = vrot.lane.b32.xlu0 %v1483, 104
    %v2156 = vpop.permute.xlu0 %2155
    %2157 = vrot.lane.b32.xlu0 %v1483, 72
    %v2158 = vpop.permute.xlu0 %2157
    %v2160 = vsel %vm162, %v2156, 0
    %v2163 = vsel %vm162, %v2158, 0
    %2165 = vmatprep.subr.bf16.mxu0 0
    %2166 = vmatpush1.bf16.xpose.msra.mxu0 %v2163
    %2167 = vmatprep.subr.bf16.mxu0 0
    %2168 = vmatpush1.bf16.xpose.msra.mxu0 0
    %2169 = vmatprep.subr.bf16.mxu0 0
    %2170 = vmatpush1.bf16.xpose.msra.mxu0 0
    %2171 = vmatprep.subr.bf16.mxu0 0
    %2172 = vmatpush1.bf16.xpose.msra.mxu0 0
    %2173 = vmatprep.subr.bf16.mxu0 0
    %2174 = vmatpush1.bf16.xpose.msra.mxu0 0
    %2175 = vmatprep.subr.bf16.mxu0 0
    %2176 = vmatpush1.bf16.xpose.msra.mxu0 0
    %2177 = vmatprep.subr.bf16.mxu0 0
    %2178 = vmatpush1.bf16.xpose.msra.mxu0 0
    %2179 = vmatprep.subr.bf16.mxu0 0
    %2180 = vmatpush1.bf16.xpose.msra.mxu0 0
    %2181 = vmatprep.subr.bf16.mxu0 0
    %2182 = vmatpush1.bf16.xpose.msra.mxu0 0
    %2183 = vmatprep.subr.bf16.mxu0 0
    %2184 = vmatpush1.bf16.xpose.msra.mxu0 0
    %2185 = vmatprep.subr.bf16.mxu0 0
    %2186 = vmatpush1.bf16.xpose.msra.mxu0 0
    %2187 = vmatprep.subr.bf16.mxu0 0
    %2188 = vmatpush1.bf16.xpose.msra.mxu0 0
    %2189 = vmatprep.subr.bf16.mxu0 0
    %2190 = vmatpush1.bf16.xpose.msra.mxu0 0
    %2191 = vmatprep.subr.bf16.mxu0 0
    %2192 = vmatpush1.bf16.xpose.msra.mxu0 0
    %2193 = vmatprep.subr.bf16.mxu0 0
    %2194 = vmatpush1.bf16.xpose.msra.mxu0 0
    %2195 = vmatprep.subr.bf16.mxu0 0
    %2196 = vmatpush1.bf16.xpose.msra.mxu0 0
    %2197 = vmatprep.mubr.bf16.mxu0 0
    %2198 = vmatmul.mubr.bf16.gmra.mrb[0].mxu0 %v2160
    %v2199 = vpop.f32.mrb[0].mxu0
    %v2200 = vadd.f32 0.0, %v2199
    %v2201 = vpop.f32.mrb[0].mxu0
    %v2202 = vpop.f32.mrb[0].mxu0
    %v2203 = vpop.f32.mrb[0].mxu0
    %2204 = vdwg.mxu0
    %2205 = vrot.lane.b32.xlu0 %v1484, 104
    %v2206 = vpop.permute.xlu0 %2205
    %2207 = vrot.lane.b32.xlu0 %v1484, 72
    %v2208 = vpop.permute.xlu0 %2207
    %v2210 = vsel %vm162, %v2206, 0
    %v2213 = vsel %vm162, %v2208, 0
    %2215 = vmatprep.subr.bf16.mxu0 0
    %2216 = vmatpush1.bf16.xpose.msra.mxu0 %v2213
    %2217 = vmatprep.subr.bf16.mxu0 0
    %2218 = vmatpush1.bf16.xpose.msra.mxu0 0
    %2219 = vmatprep.subr.bf16.mxu0 0
    %2220 = vmatpush1.bf16.xpose.msra.mxu0 0
    %2221 = vmatprep.subr.bf16.mxu0 0
    %2222 = vmatpush1.bf16.xpose.msra.mxu0 0
    %2223 = vmatprep.subr.bf16.mxu0 0
    %2224 = vmatpush1.bf16.xpose.msra.mxu0 0
    %2225 = vmatprep.subr.bf16.mxu0 0
    %2226 = vmatpush1.bf16.xpose.msra.mxu0 0
    %2227 = vmatprep.subr.bf16.mxu0 0
    %2228 = vmatpush1.bf16.xpose.msra.mxu0 0
    %2229 = vmatprep.subr.bf16.mxu0 0
    %2230 = vmatpush1.bf16.xpose.msra.mxu0 0
    %2231 = vmatprep.subr.bf16.mxu0 0
    %2232 = vmatpush1.bf16.xpose.msra.mxu0 0
    %2233 = vmatprep.subr.bf16.mxu0 0
    %2234 = vmatpush1.bf16.xpose.msra.mxu0 0
    %2235 = vmatprep.subr.bf16.mxu0 0
    %2236 = vmatpush1.bf16.xpose.msra.mxu0 0
    %2237 = vmatprep.subr.bf16.mxu0 0
    %2238 = vmatpush1.bf16.xpose.msra.mxu0 0
    %2239 = vmatprep.subr.bf16.mxu0 0
    %2240 = vmatpush1.bf16.xpose.msra.mxu0 0
    %2241 = vmatprep.subr.bf16.mxu0 0
    %2242 = vmatpush1.bf16.xpose.msra.mxu0 0
    %2243 = vmatprep.subr.bf16.mxu0 0
    %2244 = vmatpush1.bf16.xpose.msra.mxu0 0
    %2245 = vmatprep.subr.bf16.mxu0 0
    %2246 = vmatpush1.bf16.xpose.msra.mxu0 0
    %2247 = vmatprep.mubr.bf16.mxu0 0
    %2248 = vmatmul.mubr.bf16.gmra.mrb[0].mxu0 %v2210
    %v2249 = vpop.f32.mrb[0].mxu0
    %v2250 = vadd.f32 0.0, %v2249
    %v2251 = vpop.f32.mrb[0].mxu0
    %v2252 = vpop.f32.mrb[0].mxu0
    %v2253 = vpop.f32.mrb[0].mxu0
    %2254 = vdwg.mxu0
    %v2255 = vmul.f32 %v2200, 0.35355338
    %v2256 = vmul.f32 %v2250, 0.35355338
    %v2257 = vadd.f32 %v2255, %v263
    %v2258 = vadd.f32 %v2256, %v267
    %v2259 = vsel %vm162, %v2257, -inf
    %2260 = vmax.xlane.f32.xlu0 %v2259
    %v2261 = vpop.xlane.xlu0 %2260
    %v2262 = vsel %vm162, %v2258, -inf
    %2263 = vmax.xlane.f32.xlu0 %v2262
    %v2264 = vpop.xlane.xlu0 %2263
    %v2265 = vsub.f32 %v2257, %v2261
    %v2266 = vsub.f32 %v2258, %v2264
    %v2267 = vmul.f32 %v2265, 1.442695
    %v2268 = vpow.pop %v2267
    %v2269 = vmul.f32 %v2266, 1.442695
    %v2270 = vpow.pop %v2269
    %v2271 = vsel %vm162, %v2268, 0.0
    %2272 = vadd.xlane.f32.xlu0 %v2271
    %v2273 = vpop.xlane.xlu0 %2272
    %v2274 = vsel %vm162, %v2270, 0.0
    %2275 = vadd.xlane.f32.xlu0 %v2274
    %v2276 = vpop.xlane.xlu0 %2275
    %v2277 = vrcp.pop %v2273
    %v2278 = vrcp.pop %v2276
    %v2279 = vmul.f32 %v2268, %v2277
    %v2280 = vmul.f32 %v2270, %v2278
    %v2281 = vpack.c.bf16 %v2279, %v2279
    %v2282 = vpack.c.bf16 %v2280, %v2280
    %2283 = vrot.lane.b32.xlu0 %v1483, 40
    %v2284 = vpop.permute.xlu0 %2283
    %v2286 = vsel %vm162, %v2281, 0
    %v2289 = vsel %vm301, %v2284, 0
    %2291 = vmatprep.subr.bf16.mxu0 0
    %2292 = vmatpush1.bf16.msra.mxu0 %v2289
    %2293 = vmatprep.subr.bf16.mxu0 0
    %2294 = vmatpush1.bf16.msra.mxu0 0
    %2295 = vmatprep.subr.bf16.mxu0 0
    %2296 = vmatpush1.bf16.msra.mxu0 0
    %2297 = vmatprep.subr.bf16.mxu0 0
    %2298 = vmatpush1.bf16.msra.mxu0 0
    %2299 = vmatprep.subr.bf16.mxu0 0
    %2300 = vmatpush1.bf16.msra.mxu0 0
    %2301 = vmatprep.subr.bf16.mxu0 0
    %2302 = vmatpush1.bf16.msra.mxu0 0
    %2303 = vmatprep.subr.bf16.mxu0 0
    %2304 = vmatpush1.bf16.msra.mxu0 0
    %2305 = vmatprep.subr.bf16.mxu0 0
    %2306 = vmatpush1.bf16.msra.mxu0 0
    %2307 = vmatprep.subr.bf16.mxu0 0
    %2308 = vmatpush1.bf16.msra.mxu0 0
    %2309 = vmatprep.subr.bf16.mxu0 0
    %2310 = vmatpush1.bf16.msra.mxu0 0
    %2311 = vmatprep.subr.bf16.mxu0 0
    %2312 = vmatpush1.bf16.msra.mxu0 0
    %2313 = vmatprep.subr.bf16.mxu0 0
    %2314 = vmatpush1.bf16.msra.mxu0 0
    %2315 = vmatprep.subr.bf16.mxu0 0
    %2316 = vmatpush1.bf16.msra.mxu0 0
    %2317 = vmatprep.subr.bf16.mxu0 0
    %2318 = vmatpush1.bf16.msra.mxu0 0
    %2319 = vmatprep.subr.bf16.mxu0 0
    %2320 = vmatpush1.bf16.msra.mxu0 0
    %2321 = vmatprep.subr.bf16.mxu0 0
    %2322 = vmatpush1.bf16.msra.mxu0 0
    %2323 = vmatprep.mubr.bf16.mxu0 0
    %2324 = vmatmul.mubr.bf16.gmra.mrb[0].mxu0 %v2286
    %v2325 = vpop.f32.mrb[0].mxu0
    %v2326 = vadd.f32 0.0, %v2325
    %v2327 = vpop.f32.mrb[0].mxu0
    %v2328 = vpop.f32.mrb[0].mxu0
    %v2329 = vpop.f32.mrb[0].mxu0
    %2330 = vdwg.mxu0
    %2331 = vrot.lane.b32.xlu0 %v1484, 40
    %v2332 = vpop.permute.xlu0 %2331
    %v2334 = vsel %vm162, %v2282, 0
    %v2337 = vsel %vm301, %v2332, 0
    %2339 = vmatprep.subr.bf16.mxu0 0
    %2340 = vmatpush1.bf16.msra.mxu0 %v2337
    %2341 = vmatprep.subr.bf16.mxu0 0
    %2342 = vmatpush1.bf16.msra.mxu0 0
    %2343 = vmatprep.subr.bf16.mxu0 0
    %2344 = vmatpush1.bf16.msra.mxu0 0
    %2345 = vmatprep.subr.bf16.mxu0 0
    %2346 = vmatpush1.bf16.msra.mxu0 0
    %2347 = vmatprep.subr.bf16.mxu0 0
    %2348 = vmatpush1.bf16.msra.mxu0 0
    %2349 = vmatprep.subr.bf16.mxu0 0
    %2350 = vmatpush1.bf16.msra.mxu0 0
    %2351 = vmatprep.subr.bf16.mxu0 0
    %2352 = vmatpush1.bf16.msra.mxu0 0
    %2353 = vmatprep.subr.bf16.mxu0 0
    %2354 = vmatpush1.bf16.msra.mxu0 0
    %2355 = vmatprep.subr.bf16.mxu0 0
    %2356 = vmatpush1.bf16.msra.mxu0 0
    %2357 = vmatprep.subr.bf16.mxu0 0
    %2358 = vmatpush1.bf16.msra.mxu0 0
    %2359 = vmatprep.subr.bf16.mxu0 0
    %2360 = vmatpush1.bf16.msra.mxu0 0
    %2361 = vmatprep.subr.bf16.mxu0 0
    %2362 = vmatpush1.bf16.msra.mxu0 0
    %2363 = vmatprep.subr.bf16.mxu0 0
    %2364 = vmatpush1.bf16.msra.mxu0 0
    %2365 = vmatprep.subr.bf16.mxu0 0
    %2366 = vmatpush1.bf16.msra.mxu0 0
    %2367 = vmatprep.subr.bf16.mxu0 0
    %2368 = vmatpush1.bf16.msra.mxu0 0
    %2369 = vmatprep.subr.bf16.mxu0 0
    %2370 = vmatpush1.bf16.msra.mxu0 0
    %2371 = vmatprep.mubr.bf16.mxu0 0
    %2372 = vmatmul.mubr.bf16.gmra.mrb[0].mxu0 %v2334
    %v2373 = vpop.f32.mrb[0].mxu0
    %v2374 = vadd.f32 0.0, %v2373
    %v2375 = vpop.f32.mrb[0].mxu0
    %v2376 = vpop.f32.mrb[0].mxu0
    %v2377 = vpop.f32.mrb[0].mxu0
    %2378 = vdwg.mxu0
    %2381 = vrot.lane.b32.xlu0 %v1878, 8
    %v2382 = vpop.permute.xlu0 %2381
    %2383 = vrot.lane.b32.xlu0 %v1926, 8
    %v2384 = vpop.permute.xlu0 %2383
    %2389 = vrot.lane.b32.xlu0 %v2102, 16
    %v2390 = vpop.permute.xlu0 %2389
    %2391 = vrot.lane.b32.xlu0 %v2150, 16
    %v2392 = vpop.permute.xlu0 %2391
    %2397 = vrot.lane.b32.xlu0 %v2326, 24
    %v2398 = vpop.permute.xlu0 %2397
    %2399 = vrot.lane.b32.xlu0 %v2374, 24
    %v2400 = vpop.permute.xlu0 %2399
    %v2403 = vsel %vm162, %v1654, %v2382
    %v2404 = vsel %vm162, %v1702, %v2384
    %v2405 = vsel %vm1091, %v2403, %v2390
    %v2406 = vsel %vm1091, %v2404, %v2392
    %v2407 = vsel %vm1094, %v2405, %v2398
    %v2408 = vsel %vm1094, %v2406, %v2400
    %v2409 = vpack.c.bf16 %v2408, %v2407
    %s2410 = scalar_lea.vmem %s4, 16
    %v2411 = vld [vmem:[%s2410] sm:$0xf]
    %v2412 = vld [vmem:[%s2410 + $0x4] sm:$0xf]
    %v2413 = vld [vmem:[%s2410 + $0x8] sm:$0xf]
    %v2414 = vld [vmem:[%s2410 + $0xc] sm:$0xf]
    %s2415 = scalar_lea.vmem %s5, 1
    %v2416 = vld [vmem:[%s2415] sm:$0x1]
    %v2418 = vlaneseq
    %v2419 = vshrl.u32 %v2418, 7
    %v2420 = vsub.s32 0, %v2419
    %v2421 = vrot.slane %v2416, %v2420
    %v2427 = vunpack.c.l.b16 %v2411
    %v2428 = vunpack.c.l.b16 %v2412
    %v2429 = vunpack.c.l.b16 %v2413
    %v2430 = vunpack.c.l.b16 %v2414
    %v2431 = vpack.c.b16 %v2428, %v2427
    %v2432 = vpack.c.b16 %v2430, %v2429
    %v2436 = vsel %vm112, %v2409, 0
    %2438 = vmatprep.subr.bf16.mxu0 0
    %2439 = vmatpush1.bf16.msra.mxu0 %v2431
    %2440 = vmatprep.subr.bf16.mxu0 0
    %2441 = vmatpush1.bf16.msra.mxu0 %v2432
    %2442 = vmatprep.subr.bf16.mxu0 0
    %2443 = vmatpush1.bf16.msra.mxu0 0
    %2444 = vmatprep.subr.bf16.mxu0 0
    %2445 = vmatpush1.bf16.msra.mxu0 0
    %2446 = vmatprep.subr.bf16.mxu0 0
    %2447 = vmatpush1.bf16.msra.mxu0 0
    %2448 = vmatprep.subr.bf16.mxu0 0
    %2449 = vmatpush1.bf16.msra.mxu0 0
    %2450 = vmatprep.subr.bf16.mxu0 0
    %2451 = vmatpush1.bf16.msra.mxu0 0
    %2452 = vmatprep.subr.bf16.mxu0 0
    %2453 = vmatpush1.bf16.msra.mxu0 0
    %2454 = vmatprep.subr.bf16.mxu0 0
    %2455 = vmatpush1.bf16.msra.mxu0 0
    %2456 = vmatprep.subr.bf16.mxu0 0
    %2457 = vmatpush1.bf16.msra.mxu0 0
    %2458 = vmatprep.subr.bf16.mxu0 0
    %2459 = vmatpush1.bf16.msra.mxu0 0
    %2460 = vmatprep.subr.bf16.mxu0 0
    %2461 = vmatpush1.bf16.msra.mxu0 0
    %2462 = vmatprep.subr.bf16.mxu0 0
    %2463 = vmatpush1.bf16.msra.mxu0 0
    %2464 = vmatprep.subr.bf16.mxu0 0
    %2465 = vmatpush1.bf16.msra.mxu0 0
    %2466 = vmatprep.subr.bf16.mxu0 0
    %2467 = vmatpush1.bf16.msra.mxu0 0
    %2468 = vmatprep.subr.bf16.mxu0 0
    %2469 = vmatpush1.bf16.msra.mxu0 0
    %2470 = vmatprep.mubr.bf16.mxu0 0
    %2471 = vmatmul.mubr.bf16.gmra.mrb[0].mxu0 %v2436
    %v2472 = vpop.f32.mrb[0].mxu0
    %v2473 = vadd.f32 %v2421, %v2472
    %v2474 = vpop.f32.mrb[0].mxu0
    %v2475 = vpop.f32.mrb[0].mxu0
    %v2476 = vadd.f32 %v2421, %v2475
    %v2477 = vpop.f32.mrb[0].mxu0
    %2478 = vdwg.mxu0
    %v2479 = vadd.f32 %v1411, %v2473
    %v2480 = vadd.f32 %v1412, %v2476
    %v2481 = vsel %vm112, %v2479, 0.0
    %2482 = vadd.xlane.f32.xlu0 %v2481
    %v2483 = vpop.xlane.xlu0 %2482
    %v2484 = vsel %vm112, %v2480, 0.0
    %2485 = vadd.xlane.f32.xlu0 %v2484
    %v2486 = vpop.xlane.xlu0 %2485
    %v2487 = vmul.f32 %v2483, %v1173
    %v2488 = vmul.f32 %v2486, %v1173
    %v2489 = vsub.f32 %v2479, %v2487
    %v2490 = vsub.f32 %v2480, %v2488
    %v2491 = vmul.f32 %v2489, %v2489
    %v2492 = vmul.f32 %v2490, %v2490
    %v2493 = vsel %vm112, %v2491, 0.0
    %2494 = vadd.xlane.f32.xlu0 %v2493
    %v2495 = vpop.xlane.xlu0 %2494
    %v2496 = vsel %vm112, %v2492, 0.0
    %2497 = vadd.xlane.f32.xlu0 %v2496
    %v2498 = vpop.xlane.xlu0 %2497
    %v2499 = vmul.f32 %v2495, %v1173
    %v2500 = vmul.f32 %v2498, %v1173
    %v2501 = vadd.f32 %v2499, 1e-05
    %v2502 = vadd.f32 %v2500, 1e-05
    %v2503 = vrsqrt.pop %v2501
    %v2504 = vrsqrt.pop %v2502
    %v2505 = vmul.f32 %v2489, %v2503
    %v2506 = vmul.f32 %v2490, %v2504
    %s2507 = scalar_lea.vmem %s10, 1
    %v2508 = vld [vmem:[%s2507] sm:$0x1]
    %v2510 = vlaneseq
    %v2511 = vshrl.u32 %v2510, 7
    %v2512 = vsub.s32 0, %v2511
    %v2513 = vrot.slane %v2508, %v2512
    %v2515 = vmul.f32 %v2505, %v2513
    %v2516 = vmul.f32 %v2506, %v2513
    %s2517 = scalar_lea.vmem %s11, 1
    %v2518 = vld [vmem:[%s2517] sm:$0x1]
    %v2520 = vlaneseq
    %v2521 = vshrl.u32 %v2520, 7
    %v2522 = vsub.s32 0, %v2521
    %v2523 = vrot.slane %v2518, %v2522
    %v2525 = vadd.f32 %v2515, %v2523
    %v2526 = vadd.f32 %v2516, %v2523
    %v2527 = vpack.c.bf16 %v2526, %v2525
    %s2528 = scalar_lea.vmem %s6, 16
    %v2529 = vld [vmem:[%s2528] sm:$0xf]
    %v2530 = vld [vmem:[%s2528 + $0x4] sm:$0xf]
    %v2531 = vld [vmem:[%s2528 + $0x8] sm:$0xf]
    %v2532 = vld [vmem:[%s2528 + $0xc] sm:$0xf]
    %s2533 = scalar_lea.vmem %s7, 1
    %v2534 = vld [vmem:[%s2533] sm:$0x1]
    %v2536 = vlaneseq
    %v2537 = vshrl.u32 %v2536, 7
    %v2538 = vsub.s32 0, %v2537
    %v2539 = vrot.slane %v2534, %v2538
    %v2545 = vunpack.c.l.b16 %v2529
    %v2546 = vunpack.c.l.b16 %v2530
    %v2547 = vunpack.c.l.b16 %v2531
    %v2548 = vunpack.c.l.b16 %v2532
    %v2549 = vpack.c.b16 %v2546, %v2545
    %v2550 = vpack.c.b16 %v2548, %v2547
    %v2554 = vsel %vm112, %v2527, 0
    %2556 = vmatprep.subr.bf16.mxu0 0
    %2557 = vmatpush1.bf16.msra.mxu0 %v2549
    %2558 = vmatprep.subr.bf16.mxu0 0
    %2559 = vmatpush1.bf16.msra.mxu0 %v2550
    %2560 = vmatprep.subr.bf16.mxu0 0
    %2561 = vmatpush1.bf16.msra.mxu0 0
    %2562 = vmatprep.subr.bf16.mxu0 0
    %2563 = vmatpush1.bf16.msra.mxu0 0
    %2564 = vmatprep.subr.bf16.mxu0 0
    %2565 = vmatpush1.bf16.msra.mxu0 0
    %2566 = vmatprep.subr.bf16.mxu0 0
    %2567 = vmatpush1.bf16.msra.mxu0 0
    %2568 = vmatprep.subr.bf16.mxu0 0
    %2569 = vmatpush1.bf16.msra.mxu0 0
    %2570 = vmatprep.subr.bf16.mxu0 0
    %2571 = vmatpush1.bf16.msra.mxu0 0
    %2572 = vmatprep.subr.bf16.mxu0 0
    %2573 = vmatpush1.bf16.msra.mxu0 0
    %2574 = vmatprep.subr.bf16.mxu0 0
    %2575 = vmatpush1.bf16.msra.mxu0 0
    %2576 = vmatprep.subr.bf16.mxu0 0
    %2577 = vmatpush1.bf16.msra.mxu0 0
    %2578 = vmatprep.subr.bf16.mxu0 0
    %2579 = vmatpush1.bf16.msra.mxu0 0
    %2580 = vmatprep.subr.bf16.mxu0 0
    %2581 = vmatpush1.bf16.msra.mxu0 0
    %2582 = vmatprep.subr.bf16.mxu0 0
    %2583 = vmatpush1.bf16.msra.mxu0 0
    %2584 = vmatprep.subr.bf16.mxu0 0
    %2585 = vmatpush1.bf16.msra.mxu0 0
    %2586 = vmatprep.subr.bf16.mxu0 0
    %2587 = vmatpush1.bf16.msra.mxu0 0
    %2588 = vmatprep.mubr.bf16.mxu0 0
    %2589 = vmatmul.mubr.bf16.gmra.mrb[0].mxu0 %v2554
    %v2590 = vpop.f32.mrb[0].mxu0
    %v2591 = vadd.f32 %v2539, %v2590
    %v2592 = vpop.f32.mrb[0].mxu0
    %v2593 = vpop.f32.mrb[0].mxu0
    %v2594 = vadd.f32 %v2539, %v2593
    %v2595 = vpop.f32.mrb[0].mxu0
    %2596 = vdwg.mxu0
    %v2597 = vmax.f32 %v2591, 0.0
    %v2598 = vmax.f32 %v2594, 0.0
    %v2599 = vpack.c.bf16 %v2598, %v2597
    %s2600 = scalar_lea.vmem %s8, 32
    %v2601 = vld [vmem:[%s2600] sm:$0xf]
    %v2602 = vld [vmem:[%s2600 + $0x4] sm:$0xf]
    %v2603 = vld [vmem:[%s2600 + $0x8] sm:$0xf]
    %v2604 = vld [vmem:[%s2600 + $0xc] sm:$0xf]
    %v2605 = vld [vmem:[%s2600 + $0x10] sm:$0xf]
    %v2606 = vld [vmem:[%s2600 + $0x14] sm:$0xf]
    %v2607 = vld [vmem:[%s2600 + $0x18] sm:$0xf]
    %v2608 = vld [vmem:[%s2600 + $0x1c] sm:$0xf]
    %s2609 = scalar_lea.vmem %s9, 1
    %v2610 = vld [vmem:[%s2609] sm:$0x1]
    %v2612 = vlaneseq
    %v2613 = vshrl.u32 %v2612, 7
    %v2614 = vsub.s32 0, %v2613
    %v2615 = vrot.slane %v2610, %v2614
    %v2625 = vunpack.c.l.b16 %v2601
    %v2626 = vunpack.c.l.b16 %v2602
    %v2627 = vunpack.c.l.b16 %v2603
    %v2628 = vunpack.c.l.b16 %v2604
    %v2629 = vunpack.c.l.b16 %v2605
    %v2630 = vunpack.c.l.b16 %v2606
    %v2631 = vunpack.c.l.b16 %v2607
    %v2632 = vunpack.c.l.b16 %v2608
    %v2633 = vpack.c.b16 %v2626, %v2625
    %v2634 = vpack.c.b16 %v2628, %v2627
    %v2635 = vpack.c.b16 %v2630, %v2629
    %v2636 = vpack.c.b16 %v2632, %v2631
    %v2642 = vsel %vm1322, %v2599, 0
    %2644 = vmatprep.subr.bf16.mxu0 0
    %2645 = vmatpush1.bf16.msra.mxu0 %v2633
    %2646 = vmatprep.subr.bf16.mxu0 0
    %2647 = vmatpush1.bf16.msra.mxu0 %v2634
    %2648 = vmatprep.subr.bf16.mxu0 0
    %2649 = vmatpush1.bf16.msra.mxu0 %v2635
    %2650 = vmatprep.subr.bf16.mxu0 0
    %2651 = vmatpush1.bf16.msra.mxu0 %v2636
    %2652 = vmatprep.subr.bf16.mxu0 0
    %2653 = vmatpush1.bf16.msra.mxu0 0
    %2654 = vmatprep.subr.bf16.mxu0 0
    %2655 = vmatpush1.bf16.msra.mxu0 0
    %2656 = vmatprep.subr.bf16.mxu0 0
    %2657 = vmatpush1.bf16.msra.mxu0 0
    %2658 = vmatprep.subr.bf16.mxu0 0
    %2659 = vmatpush1.bf16.msra.mxu0 0
    %2660 = vmatprep.subr.bf16.mxu0 0
    %2661 = vmatpush1.bf16.msra.mxu0 0
    %2662 = vmatprep.subr.bf16.mxu0 0
    %2663 = vmatpush1.bf16.msra.mxu0 0
    %2664 = vmatprep.subr.bf16.mxu0 0
    %2665 = vmatpush1.bf16.msra.mxu0 0
    %2666 = vmatprep.subr.bf16.mxu0 0
    %2667 = vmatpush1.bf16.msra.mxu0 0
    %2668 = vmatprep.subr.bf16.mxu0 0
    %2669 = vmatpush1.bf16.msra.mxu0 0
    %2670 = vmatprep.subr.bf16.mxu0 0
    %2671 = vmatpush1.bf16.msra.mxu0 0
    %2672 = vmatprep.subr.bf16.mxu0 0
    %2673 = vmatpush1.bf16.msra.mxu0 0
    %2674 = vmatprep.subr.bf16.mxu0 0
    %2675 = vmatpush1.bf16.msra.mxu0 0
    %2676 = vmatprep.mubr.bf16.mxu0 0
    %2677 = vmatmul.mubr.bf16.gmra.mrb[0].mxu0 %v2642
    %v2678 = vpop.f32.mrb[0].mxu0
    %v2679 = vadd.f32 %v2615, %v2678
    %v2680 = vpop.f32.mrb[0].mxu0
    %v2681 = vpop.f32.mrb[0].mxu0
    %v2682 = vadd.f32 %v2615, %v2681
    %v2683 = vpop.f32.mrb[0].mxu0
    %2684 = vdwg.mxu0
    %v2685 = vadd.f32 %v2525, %v2679
    %v2686 = vadd.f32 %v2526, %v2682
    %v2687 = vsel %vm112, %v2685, 0.0
    %2688 = vadd.xlane.f32.xlu0 %v2687
    %v2689 = vpop.xlane.xlu0 %2688
    %v2690 = vsel %vm112, %v2686, 0.0
    %2691 = vadd.xlane.f32.xlu0 %v2690
    %v2692 = vpop.xlane.xlu0 %2691
    %v2693 = vmul.f32 %v2689, %v1173
    %v2694 = vmul.f32 %v2692, %v1173
    %v2695 = vsub.f32 %v2685, %v2693
    %v2696 = vsub.f32 %v2686, %v2694
    %v2697 = vmul.f32 %v2695, %v2695
    %v2698 = vmul.f32 %v2696, %v2696
    %v2699 = vsel %vm112, %v2697, 0.0
    %2700 = vadd.xlane.f32.xlu0 %v2699
    %v2701 = vpop.xlane.xlu0 %2700
    %v2702 = vsel %vm112, %v2698, 0.0
    %2703 = vadd.xlane.f32.xlu0 %v2702
    %v2704 = vpop.xlane.xlu0 %2703
    %v2705 = vmul.f32 %v2701, %v1173
    %v2706 = vmul.f32 %v2704, %v1173
    %v2707 = vadd.f32 %v2705, 1e-05
    %v2708 = vadd.f32 %v2706, 1e-05
    %v2709 = vrsqrt.pop %v2707
    %v2710 = vrsqrt.pop %v2708
    %v2711 = vmul.f32 %v2695, %v2709
    %v2712 = vmul.f32 %v2696, %v2710
    %s2713 = scalar_lea.vmem %s12, 1
    %v2714 = vld [vmem:[%s2713] sm:$0x1]
    %v2716 = vlaneseq
    %v2717 = vshrl.u32 %v2716, 7
    %v2718 = vsub.s32 0, %v2717
    %v2719 = vrot.slane %v2714, %v2718
    %v2721 = vmul.f32 %v2711, %v2719
    %v2722 = vmul.f32 %v2712, %v2719
    %s2723 = scalar_lea.vmem %s13, 1
    %v2724 = vld [vmem:[%s2723] sm:$0x1]
    %v2726 = vlaneseq
    %v2727 = vshrl.u32 %v2726, 7
    %v2728 = vsub.s32 0, %v2727
    %v2729 = vrot.slane %v2724, %v2728
    %v2731 = vadd.f32 %v2721, %v2729
    %v2732 = vadd.f32 %v2722, %v2729
    %v2733 = vpack.c.bf16 %v2732, %v2731
    %v2734 = vld [vmem:[%s14] sm:$0xf]
    %v2735 = vld [vmem:[%s14 + $0x4] sm:$0xf]
    %v2736 = vld [vmem:[%s14 + $0x8] sm:$0xf]
    %v2737 = vld [vmem:[%s14 + $0xc] sm:$0xf]
    %v2738 = vld [vmem:[%s15] sm:$0x1]
    %v2740 = vlaneseq
    %v2741 = vshrl.u32 %v2740, 7
    %v2742 = vsub.s32 0, %v2741
    %v2743 = vrot.slane %v2738, %v2742
    %v2749 = vunpack.c.l.b16 %v2734
    %v2750 = vunpack.c.l.b16 %v2735
    %v2751 = vunpack.c.l.b16 %v2736
    %v2752 = vunpack.c.l.b16 %v2737
    %v2753 = vpack.c.b16 %v2750, %v2749
    %v2754 = vpack.c.b16 %v2752, %v2751
    %v2758 = vsel %vm112, %v2733, 0
    %2760 = vmatprep.subr.bf16.mxu0 0
    %2761 = vmatpush1.bf16.msra.mxu0 %v2753
    %2762 = vmatprep.subr.bf16.mxu0 0
    %2763 = vmatpush1.bf16.msra.mxu0 %v2754
    %2764 = vmatprep.subr.bf16.mxu0 0
    %2765 = vmatpush1.bf16.msra.mxu0 0
    %2766 = vmatprep.subr.bf16.mxu0 0
    %2767 = vmatpush1.bf16.msra.mxu0 0
    %2768 = vmatprep.subr.bf16.mxu0 0
    %2769 = vmatpush1.bf16.msra.mxu0 0
    %2770 = vmatprep.subr.bf16.mxu0 0
    %2771 = vmatpush1.bf16.msra.mxu0 0
    %2772 = vmatprep.subr.bf16.mxu0 0
    %2773 = vmatpush1.bf16.msra.mxu0 0
    %2774 = vmatprep.subr.bf16.mxu0 0
    %2775 = vmatpush1.bf16.msra.mxu0 0
    %2776 = vmatprep.subr.bf16.mxu0 0
    %2777 = vmatpush1.bf16.msra.mxu0 0
    %2778 = vmatprep.subr.bf16.mxu0 0
    %2779 = vmatpush1.bf16.msra.mxu0 0
    %2780 = vmatprep.subr.bf16.mxu0 0
    %2781 = vmatpush1.bf16.msra.mxu0 0
    %2782 = vmatprep.subr.bf16.mxu0 0
    %2783 = vmatpush1.bf16.msra.mxu0 0
    %2784 = vmatprep.subr.bf16.mxu0 0
    %2785 = vmatpush1.bf16.msra.mxu0 0
    %2786 = vmatprep.subr.bf16.mxu0 0
    %2787 = vmatpush1.bf16.msra.mxu0 0
    %2788 = vmatprep.subr.bf16.mxu0 0
    %2789 = vmatpush1.bf16.msra.mxu0 0
    %2790 = vmatprep.subr.bf16.mxu0 0
    %2791 = vmatpush1.bf16.msra.mxu0 0
    %2792 = vmatprep.mubr.bf16.mxu0 0
    %2793 = vmatmul.mubr.bf16.gmra.mrb[0].mxu0 %v2758
    %v2794 = vpop.f32.mrb[0].mxu0
    %v2795 = vadd.f32 %v2743, %v2794
    %v2796 = vpop.f32.mrb[0].mxu0
    %v2797 = vpop.f32.mrb[0].mxu0
    %v2798 = vadd.f32 %v2743, %v2797
    %v2799 = vpop.f32.mrb[0].mxu0
    %2800 = vdwg.mxu0
    %v2801 = vld [vmem:[%s16] sm:$0xff]
    %v2802 = vlaneseq
    %v2803 = vand.u32 %v2802, 127
    %vm2804 = vcmp.eq.s32.totalorder %v2803, 6
    %v2805 = vsel %vm2804, 0.0, -10000.0
    %v2808 = vunpack.c.l.s4 1966171168
    %v2809 = vunpack.c.0.s8 %v2808
    %v2810 = vlaneseq
    %v2811 = vshrl.u32 %v2810, 7
    %v2812 = vsub.s32 %v2809, %v2811
    %v2813 = vrot.slane %v2805, %v2812
    %v2814 = vcombine.high %v2813, %v2813
    %v2816 = vunpack.c.l.s4 1966171168
    %v2817 = vunpack.c.0.s8 %v2816
    %v2818 = vlaneseq
    %v2819 = vshrl.u32 %v2818, 7
    %v2820 = vsub.s32 %v2817, %v2819
    %v2821 = vrot.slane %v2813, %v2820
    %v2823 = vunpack.c.l.s4 1966171168
    %v2824 = vunpack.c.0.s8 %v2823
    %v2825 = vlaneseq
    %v2826 = vshrl.u32 %v2825, 7
    %v2827 = vsub.s32 %v2824, %v2826
    %v2828 = vrot.slane %v2814, %v2827
    %v2829 = vlaneseq
    %v2830 = vshrl.u32 %v2829, 7
    %v2831 = vsub.s32 0, %v2830
    %v2832 = vrot.slane %v2821, %v2831
    %v2833 = vlaneseq
    %v2834 = vshrl.u32 %v2833, 7
    %v2835 = vsub.s32 0, %v2834
    %v2836 = vrot.slane %v2828, %v2835
    %v2839 = vadd.f32 %v2801, %v2832
    %v2840 = vadd.f32 %v2801, %v2836
    %v2841 = vsel %vm162, %v2839, -inf
    %2842 = vmax.xlane.f32.xlu0 %v2841
    %v2843 = vpop.xlane.xlu0 %2842
    %v2844 = vsel %vm162, %v2840, -inf
    %2845 = vmax.xlane.f32.xlu0 %v2844
    %v2846 = vpop.xlane.xlu0 %2845
    %v2849 = vlaneseq
    %v2850 = vshrl.u32 %v2849, 7
    %v2851 = vsub.s32 0, %v2850
    %v2852 = vrot.slane %v2795, %v2851
    %2854 = vbcast.lane.b32.xlu0 %v2852, 256
    %v2855 = vpop.permute.xlu0 %2854
    %v2856 = vlaneseq
    %v2857 = vshrl.u32 %v2856, 7
    %v2858 = vsub.s32 0, %v2857
    %v2859 = vrot.slane %v2798, %v2858
    %2861 = vbcast.lane.b32.xlu0 %v2859, 256
    %v2862 = vpop.permute.xlu0 %2861
    %v2865 = vadd.f32 %v2843, %v2855
    %v2866 = vadd.f32 %v2846, %v2862
    %2868 = vset.pattern.permute.xlu0 0
    %2869 = vperm.xlu0 %2868, %v60
    %v2870 = vpop.permute.xlu0 %2869
    %v2871 = vlaneseq
    %v2872 = vshrl.u32 %v2871, 7
    %v2873 = vsub.s32 0, %v2872
    %v2874 = vrot.slane %v2870, %v2873
    %v2875 = vlaneseq
    %v2876 = vshrl.u32 %v2875, 7
    %v2877 = vsub.s32 1, %v2876
    %v2878 = vrot.slane %v2870, %v2877
    %v2881 = vmul.f32 %v2865, %v2874
    %v2882 = vmul.f32 %v2866, %v2878
    %2884 = vset.pattern.permute.xlu0 0
    %2885 = vperm.xlu0 %2884, %v61
    %v2886 = vpop.permute.xlu0 %2885
    %v2888 = vmul.f32 %v2805, %v2886
    %v2890 = vlaneseq
    %v2891 = vshrl.u32 %v2890, 7
    %v2892 = vsub.s32 0, %v2891
    %v2893 = vrot.slane %v2888, %v2892
    %2895 = vbcast.lane.b32.xlu0 %v2893, 256
    %v2896 = vpop.permute.xlu0 %2895
    %v2897 = vlaneseq
    %v2898 = vshrl.u32 %v2897, 7
    %v2899 = vsub.s32 1, %v2898
    %v2900 = vrot.slane %v2888, %v2899
    %2902 = vbcast.lane.b32.xlu0 %v2900, 256
    %v2903 = vpop.permute.xlu0 %2902
    %v2906 = vadd.f32 %v2881, %v2896
    %v2907 = vadd.f32 %v2882, %v2903
    %2910 = vset.pattern.permute.xlu0 0
    %2911 = vperm.xlu0 %2910, %v2906
    %v2912 = vpop.permute.xlu0 %2911
    %2913 = vset.pattern.permute.xlu0 0
    %2914 = vperm.xlu0 %2913, %v2907
    %v2915 = vpop.permute.xlu0 %2914
    %v2916 = vlaneseq
    %v2917 = vshrl.u32 %v2916, 7
    %v2918 = vsub.s32 %v2803, %v2917
    %v2919 = vrot.slane %v2912, %v2918
    %v2920 = vlaneseq
    %v2921 = vshrl.u32 %v2920, 7
    %v2922 = vsub.s32 %v2803, %v2921
    %v2923 = vrot.slane %v2915, %v2922
    %vm2924 = vcmask 1041409
    %vm2925 = vcmask 1042434
    %v2926 = vsel %vm2925, %v2919, %v2919
    %vm2927 = vcmask 1043459
    %v2928 = vsel %vm2927, %v2919, %v2926
    %vm2929 = vcmask 1044484
    %v2930 = vsel %vm2929, %v2919, %v2928
    %vm2931 = vcmask 1045509
    %v2932 = vsel %vm2931, %v2919, %v2930
    %vm2933 = vcmask 1046534
    %v2934 = vsel %vm2933, %v2919, %v2932
    %vm2935 = vcmask 1047559
    %v2936 = vsel %vm2935, %v2919, %v2934
    %v2937 = vsel %vm2925, %v2923, %v2923
    %v2938 = vsel %vm2927, %v2923, %v2937
    %v2939 = vsel %vm2929, %v2923, %v2938
    %v2940 = vsel %vm2931, %v2923, %v2939
    %v2941 = vsel %vm2933, %v2923, %v2940
    %v2942 = vsel %vm2935, %v2923, %v2941
    %v2945 = vadd.f32 %v2801, %v2936
    %v2946 = vadd.f32 %v2801, %v2942
    %v2947 = vsel %vm162, %v2945, -inf
    %2948 = vmax.xlane.f32.xlu0 %v2947
    %v2949 = vpop.xlane.xlu0 %2948
    %v2950 = vsel %vm162, %v2946, -inf
    %2951 = vmax.xlane.f32.xlu0 %v2950
    %v2952 = vpop.xlane.xlu0 %2951
    %2953 = vmax.index.xlane.f32.xlu0 %v2947
    %v2954 = vpop.xlane.xlu0 %2953
    %2955 = vmax.index.xlane.f32.xlu0 %v2950
    %v2956 = vpop.xlane.xlu0 %2955
    %v2957 = vlaneseq
    %v2958 = vshrl.u32 %v2957, 7
    %v2959 = vsub.s32 1, %v2958
    %v2960 = vrot.slane %v2795, %v2959
    %2962 = vbcast.lane.b32.xlu0 %v2960, 256
    %v2963 = vpop.permute.xlu0 %2962
    %v2964 = vlaneseq
    %v2965 = vshrl.u32 %v2964, 7
    %v2966 = vsub.s32 1, %v2965
    %v2967 = vrot.slane %v2798, %v2966
    %2969 = vbcast.lane.b32.xlu0 %v2967, 256
    %v2970 = vpop.permute.xlu0 %2969
    %v2973 = vadd.f32 %v2949, %v2963
    %v2974 = vadd.f32 %v2952, %v2970
    %2975 = vset.pattern.permute.xlu0 1
    %2976 = vperm.xlu0 %2975, %v60
    %v2977 = vpop.permute.xlu0 %2976
    %v2978 = vlaneseq
    %v2979 = vshrl.u32 %v2978, 7
    %v2980 = vsub.s32 0, %v2979
    %v2981 = vrot.slane %v2977, %v2980
    %v2982 = vlaneseq
    %v2983 = vshrl.u32 %v2982, 7
    %v2984 = vsub.s32 1, %v2983
    %v2985 = vrot.slane %v2977, %v2984
    %v2988 = vmul.f32 %v2973, %v2981
    %v2989 = vmul.f32 %v2974, %v2985
    %2990 = vset.pattern.permute.xlu0 1
    %2991 = vperm.xlu0 %2990, %v61
    %v2992 = vpop.permute.xlu0 %2991
    %v2993 = vlaneseq
    %v2994 = vshrl.u32 %v2993, 7
    %v2995 = vsub.s32 0, %v2994
    %v2996 = vrot.slane %v2992, %v2995
    %v2997 = vlaneseq
    %v2998 = vshrl.u32 %v2997, 7
    %v2999 = vsub.s32 1, %v2998
    %v3000 = vrot.slane %v2992, %v2999
    %v3003 = vmul.f32 %v2906, %v2996
    %v3004 = vmul.f32 %v2907, %v3000
    %v3005 = vadd.f32 %v2988, %v3003
    %v3006 = vadd.f32 %v2989, %v3004
    %3009 = vset.pattern.permute.xlu0 0
    %3010 = vperm.xlu0 %3009, %v3005
    %v3011 = vpop.permute.xlu0 %3010
    %3012 = vset.pattern.permute.xlu0 0
    %3013 = vperm.xlu0 %3012, %v3006
    %v3014 = vpop.permute.xlu0 %3013
    %v3015 = vlaneseq
    %v3016 = vshrl.u32 %v3015, 7
    %v3017 = vsub.s32 %v2803, %v3016
    %v3018 = vrot.slane %v3011, %v3017
    %v3019 = vlaneseq
    %v3020 = vshrl.u32 %v3019, 7
    %v3021 = vsub.s32 %v2803, %v3020
    %v3022 = vrot.slane %v3014, %v3021
    %v3023 = vsel %vm2925, %v3018, %v3018
    %v3024 = vsel %vm2927, %v3018, %v3023
    %v3025 = vsel %vm2929, %v3018, %v3024
    %v3026 = vsel %vm2931, %v3018, %v3025
    %v3027 = vsel %vm2933, %v3018, %v3026
    %v3028 = vsel %vm2935, %v3018, %v3027
    %v3029 = vsel %vm2925, %v3022, %v3022
    %v3030 = vsel %vm2927, %v3022, %v3029
    %v3031 = vsel %vm2929, %v3022, %v3030
    %v3032 = vsel %vm2931, %v3022, %v3031
    %v3033 = vsel %vm2933, %v3022, %v3032
    %v3034 = vsel %vm2935, %v3022, %v3033
    %v3037 = vadd.f32 %v2801, %v3028
    %v3038 = vadd.f32 %v2801, %v3034
    %v3039 = vsel %vm162, %v3037, -inf
    %3040 = vmax.xlane.f32.xlu0 %v3039
    %v3041 = vpop.xlane.xlu0 %3040
    %v3042 = vsel %vm162, %v3038, -inf
    %3043 = vmax.xlane.f32.xlu0 %v3042
    %v3044 = vpop.xlane.xlu0 %3043
    %3045 = vmax.index.xlane.f32.xlu0 %v3039
    %v3046 = vpop.xlane.xlu0 %3045
    %3047 = vmax.index.xlane.f32.xlu0 %v3042
    %v3048 = vpop.xlane.xlu0 %3047
    %v3049 = vlaneseq
    %v3050 = vshrl.u32 %v3049, 7
    %v3051 = vsub.s32 2, %v3050
    %v3052 = vrot.slane %v2795, %v3051
    %3054 = vbcast.lane.b32.xlu0 %v3052, 256
    %v3055 = vpop.permute.xlu0 %3054
    %v3056 = vlaneseq
    %v3057 = vshrl.u32 %v3056, 7
    %v3058 = vsub.s32 2, %v3057
    %v3059 = vrot.slane %v2798, %v3058
    %3061 = vbcast.lane.b32.xlu0 %v3059, 256
    %v3062 = vpop.permute.xlu0 %3061
    %v3065 = vadd.f32 %v3041, %v3055
    %v3066 = vadd.f32 %v3044, %v3062
    %3067 = vset.pattern.permute.xlu0 2
    %3068 = vperm.xlu0 %3067, %v60
    %v3069 = vpop.permute.xlu0 %3068
    %v3070 = vlaneseq
    %v3071 = vshrl.u32 %v3070, 7
    %v3072 = vsub.s32 0, %v3071
    %v3073 = vrot.slane %v3069, %v3072
    %v3074 = vlaneseq
    %v3075 = vshrl.u32 %v3074, 7
    %v3076 = vsub.s32 1, %v3075
    %v3077 = vrot.slane %v3069, %v3076
    %v3080 = vmul.f32 %v3065, %v3073
    %v3081 = vmul.f32 %v3066, %v3077
    %3082 = vset.pattern.permute.xlu0 2
    %3083 = vperm.xlu0 %3082, %v61
    %v3084 = vpop.permute.xlu0 %3083
    %v3085 = vlaneseq
    %v3086 = vshrl.u32 %v3085, 7
    %v3087 = vsub.s32 0, %v3086
    %v3088 = vrot.slane %v3084, %v3087
    %v3089 = vlaneseq
    %v3090 = vshrl.u32 %v3089, 7
    %v3091 = vsub.s32 1, %v3090
    %v3092 = vrot.slane %v3084, %v3091
    %v3095 = vmul.f32 %v3005, %v3088
    %v3096 = vmul.f32 %v3006, %v3092
    %v3097 = vadd.f32 %v3080, %v3095
    %v3098 = vadd.f32 %v3081, %v3096
    %3101 = vset.pattern.permute.xlu0 0
    %3102 = vperm.xlu0 %3101, %v3097
    %v3103 = vpop.permute.xlu0 %3102
    %3104 = vset.pattern.permute.xlu0 0
    %3105 = vperm.xlu0 %3104, %v3098
    %v3106 = vpop.permute.xlu0 %3105
    %v3107 = vlaneseq
    %v3108 = vshrl.u32 %v3107, 7
    %v3109 = vsub.s32 %v2803, %v3108
    %v3110 = vrot.slane %v3103, %v3109
    %v3111 = vlaneseq
    %v3112 = vshrl.u32 %v3111, 7
    %v3113 = vsub.s32 %v2803, %v3112
    %v3114 = vrot.slane %v3106, %v3113
    %v3115 = vsel %vm2925, %v3110, %v3110
    %v3116 = vsel %vm2927, %v3110, %v3115
    %v3117 = vsel %vm2929, %v3110, %v3116
    %v3118 = vsel %vm2931, %v3110, %v3117
    %v3119 = vsel %vm2933, %v3110, %v3118
    %v3120 = vsel %vm2935, %v3110, %v3119
    %v3121 = vsel %vm2925, %v3114, %v3114
    %v3122 = vsel %vm2927, %v3114, %v3121
    %v3123 = vsel %vm2929, %v3114, %v3122
    %v3124 = vsel %vm2931, %v3114, %v3123
    %v3125 = vsel %vm2933, %v3114, %v3124
    %v3126 = vsel %vm2935, %v3114, %v3125
    %v3129 = vadd.f32 %v2801, %v3120
    %v3130 = vadd.f32 %v2801, %v3126
    %v3131 = vsel %vm162, %v3129, -inf
    %3132 = vmax.xlane.f32.xlu0 %v3131
    %v3133 = vpop.xlane.xlu0 %3132
    %v3134 = vsel %vm162, %v3130, -inf
    %3135 = vmax.xlane.f32.xlu0 %v3134
    %v3136 = vpop.xlane.xlu0 %3135
    %3137 = vmax.index.xlane.f32.xlu0 %v3131
    %v3138 = vpop.xlane.xlu0 %3137
    %3139 = vmax.index.xlane.f32.xlu0 %v3134
    %v3140 = vpop.xlane.xlu0 %3139
    %v3141 = vlaneseq
    %v3142 = vshrl.u32 %v3141, 7
    %v3143 = vsub.s32 3, %v3142
    %v3144 = vrot.slane %v2795, %v3143
    %3146 = vbcast.lane.b32.xlu0 %v3144, 256
    %v3147 = vpop.permute.xlu0 %3146
    %v3148 = vlaneseq
    %v3149 = vshrl.u32 %v3148, 7
    %v3150 = vsub.s32 3, %v3149
    %v3151 = vrot.slane %v2798, %v3150
    %3153 = vbcast.lane.b32.xlu0 %v3151, 256
    %v3154 = vpop.permute.xlu0 %3153
    %v3157 = vadd.f32 %v3133, %v3147
    %v3158 = vadd.f32 %v3136, %v3154
    %3159 = vset.pattern.permute.xlu0 3
    %3160 = vperm.xlu0 %3159, %v60
    %v3161 = vpop.permute.xlu0 %3160
    %v3162 = vlaneseq
    %v3163 = vshrl.u32 %v3162, 7
    %v3164 = vsub.s32 0, %v3163
    %v3165 = vrot.slane %v3161, %v3164
    %v3166 = vlaneseq
    %v3167 = vshrl.u32 %v3166, 7
    %v3168 = vsub.s32 1, %v3167
    %v3169 = vrot.slane %v3161, %v3168
    %v3172 = vmul.f32 %v3157, %v3165
    %v3173 = vmul.f32 %v3158, %v3169
    %3174 = vset.pattern.permute.xlu0 3
    %3175 = vperm.xlu0 %3174, %v61
    %v3176 = vpop.permute.xlu0 %3175
    %v3177 = vlaneseq
    %v3178 = vshrl.u32 %v3177, 7
    %v3179 = vsub.s32 0, %v3178
    %v3180 = vrot.slane %v3176, %v3179
    %v3181 = vlaneseq
    %v3182 = vshrl.u32 %v3181, 7
    %v3183 = vsub.s32 1, %v3182
    %v3184 = vrot.slane %v3176, %v3183
    %v3187 = vmul.f32 %v3097, %v3180
    %v3188 = vmul.f32 %v3098, %v3184
    %v3189 = vadd.f32 %v3172, %v3187
    %v3190 = vadd.f32 %v3173, %v3188
    %3193 = vset.pattern.permute.xlu0 0
    %3194 = vperm.xlu0 %3193, %v3189
    %v3195 = vpop.permute.xlu0 %3194
    %3196 = vset.pattern.permute.xlu0 0
    %3197 = vperm.xlu0 %3196, %v3190
    %v3198 = vpop.permute.xlu0 %3197
    %v3199 = vlaneseq
    %v3200 = vshrl.u32 %v3199, 7
    %v3201 = vsub.s32 %v2803, %v3200
    %v3202 = vrot.slane %v3195, %v3201
    %v3203 = vlaneseq
    %v3204 = vshrl.u32 %v3203, 7
    %v3205 = vsub.s32 %v2803, %v3204
    %v3206 = vrot.slane %v3198, %v3205
    %v3207 = vsel %vm2925, %v3202, %v3202
    %v3208 = vsel %vm2927, %v3202, %v3207
    %v3209 = vsel %vm2929, %v3202, %v3208
    %v3210 = vsel %vm2931, %v3202, %v3209
    %v3211 = vsel %vm2933, %v3202, %v3210
    %v3212 = vsel %vm2935, %v3202, %v3211
    %v3213 = vsel %vm2925, %v3206, %v3206
    %v3214 = vsel %vm2927, %v3206, %v3213
    %v3215 = vsel %vm2929, %v3206, %v3214
    %v3216 = vsel %vm2931, %v3206, %v3215
    %v3217 = vsel %vm2933, %v3206, %v3216
    %v3218 = vsel %vm2935, %v3206, %v3217
    %v3221 = vadd.f32 %v2801, %v3212
    %v3222 = vadd.f32 %v2801, %v3218
    %v3223 = vsel %vm162, %v3221, -inf
    %3224 = vmax.xlane.f32.xlu0 %v3223
    %v3225 = vpop.xlane.xlu0 %3224
    %v3226 = vsel %vm162, %v3222, -inf
    %3227 = vmax.xlane.f32.xlu0 %v3226
    %v3228 = vpop.xlane.xlu0 %3227
    %3229 = vmax.index.xlane.f32.xlu0 %v3223
    %v3230 = vpop.xlane.xlu0 %3229
    %3231 = vmax.index.xlane.f32.xlu0 %v3226
    %v3232 = vpop.xlane.xlu0 %3231
    %v3233 = vlaneseq
    %v3234 = vshrl.u32 %v3233, 7
    %v3235 = vsub.s32 4, %v3234
    %v3236 = vrot.slane %v2795, %v3235
    %3238 = vbcast.lane.b32.xlu0 %v3236, 256
    %v3239 = vpop.permute.xlu0 %3238
    %v3240 = vlaneseq
    %v3241 = vshrl.u32 %v3240, 7
    %v3242 = vsub.s32 4, %v3241
    %v3243 = vrot.slane %v2798, %v3242
    %3245 = vbcast.lane.b32.xlu0 %v3243, 256
    %v3246 = vpop.permute.xlu0 %3245
    %v3249 = vadd.f32 %v3225, %v3239
    %v3250 = vadd.f32 %v3228, %v3246
    %3251 = vset.pattern.permute.xlu0 4
    %3252 = vperm.xlu0 %3251, %v60
    %v3253 = vpop.permute.xlu0 %3252
    %v3254 = vlaneseq
    %v3255 = vshrl.u32 %v3254, 7
    %v3256 = vsub.s32 0, %v3255
    %v3257 = vrot.slane %v3253, %v3256
    %v3258 = vlaneseq
    %v3259 = vshrl.u32 %v3258, 7
    %v3260 = vsub.s32 1, %v3259
    %v3261 = vrot.slane %v3253, %v3260
    %v3264 = vmul.f32 %v3249, %v3257
    %v3265 = vmul.f32 %v3250, %v3261
    %3266 = vset.pattern.permute.xlu0 4
    %3267 = vperm.xlu0 %3266, %v61
    %v3268 = vpop.permute.xlu0 %3267
    %v3269 = vlaneseq
    %v3270 = vshrl.u32 %v3269, 7
    %v3271 = vsub.s32 0, %v3270
    %v3272 = vrot.slane %v3268, %v3271
    %v3273 = vlaneseq
    %v3274 = vshrl.u32 %v3273, 7
    %v3275 = vsub.s32 1, %v3274
    %v3276 = vrot.slane %v3268, %v3275
    %v3279 = vmul.f32 %v3189, %v3272
    %v3280 = vmul.f32 %v3190, %v3276
    %v3281 = vadd.f32 %v3264, %v3279
    %v3282 = vadd.f32 %v3265, %v3280
    %3285 = vset.pattern.permute.xlu0 0
    %3286 = vperm.xlu0 %3285, %v3281
    %v3287 = vpop.permute.xlu0 %3286
    %3288 = vset.pattern.permute.xlu0 0
    %3289 = vperm.xlu0 %3288, %v3282
    %v3290 = vpop.permute.xlu0 %3289
    %v3291 = vlaneseq
    %v3292 = vshrl.u32 %v3291, 7
    %v3293 = vsub.s32 %v2803, %v3292
    %v3294 = vrot.slane %v3287, %v3293
    %v3295 = vlaneseq
    %v3296 = vshrl.u32 %v3295, 7
    %v3297 = vsub.s32 %v2803, %v3296
    %v3298 = vrot.slane %v3290, %v3297
    %v3299 = vsel %vm2925, %v3294, %v3294
    %v3300 = vsel %vm2927, %v3294, %v3299
    %v3301 = vsel %vm2929, %v3294, %v3300
    %v3302 = vsel %vm2931, %v3294, %v3301
    %v3303 = vsel %vm2933, %v3294, %v3302
    %v3304 = vsel %vm2935, %v3294, %v3303
    %v3305 = vsel %vm2925, %v3298, %v3298
    %v3306 = vsel %vm2927, %v3298, %v3305
    %v3307 = vsel %vm2929, %v3298, %v3306
    %v3308 = vsel %vm2931, %v3298, %v3307
    %v3309 = vsel %vm2933, %v3298, %v3308
    %v3310 = vsel %vm2935, %v3298, %v3309
    %v3313 = vadd.f32 %v2801, %v3304
    %v3314 = vadd.f32 %v2801, %v3310
    %v3315 = vsel %vm162, %v3313, -inf
    %3316 = vmax.xlane.f32.xlu0 %v3315
    %v3317 = vpop.xlane.xlu0 %3316
    %v3318 = vsel %vm162, %v3314, -inf
    %3319 = vmax.xlane.f32.xlu0 %v3318
    %v3320 = vpop.xlane.xlu0 %3319
    %3321 = vmax.index.xlane.f32.xlu0 %v3315
    %v3322 = vpop.xlane.xlu0 %3321
    %3323 = vmax.index.xlane.f32.xlu0 %v3318
    %v3324 = vpop.xlane.xlu0 %3323
    %v3325 = vlaneseq
    %v3326 = vshrl.u32 %v3325, 7
    %v3327 = vsub.s32 5, %v3326
    %v3328 = vrot.slane %v2795, %v3327
    %3330 = vbcast.lane.b32.xlu0 %v3328, 256
    %v3331 = vpop.permute.xlu0 %3330
    %v3332 = vlaneseq
    %v3333 = vshrl.u32 %v3332, 7
    %v3334 = vsub.s32 5, %v3333
    %v3335 = vrot.slane %v2798, %v3334
    %3337 = vbcast.lane.b32.xlu0 %v3335, 256
    %v3338 = vpop.permute.xlu0 %3337
    %v3341 = vadd.f32 %v3317, %v3331
    %v3342 = vadd.f32 %v3320, %v3338
    %3343 = vset.pattern.permute.xlu0 5
    %3344 = vperm.xlu0 %3343, %v60
    %v3345 = vpop.permute.xlu0 %3344
    %v3346 = vlaneseq
    %v3347 = vshrl.u32 %v3346, 7
    %v3348 = vsub.s32 0, %v3347
    %v3349 = vrot.slane %v3345, %v3348
    %v3350 = vlaneseq
    %v3351 = vshrl.u32 %v3350, 7
    %v3352 = vsub.s32 1, %v3351
    %v3353 = vrot.slane %v3345, %v3352
    %v3356 = vmul.f32 %v3341, %v3349
    %v3357 = vmul.f32 %v3342, %v3353
    %3358 = vset.pattern.permute.xlu0 5
    %3359 = vperm.xlu0 %3358, %v61
    %v3360 = vpop.permute.xlu0 %3359
    %v3361 = vlaneseq
    %v3362 = vshrl.u32 %v3361, 7
    %v3363 = vsub.s32 0, %v3362
    %v3364 = vrot.slane %v3360, %v3363
    %v3365 = vlaneseq
    %v3366 = vshrl.u32 %v3365, 7
    %v3367 = vsub.s32 1, %v3366
    %v3368 = vrot.slane %v3360, %v3367
    %v3371 = vmul.f32 %v3281, %v3364
    %v3372 = vmul.f32 %v3282, %v3368
    %v3373 = vadd.f32 %v3356, %v3371
    %v3374 = vadd.f32 %v3357, %v3372
    %3377 = vset.pattern.permute.xlu0 0
    %3378 = vperm.xlu0 %3377, %v3373
    %v3379 = vpop.permute.xlu0 %3378
    %3380 = vset.pattern.permute.xlu0 0
    %3381 = vperm.xlu0 %3380, %v3374
    %v3382 = vpop.permute.xlu0 %3381
    %v3383 = vlaneseq
    %v3384 = vshrl.u32 %v3383, 7
    %v3385 = vsub.s32 %v2803, %v3384
    %v3386 = vrot.slane %v3379, %v3385
    %v3387 = vlaneseq
    %v3388 = vshrl.u32 %v3387, 7
    %v3389 = vsub.s32 %v2803, %v3388
    %v3390 = vrot.slane %v3382, %v3389
    %v3391 = vsel %vm2925, %v3386, %v3386
    %v3392 = vsel %vm2927, %v3386, %v3391
    %v3393 = vsel %vm2929, %v3386, %v3392
    %v3394 = vsel %vm2931, %v3386, %v3393
    %v3395 = vsel %vm2933, %v3386, %v3394
    %v3396 = vsel %vm2935, %v3386, %v3395
    %v3397 = vsel %vm2925, %v3390, %v3390
    %v3398 = vsel %vm2927, %v3390, %v3397
    %v3399 = vsel %vm2929, %v3390, %v3398
    %v3400 = vsel %vm2931, %v3390, %v3399
    %v3401 = vsel %vm2933, %v3390, %v3400
    %v3402 = vsel %vm2935, %v3390, %v3401
    %v3405 = vadd.f32 %v2801, %v3396
    %v3406 = vadd.f32 %v2801, %v3402
    %v3407 = vsel %vm162, %v3405, -inf
    %3408 = vmax.xlane.f32.xlu0 %v3407
    %v3409 = vpop.xlane.xlu0 %3408
    %v3410 = vsel %vm162, %v3406, -inf
    %3411 = vmax.xlane.f32.xlu0 %v3410
    %v3412 = vpop.xlane.xlu0 %3411
    %3413 = vmax.index.xlane.f32.xlu0 %v3407
    %v3414 = vpop.xlane.xlu0 %3413
    %3415 = vmax.index.xlane.f32.xlu0 %v3410
    %v3416 = vpop.xlane.xlu0 %3415
    %v3417 = vlaneseq
    %v3418 = vshrl.u32 %v3417, 7
    %v3419 = vsub.s32 6, %v3418
    %v3420 = vrot.slane %v2795, %v3419
    %3422 = vbcast.lane.b32.xlu0 %v3420, 256
    %v3423 = vpop.permute.xlu0 %3422
    %v3424 = vlaneseq
    %v3425 = vshrl.u32 %v3424, 7
    %v3426 = vsub.s32 6, %v3425
    %v3427 = vrot.slane %v2798, %v3426
    %3429 = vbcast.lane.b32.xlu0 %v3427, 256
    %v3430 = vpop.permute.xlu0 %3429
    %v3433 = vadd.f32 %v3409, %v3423
    %v3434 = vadd.f32 %v3412, %v3430
    %3435 = vset.pattern.permute.xlu0 6
    %3436 = vperm.xlu0 %3435, %v60
    %v3437 = vpop.permute.xlu0 %3436
    %v3438 = vlaneseq
    %v3439 = vshrl.u32 %v3438, 7
    %v3440 = vsub.s32 0, %v3439
    %v3441 = vrot.slane %v3437, %v3440
    %v3442 = vlaneseq
    %v3443 = vshrl.u32 %v3442, 7
    %v3444 = vsub.s32 1, %v3443
    %v3445 = vrot.slane %v3437, %v3444
    %v3448 = vmul.f32 %v3433, %v3441
    %v3449 = vmul.f32 %v3434, %v3445
    %3450 = vset.pattern.permute.xlu0 6
    %3451 = vperm.xlu0 %3450, %v61
    %v3452 = vpop.permute.xlu0 %3451
    %v3453 = vlaneseq
    %v3454 = vshrl.u32 %v3453, 7
    %v3455 = vsub.s32 0, %v3454
    %v3456 = vrot.slane %v3452, %v3455
    %v3457 = vlaneseq
    %v3458 = vshrl.u32 %v3457, 7
    %v3459 = vsub.s32 1, %v3458
    %v3460 = vrot.slane %v3452, %v3459
    %v3463 = vmul.f32 %v3373, %v3456
    %v3464 = vmul.f32 %v3374, %v3460
    %v3465 = vadd.f32 %v3448, %v3463
    %v3466 = vadd.f32 %v3449, %v3464
    %3469 = vset.pattern.permute.xlu0 0
    %3470 = vperm.xlu0 %3469, %v3465
    %v3471 = vpop.permute.xlu0 %3470
    %3472 = vset.pattern.permute.xlu0 0
    %3473 = vperm.xlu0 %3472, %v3466
    %v3474 = vpop.permute.xlu0 %3473
    %v3475 = vlaneseq
    %v3476 = vshrl.u32 %v3475, 7
    %v3477 = vsub.s32 %v2803, %v3476
    %v3478 = vrot.slane %v3471, %v3477
    %v3479 = vlaneseq
    %v3480 = vshrl.u32 %v3479, 7
    %v3481 = vsub.s32 %v2803, %v3480
    %v3482 = vrot.slane %v3474, %v3481
    %v3483 = vsel %vm2925, %v3478, %v3478
    %v3484 = vsel %vm2927, %v3478, %v3483
    %v3485 = vsel %vm2929, %v3478, %v3484
    %v3486 = vsel %vm2931, %v3478, %v3485
    %v3487 = vsel %vm2933, %v3478, %v3486
    %v3488 = vsel %vm2935, %v3478, %v3487
    %v3489 = vsel %vm2925, %v3482, %v3482
    %v3490 = vsel %vm2927, %v3482, %v3489
    %v3491 = vsel %vm2929, %v3482, %v3490
    %v3492 = vsel %vm2931, %v3482, %v3491
    %v3493 = vsel %vm2933, %v3482, %v3492
    %v3494 = vsel %vm2935, %v3482, %v3493
    %v3497 = vadd.f32 %v2801, %v3488
    %v3498 = vadd.f32 %v2801, %v3494
    %v3499 = vsel %vm162, %v3497, -inf
    %3500 = vmax.xlane.f32.xlu0 %v3499
    %v3501 = vpop.xlane.xlu0 %3500
    %v3502 = vsel %vm162, %v3498, -inf
    %3503 = vmax.xlane.f32.xlu0 %v3502
    %v3504 = vpop.xlane.xlu0 %3503
    %3505 = vmax.index.xlane.f32.xlu0 %v3499
    %v3506 = vpop.xlane.xlu0 %3505
    %3507 = vmax.index.xlane.f32.xlu0 %v3502
    %v3508 = vpop.xlane.xlu0 %3507
    %v3509 = vlaneseq
    %v3510 = vshrl.u32 %v3509, 7
    %v3511 = vsub.s32 7, %v3510
    %v3512 = vrot.slane %v2795, %v3511
    %3514 = vbcast.lane.b32.xlu0 %v3512, 256
    %v3515 = vpop.permute.xlu0 %3514
    %v3516 = vlaneseq
    %v3517 = vshrl.u32 %v3516, 7
    %v3518 = vsub.s32 7, %v3517
    %v3519 = vrot.slane %v2798, %v3518
    %3521 = vbcast.lane.b32.xlu0 %v3519, 256
    %v3522 = vpop.permute.xlu0 %3521
    %v3525 = vadd.f32 %v3501, %v3515
    %v3526 = vadd.f32 %v3504, %v3522
    %3527 = vset.pattern.permute.xlu0 7
    %3528 = vperm.xlu0 %3527, %v60
    %v3529 = vpop.permute.xlu0 %3528
    %v3530 = vlaneseq
    %v3531 = vshrl.u32 %v3530, 7
    %v3532 = vsub.s32 0, %v3531
    %v3533 = vrot.slane %v3529, %v3532
    %v3534 = vlaneseq
    %v3535 = vshrl.u32 %v3534, 7
    %v3536 = vsub.s32 1, %v3535
    %v3537 = vrot.slane %v3529, %v3536
    %v3540 = vmul.f32 %v3525, %v3533
    %v3541 = vmul.f32 %v3526, %v3537
    %3542 = vset.pattern.permute.xlu0 7
    %3543 = vperm.xlu0 %3542, %v61
    %v3544 = vpop.permute.xlu0 %3543
    %v3545 = vlaneseq
    %v3546 = vshrl.u32 %v3545, 7
    %v3547 = vsub.s32 0, %v3546
    %v3548 = vrot.slane %v3544, %v3547
    %v3549 = vlaneseq
    %v3550 = vshrl.u32 %v3549, 7
    %v3551 = vsub.s32 1, %v3550
    %v3552 = vrot.slane %v3544, %v3551
    %v3555 = vmul.f32 %v3465, %v3548
    %v3556 = vmul.f32 %v3466, %v3552
    %v3557 = vadd.f32 %v3540, %v3555
    %v3558 = vadd.f32 %v3541, %v3556
    %v3559 = vlaneseq
    %v3560 = vshrl.u32 %v3559, 7
    %v3561 = vsub.s32 7, %v3560
    %v3562 = vrot.slane %v2801, %v3561
    %3565 = vbcast.lane.b32.xlu0 %v3562, 256
    %v3566 = vpop.permute.xlu0 %3565
    %v3568 = vadd.f32 %v3557, %v3566
    %v3569 = vadd.f32 %v3558, %v3566
    %3572 = vset.pattern.permute.xlu0 0
    %3573 = vperm.xlu0 %3572, %v3568
    %v3574 = vpop.permute.xlu0 %3573
    %3575 = vset.pattern.permute.xlu0 0
    %3576 = vperm.xlu0 %3575, %v3569
    %v3577 = vpop.permute.xlu0 %3576
    %v3578 = vlaneseq
    %v3579 = vshrl.u32 %v3578, 7
    %v3580 = vsub.s32 %v2803, %v3579
    %v3581 = vrot.slane %v3574, %v3580
    %v3582 = vlaneseq
    %v3583 = vshrl.u32 %v3582, 7
    %v3584 = vsub.s32 %v2803, %v3583
    %v3585 = vrot.slane %v3577, %v3584
    %v3586 = vsel %vm2924, %v3585, %v3581
    %vm3588 = vcmask 58368
    %v3589 = vsel %vm3588, %v3586, -inf
    %3590 = vmax.xlane.f32.xlu0 %v3589
    %v3591 = vpop.xlane.xlu0 %3590
    %vm3592 = vcmask 1024
    %3593 = vst.msk [vmem:[%s17] sm:$0x3] %vm3592, %v3591
    %3594 = vmax.index.xlane.f32.xlu0 %v3589
    %v3595 = vpop.xlane.xlu0 %3594
    %vm3596 = vcmp.gt.f32.partialorder %v60, 0.5
    %vm3597 = vcmp.eq.s32.totalorder %v2803, 7
    %v3598 = vsel %vm3596, %v3595, 0
    %3599 = vset.pattern.permute.xlu0 7
    %3600 = vperm.xlu0 %3599, %v3598
    %v3601 = vpop.permute.xlu0 %3600
    %v3602 = vsel %vm3597, %v3601, 0
    %vm3603 = vcmp.eq.s32.totalorder %v2803, %v3595
    %v3604 = vcvt.s32.f32 %v3506
    %v3605 = vcvt.s32.f32 %v3508
    %v3608 = vlaneseq
    %v3609 = vshrl.u32 %v3608, 7
    %v3610 = vsub.s32 %v2803, %v3609
    %v3611 = vrot.slane %v3604, %v3610
    %v3612 = vlaneseq
    %v3613 = vshrl.u32 %v3612, 7
    %v3614 = vsub.s32 %v2803, %v3613
    %v3615 = vrot.slane %v3605, %v3614
    %v3616 = vsel %vm2924, %v3615, %v3611
    %v3618 = vsel %vm3603, %v3616, 0.0
    %v3619 = vsel %vm3588, %v3618, 0.0
    %3620 = vadd.xlane.f32.xlu0 %v3619
    %v3621 = vpop.xlane.xlu0 %3620
    %v3622 = vcvt.f32.s32.to.zero.pseudo %v3621
    %v3623 = vsel %vm3596, %v3622, %v3595
    %3624 = vrot.lane.b32.xlu0 %v3623, 127
    %v3625 = vpop.permute.xlu0 %3624
    %v3626 = vsel %vm3596, %v3625, 0
    %3627 = vset.pattern.permute.xlu0 6
    %3628 = vperm.xlu0 %3627, %v3626
    %v3629 = vpop.permute.xlu0 %3628
    %v3630 = vsel %vm2804, %v3629, %v3602
    %3631 = vset.pattern.permute.xlu0 7
    %3632 = vperm.xlu0 %3631, %v3623
    %v3633 = vpop.permute.xlu0 %3632
    %vm3634 = vcmp.eq.s32.totalorder %v2803, %v3633
    %v3635 = vcvt.s32.f32 %v3414
    %v3636 = vcvt.s32.f32 %v3416
    %v3639 = vlaneseq
    %v3640 = vshrl.u32 %v3639, 7
    %v3641 = vsub.s32 %v2803, %v3640
    %v3642 = vrot.slane %v3635, %v3641
    %v3643 = vlaneseq
    %v3644 = vshrl.u32 %v3643, 7
    %v3645 = vsub.s32 %v2803, %v3644
    %v3646 = vrot.slane %v3636, %v3645
    %v3647 = vsel %vm2924, %v3646, %v3642
    %v3649 = vsel %vm3634, %v3647, 0.0
    %v3650 = vsel %vm3588, %v3649, 0.0
    %3651 = vadd.xlane.f32.xlu0 %v3650
    %v3652 = vpop.xlane.xlu0 %3651
    %v3653 = vcvt.f32.s32.to.zero.pseudo %v3652
    %v3654 = vsel %vm3596, %v3653, %v3625
    %vm3655 = vcmp.eq.s32.totalorder %v2803, 5
    %3656 = vrot.lane.b32.xlu0 %v3654, 127
    %v3657 = vpop.permute.xlu0 %3656
    %v3658 = vsel %vm3596, %v3657, 0
    %3659 = vset.pattern.permute.xlu0 5
    %3660 = vperm.xlu0 %3659, %v3658
    %v3661 = vpop.permute.xlu0 %3660
    %v3662 = vsel %vm3655, %v3661, %v3630
    %3663 = vset.pattern.permute.xlu0 6
    %3664 = vperm.xlu0 %3663, %v3654
    %v3665 = vpop.permute.xlu0 %3664
    %vm3666 = vcmp.eq.s32.totalorder %v2803, %v3665
    %v3667 = vcvt.s32.f32 %v3322
    %v3668 = vcvt.s32.f32 %v3324
    %v3671 = vlaneseq
    %v3672 = vshrl.u32 %v3671, 7
    %v3673 = vsub.s32 %v2803, %v3672
    %v3674 = vrot.slane %v3667, %v3673
    %v3675 = vlaneseq
    %v3676 = vshrl.u32 %v3675, 7
    %v3677 = vsub.s32 %v2803, %v3676
    %v3678 = vrot.slane %v3668, %v3677
    %v3679 = vsel %vm2924, %v3678, %v3674
    %v3681 = vsel %vm3666, %v3679, 0.0
    %v3682 = vsel %vm3588, %v3681, 0.0
    %3683 = vadd.xlane.f32.xlu0 %v3682
    %v3684 = vpop.xlane.xlu0 %3683
    %v3685 = vcvt.f32.s32.to.zero.pseudo %v3684
    %v3686 = vsel %vm3596, %v3685, %v3657
    %vm3687 = vcmp.eq.s32.totalorder %v2803, 4
    %3688 = vrot.lane.b32.xlu0 %v3686, 127
    %v3689 = vpop.permute.xlu0 %3688
    %v3690 = vsel %vm3596, %v3689, 0
    %3691 = vset.pattern.permute.xlu0 4
    %3692 = vperm.xlu0 %3691, %v3690
    %v3693 = vpop.permute.xlu0 %3692
    %v3694 = vsel %vm3687, %v3693, %v3662
    %3695 = vset.pattern.permute.xlu0 5
    %3696 = vperm.xlu0 %3695, %v3686
    %v3697 = vpop.permute.xlu0 %3696
    %vm3698 = vcmp.eq.s32.totalorder %v2803, %v3697
    %v3699 = vcvt.s32.f32 %v3230
    %v3700 = vcvt.s32.f32 %v3232
    %v3703 = vlaneseq
    %v3704 = vshrl.u32 %v3703, 7
    %v3705 = vsub.s32 %v2803, %v3704
    %v3706 = vrot.slane %v3699, %v3705
    %v3707 = vlaneseq
    %v3708 = vshrl.u32 %v3707, 7
    %v3709 = vsub.s32 %v2803, %v3708
    %v3710 = vrot.slane %v3700, %v3709
    %v3711 = vsel %vm2924, %v3710, %v3706
    %v3713 = vsel %vm3698, %v3711, 0.0
    %v3714 = vsel %vm3588, %v3713, 0.0
    %3715 = vadd.xlane.f32.xlu0 %v3714
    %v3716 = vpop.xlane.xlu0 %3715
    %v3717 = vcvt.f32.s32.to.zero.pseudo %v3716
    %v3718 = vsel %vm3596, %v3717, %v3689
    %vm3719 = vcmp.eq.s32.totalorder %v2803, 3
    %3720 = vrot.lane.b32.xlu0 %v3718, 127
    %v3721 = vpop.permute.xlu0 %3720
    %v3722 = vsel %vm3596, %v3721, 0
    %3723 = vset.pattern.permute.xlu0 3
    %3724 = vperm.xlu0 %3723, %v3722
    %v3725 = vpop.permute.xlu0 %3724
    %v3726 = vsel %vm3719, %v3725, %v3694
    %3727 = vset.pattern.permute.xlu0 4
    %3728 = vperm.xlu0 %3727, %v3718
    %v3729 = vpop.permute.xlu0 %3728
    %vm3730 = vcmp.eq.s32.totalorder %v2803, %v3729
    %v3731 = vcvt.s32.f32 %v3138
    %v3732 = vcvt.s32.f32 %v3140
    %v3735 = vlaneseq
    %v3736 = vshrl.u32 %v3735, 7
    %v3737 = vsub.s32 %v2803, %v3736
    %v3738 = vrot.slane %v3731, %v3737
    %v3739 = vlaneseq
    %v3740 = vshrl.u32 %v3739, 7
    %v3741 = vsub.s32 %v2803, %v3740
    %v3742 = vrot.slane %v3732, %v3741
    %v3743 = vsel %vm2924, %v3742, %v3738
    %v3745 = vsel %vm3730, %v3743, 0.0
    %v3746 = vsel %vm3588, %v3745, 0.0
    %3747 = vadd.xlane.f32.xlu0 %v3746
    %v3748 = vpop.xlane.xlu0 %3747
    %v3749 = vcvt.f32.s32.to.zero.pseudo %v3748
    %v3750 = vsel %vm3596, %v3749, %v3721
    %vm3751 = vcmp.eq.s32.totalorder %v2803, 2
    %3752 = vrot.lane.b32.xlu0 %v3750, 127
    %v3753 = vpop.permute.xlu0 %3752
    %v3754 = vsel %vm3596, %v3753, 0
    %3755 = vset.pattern.permute.xlu0 2
    %3756 = vperm.xlu0 %3755, %v3754
    %v3757 = vpop.permute.xlu0 %3756
    %v3758 = vsel %vm3751, %v3757, %v3726
    %3759 = vset.pattern.permute.xlu0 3
    %3760 = vperm.xlu0 %3759, %v3750
    %v3761 = vpop.permute.xlu0 %3760
    %vm3762 = vcmp.eq.s32.totalorder %v2803, %v3761
    %v3763 = vcvt.s32.f32 %v3046
    %v3764 = vcvt.s32.f32 %v3048
    %v3767 = vlaneseq
    %v3768 = vshrl.u32 %v3767, 7
    %v3769 = vsub.s32 %v2803, %v3768
    %v3770 = vrot.slane %v3763, %v3769
    %v3771 = vlaneseq
    %v3772 = vshrl.u32 %v3771, 7
    %v3773 = vsub.s32 %v2803, %v3772
    %v3774 = vrot.slane %v3764, %v3773
    %v3775 = vsel %vm2924, %v3774, %v3770
    %v3777 = vsel %vm3762, %v3775, 0.0
    %v3778 = vsel %vm3588, %v3777, 0.0
    %3779 = vadd.xlane.f32.xlu0 %v3778
    %v3780 = vpop.xlane.xlu0 %3779
    %v3781 = vcvt.f32.s32.to.zero.pseudo %v3780
    %v3782 = vsel %vm3596, %v3781, %v3753
    %vm3783 = vcmp.eq.s32.totalorder %v2803, 1
    %3784 = vrot.lane.b32.xlu0 %v3782, 127
    %v3785 = vpop.permute.xlu0 %3784
    %v3786 = vsel %vm3596, %v3785, 0
    %3787 = vset.pattern.permute.xlu0 1
    %3788 = vperm.xlu0 %3787, %v3786
    %v3789 = vpop.permute.xlu0 %3788
    %v3790 = vsel %vm3783, %v3789, %v3758
    %3791 = vset.pattern.permute.xlu0 2
    %3792 = vperm.xlu0 %3791, %v3782
    %v3793 = vpop.permute.xlu0 %3792
    %vm3794 = vcmp.eq.s32.totalorder %v2803, %v3793
    %v3795 = vcvt.s32.f32 %v2954
    %v3796 = vcvt.s32.f32 %v2956
    %v3799 = vlaneseq
    %v3800 = vshrl.u32 %v3799, 7
    %v3801 = vsub.s32 %v2803, %v3800
    %v3802 = vrot.slane %v3795, %v3801
    %v3803 = vlaneseq
    %v3804 = vshrl.u32 %v3803, 7
    %v3805 = vsub.s32 %v2803, %v3804
    %v3806 = vrot.slane %v3796, %v3805
    %v3807 = vsel %vm2924, %v3806, %v3802
    %v3809 = vsel %vm3794, %v3807, 0.0
    %v3810 = vsel %vm3588, %v3809, 0.0
    %3811 = vadd.xlane.f32.xlu0 %v3810
    %v3812 = vpop.xlane.xlu0 %3811
    %v3813 = vcvt.f32.s32.to.zero.pseudo %v3812
    %v3814 = vsel %vm3596, %v3813, %v3785
    %vm3815 = vcmp.eq.s32.totalorder %v2803, 0
    %3816 = vrot.lane.b32.xlu0 %v3814, 127
    %v3817 = vpop.permute.xlu0 %3816
    %v3818 = vsel %vm3596, %v3817, 0
    %3819 = vset.pattern.permute.xlu0 0
    %3820 = vperm.xlu0 %3819, %v3818
    %v3821 = vpop.permute.xlu0 %3820
    %v3822 = vsel %vm3815, %v3821, %v3790
    %3823 = vst.msk [vmem:[#allocation2] sm:$0x3] %vm3588, %v3822
    // Predicated region
    $region70: #{_device_forward.1} parent=1 // pred_check
      _
    $region71: #{_device_forward.1} parent=1 // pred_check_branch
      %3825 = sbr.rel (0) target = $region73
    $region72: #{_device_forward.1} parent=1 // pred_region
      _
    $region73: #{_device_forward.1} parent=1 // pred_fallthru
      _
    // Predicated region
    $region74: #{_device_forward.1} parent=1 // pred_check
      _
    $region75: #{_device_forward.1} parent=1 // pred_check_branch
      %3827 = sbr.rel (0) target = $region77
    $region76: #{_device_forward.1} parent=1 // pred_region
      %s3829 = ssub.s32 32, 32
      %3830 = vsyncadd [#allocation3], %s3829
      %s3832 = sshll.u32 [#allocation2], 4
      %s3833 = int_to_ptr.vmem [resolvable:$true] %s3832
      %3835 = dma.vmem_to_hbm [thread:$0]  %s3833, 32, %s18, [#allocation3]
    $region77: #{_device_forward.1} parent=1 // pred_fallthru
      _
    // Predicated region
    $region78: #{_device_forward.1} parent=1 // pred_check
      _
    $region79: #{_device_forward.1} parent=1 // pred_check_branch
      %3837 = sbr.rel (0) target = $region81
    $region80: #{_device_forward.1} parent=1 // pred_region
      _
    $region81: #{_device_forward.1} parent=1 // pred_fallthru
      _
    // Predicated region
    $region82: #{_device_forward.1} parent=1 // pred_check
      _
    $region83: #{_device_forward.1} parent=1 // pred_check_branch
      %3839 = sbr.rel (0) target = $region85
    $region84: #{_device_forward.1} parent=1 // pred_region
      %3840 = dma.done [#allocation3], 32
    $region85: #{_device_forward.1} parent=1 // pred_fallthru
      _
    %3841 = vsyncpa [#allocation3], 1

</llo_original>
